<compile_context>
chip_gen: v6e
topology: v6e:2x2x1
jax: 0.10.0
libtpu: 0.0.40
codegen_flags: <defaults>
</compile_context>

<pallas_src>
import functools

import jax
import jax.numpy as jnp
from jax.experimental import pallas as pl
from jax.experimental.pallas import tpu as pltpu

LN_EPS = 1e-5  # torch.nn.LayerNorm default


# ----------------------------------------------------------------------------
# Kernel.  Grid = (token_tiles [parallel], hidden_chunks [arbitrary]).
# ----------------------------------------------------------------------------
def _node_embed_kernel(x_ref, w1_ref, bb1_ref, w2_ref, bb2_ref, g2_ref, b2_ref,
                       o_ref, xn_ref, acc_ref):
    k = pl.program_id(1)
    nk = pl.num_programs(1)

    @pl.when(k == 0)
    def _():
        x = x_ref[...].astype(jnp.float32)
        # LayerNorm(patch_dim), two-pass variance.  The affine (g1, b1) has
        # been folded into (w1_ref, bb1_ref) at weight-prep time.
        mu = jnp.mean(x, axis=-1, keepdims=True)
        xc = x - mu
        var = jnp.mean(xc * xc, axis=-1, keepdims=True)
        xn_ref[...] = (xc * jax.lax.rsqrt(var + LN_EPS)).astype(jnp.bfloat16)
        # Accumulator starts at the second Linear's bias (saves a VPU add).
        acc_ref[...] = jnp.broadcast_to(bb2_ref[...],
                                        acc_ref.shape).astype(jnp.float32)

    # MLP over one hidden chunk: Linear -> ReLU -> Linear.
    # bf16 MXU operands, f32 accumulation; element-wise math in f32.
    h = jnp.dot(xn_ref[...], w1_ref[...], preferred_element_type=jnp.float32)
    h = jnp.maximum(h + bb1_ref[...], 0.0)
    acc_ref[...] += jnp.dot(h.astype(jnp.bfloat16), w2_ref[...],
                            preferred_element_type=jnp.float32)

    @pl.when(k == nk - 1)
    def _():
        # LayerNorm(dim), two-pass variance, then the output affine.
        y = acc_ref[...]
        mu = jnp.mean(y, axis=-1, keepdims=True)
        yc = y - mu
        var = jnp.mean(yc * yc, axis=-1, keepdims=True)
        yn = yc * jax.lax.rsqrt(var + LN_EPS)
        o_ref[...] = (yn * g2_ref[...] + b2_ref[...]).astype(o_ref.dtype)


# ----------------------------------------------------------------------------
# VMEM / tiling policy.
# ----------------------------------------------------------------------------
def _vmem_budget_bytes():
    """~85% of the physical per-core VMEM (headroom for compiler scratch)."""
    cap = 64 * 1024 * 1024  # conservative fallback (v7x-sized)
    try:
        info = pltpu.get_tpu_info()
        cap = int(getattr(info, "vmem_capacity_bytes", cap) or cap)
    except Exception:
        pass
    return int(cap * 0.85)


def _choose_tiling(patch_dim, hidden, dim, in_bytes, out_bytes, budget):
    """Pick (tm, tk).  Prefer the whole hidden dim resident (single GEMM,
    single-buffered weights); stream 128-aligned weight chunks only when the
    resident bf16 weights would not fit (wide-hidden fallback for v7x)."""
    def fits(tm, tk, resident):
        w = 2 * (patch_dim * tk + tk * dim + tk)        # bf16 W1+W2 chunk + bias
        w *= 1 if resident else 2                       # double-buffered stream
        io = 2 * tm * patch_dim * in_bytes + 2 * tm * dim * out_bytes
        scratch = tm * patch_dim * 2 + tm * dim * 4     # xn bf16 + acc f32
        live = tm * tk * 6 + tm * patch_dim * 4 + tm * dim * 4
        return w + io + scratch + live + (2 << 20) <= budget

    for tm in (512, 256, 128):                          # bigger tm amortizes
        if fits(tm, hidden, True):                      # per-step overhead
            return tm, hidden
    for tm in (512, 256, 128):
        for tk in (4096, 2048, 1024, 512, 256, 128):
            if tk < hidden and hidden % tk == 0 and fits(tm, tk, False):
                return tm, tk
    return 128, hidden                                  # last resort


# ----------------------------------------------------------------------------
# Wrapper.
# ----------------------------------------------------------------------------
def node_embedding_forward(x, params, *, patch_height, patch_width,
                           frame_patch_size, cast_input_bf16=True,
                           out_dtype=None, tm=None, hidden_chunk=None):
    """x: (b, c, f*pf, h*p1, w*p2)  ->  (b, f, w*h, dim)"""
    b, c, F, H, W = x.shape
    p1, p2, pf = patch_height, patch_width, frame_patch_size
    assert F % pf == 0 and H % p1 == 0 and W % p2 == 0
    f, h, w = F // pf, H // p1, W // p2
    patch_dim = p1 * p2 * pf * c

    g1, b1, w1, bb1, w2, bb2, g2, b2 = params
    hidden = w1.shape[1]
    dim = w2.shape[1]
    out_dtype = x.dtype if out_dtype is None else out_dtype
    in_dtype = jnp.bfloat16 if cast_input_bf16 else x.dtype

    # ---- Rearrange with a cheap within-patch feature order -----------------
    # einops wants 'b c (f pf) (h p1) (w p2) -> b f (w h) (p1 p2 pf c)'.
    # LN1 is permutation-invariant over the feature axis, so we use the order
    # (c, pf, p1, p2) — source-innermost p2 stays innermost (contiguous runs)
    # — and permute W1's rows / LN1's affine to match.
    # TODO(synk): fold this gather fully into pallas via an index_map /
    # manual DMA over the original 5-D layout to drop the extra HBM round trip.
    xr = x.reshape(b, c, f, pf, h, p1, w, p2)
    xr = jnp.transpose(xr, (0, 2, 6, 4, 1, 3, 5, 7))    # b f w h c pf p1 p2
    tokens = xr.reshape(b * f * w * h, patch_dim).astype(in_dtype)

    # perm maps new feature index (c,pf,p1,p2) -> original index (p1,p2,pf,c).
    perm = jnp.transpose(jnp.arange(patch_dim).reshape(p1, p2, pf, c),
                         (3, 2, 0, 1)).reshape(-1)

    # ---- One-time weight prep (permute, fold LN1 affine, narrow to bf16) ---
    #   (xn*g1 + b1) @ W1 + bb1  ==  xn @ (g1[:,None]*W1) + (b1 @ W1 + bb1)
    g1p = g1.reshape(-1)[perm]
    b1p = b1.reshape(-1)[perm]
    w1p = w1[perm, :]
    w1_fold = (g1p[:, None] * w1p).astype(jnp.bfloat16)
    bb1_fold = (b1p[None, :] @ w1p + bb1).astype(jnp.float32)
    w2_b = w2.astype(jnp.bfloat16)
    bb2 = bb2.astype(jnp.float32)
    g2 = g2.astype(jnp.float32)
    b2 = b2.astype(jnp.float32)

    # ---- Tiling / VMEM policy ----------------------------------------------
    budget = _vmem_budget_bytes()
    auto_tm, auto_tk = _choose_tiling(patch_dim, hidden, dim,
                                      jnp.dtype(in_dtype).itemsize,
                                      jnp.dtype(out_dtype).itemsize, budget)
    tm = auto_tm if tm is None else tm
    tk = auto_tk if hidden_chunk is None else hidden_chunk
    assert hidden % tk == 0, "hidden_chunk must divide proj_hidden_dim"
    nk = hidden // tk
    resident = nk == 1
    # Resident weights: single buffer (no dead double-buffer VMEM).
    # Streamed weights: default double buffering so DMA overlaps MXU work.
    w_mode = pl.Buffered(buffer_count=1) if resident else None

    # Pad tokens to a whole number of row tiles; make the tile count even so
    # the "parallel" axis splits evenly across v7x's two TensorCores.
    n = tokens.shape[0]
    n_tiles = pl.cdiv(n, tm)
    if n_tiles > 1:
        n_tiles += n_tiles % 2
    n_pad = n_tiles * tm
    if n_pad != n:
        tokens = jnp.pad(tokens, ((0, n_pad - n), (0, 0)))

    def const_spec(rows, cols):
        return pl.BlockSpec((rows, cols), lambda i, k: (0, 0),
                            pipeline_mode=pl.Buffered(buffer_count=1))

    grid_spec = pltpu.PrefetchScalarGridSpec(
        num_scalar_prefetch=0,
        grid=(n_tiles, nk),
        in_specs=[
            pl.BlockSpec((tm, patch_dim), lambda i, k: (i, 0)),       # tokens
            pl.BlockSpec((patch_dim, tk), lambda i, k: (0, k),
                         pipeline_mode=w_mode),                       # W1 (folded, bf16)
            pl.BlockSpec((1, tk), lambda i, k: (0, k),
                         pipeline_mode=w_mode),                       # b1 (folded)
            pl.BlockSpec((tk, dim), lambda i, k: (k, 0),
                         pipeline_mode=w_mode),                       # W2 (bf16)
            const_spec(1, dim),                                       # b2
            const_spec(1, dim),                                       # LN2 gamma
            const_spec(1, dim),                                       # LN2 beta
        ],
        out_specs=pl.BlockSpec((tm, dim), lambda i, k: (i, 0)),
        scratch_shapes=[
            pltpu.VMEM((tm, patch_dim), jnp.bfloat16),   # normalized tokens
            pltpu.VMEM((tm, dim), jnp.float32),          # MLP accumulator
        ],
    )

    out = pl.pallas_call(
        _node_embed_kernel,
        out_shape=jax.ShapeDtypeStruct((n_pad, dim), out_dtype),
        grid_spec=grid_spec,
        compiler_params=pltpu.CompilerParams(
            dimension_semantics=("parallel", "arbitrary"),
            vmem_limit_bytes=budget,
        ),
    )(tokens, w1_fold, bb1_fold, w2_b, bb2, g2, b2)

    return out[:n].reshape(b, f, w * h, dim)


# ----------------------------------------------------------------------------
# References.
# ----------------------------------------------------------------------------
def _ln(v, g, beta):
    mu = jnp.mean(v, -1, keepdims=True)
    var = jnp.mean(jnp.square(v - mu), -1, keepdims=True)
    return (v - mu) * jax.lax.rsqrt(var + LN_EPS) * g + beta


def _rearrange_tokens(x, p1, p2, pf):
    """Exact einops 'b c (f pf) (h p1) (w p2) -> b f (w h) (p1 p2 pf c)'."""
    b, c, F, H, W = x.shape
    f, h, w = F // pf, H // p1, W // p2
    xr = x.reshape(b, c, f, pf, h, p1, w, p2)
    xr = jnp.transpose(xr, (0, 2, 6, 4, 5, 7, 3, 1))    # b f w h p1 p2 pf c
    return xr.reshape(b * f * w * h, p1 * p2 * pf * c), (b, f, h, w)


def _reference_mixed(x, params, *, patch_height, patch_width,
                     frame_patch_size, cast_input_bf16=True):
    """Mirrors the kernel's precision (bf16 token cast, folded LN1 affine,
    bf16 MXU operands, f32 accumulation) but uses the ORIGINAL PyTorch
    feature order — so it also validates the feature-permutation trick."""
    g1, b1, w1, bb1, w2, bb2, g2, b2 = params
    t, (b, f, h, w) = _rearrange_tokens(x, patch_height, patch_width,
                                        frame_patch_size)
    if cast_input_bf16:
        t = t.astype(jnp.bfloat16)
    t = t.astype(jnp.float32)
    mu = jnp.mean(t, -1, keepdims=True)
    var = jnp.mean(jnp.square(t - mu), -1, keepdims=True)
    xn = (t - mu) * jax.lax.rsqrt(var + LN_EPS)
    w1_fold = (g1.reshape(-1)[:, None] * w1).astype(jnp.bfloat16)
    bb1_fold = b1 @ w1 + bb1
    hdn = jnp.dot(xn.astype(jnp.bfloat16), w1_fold,
                  preferred_element_type=jnp.float32) + bb1_fold
    hdn = jnp.maximum(hdn, 0.0)
    y = jnp.dot(hdn.astype(jnp.bfloat16), w2.astype(jnp.bfloat16),
                preferred_element_type=jnp.float32) + bb2
    y = _ln(y, g2, b2)
    return y.reshape(b, f, w * h, w2.shape[1])


def _reference_f32(x, params, *, patch_height, patch_width, frame_patch_size):
    """Pure f32 reference == the PyTorch module's math (no bf16, no folding)."""
    g1, b1, w1, bb1, w2, bb2, g2, b2 = params
    t, (b, f, h, w) = _rearrange_tokens(x, patch_height, patch_width,
                                        frame_patch_size)
    t = _ln(t.astype(jnp.float32), g1, b1)
    hdn = jnp.maximum(t @ w1 + bb1, 0.0)
    y = _ln(hdn @ w2 + bb2, g2, b2)
    return y.reshape(b, f, w * h, w2.shape[1])


if __name__ == "__main__":
    # Small config: 128-aligned feature dims (lane-dense stores) and a token
    # count that is NOT a multiple of the row tile (exercises padding + even
    # tile-count rounding):
    #   b=2, c=4, frames=4 (f=2, pf=2), H=W=48 (h=w=12, p1=p2=4)
    #   patch_dim = 4*4*2*4 = 128, hidden = 256, dim = 128, tokens = 576
    b, c = 2, 4
    p1, p2, pf = 4, 4, 2
    f, h, w = 2, 12, 12
    patch_dim = p1 * p2 * pf * c          # 128
    proj_hidden_dim = 256
    dim = 128

    key = jax.random.PRNGKey(0)
    kx, kg1, kb1, kw1, kbb1, kw2, kbb2, kg2, kb2 = jax.random.split(key, 9)

    x = jax.random.normal(kx, (b, c, f * pf, h * p1, w * p2), jnp.float32)

    # Synthetic parameters (Linear weights stored pre-transposed as (in, out)).
    g1 = 1.0 + 0.1 * jax.random.normal(kg1, (1, patch_dim), jnp.float32)
    b1 = 0.05 * jax.random.normal(kb1, (1, patch_dim), jnp.float32)
    w1 = jax.random.normal(kw1, (patch_dim, proj_hidden_dim), jnp.float32) * 0.05
    bb1 = jax.random.normal(kbb1, (1, proj_hidden_dim), jnp.float32) * 0.01
    w2 = jax.random.normal(kw2, (proj_hidden_dim, dim), jnp.float32) * 0.05
    bb2 = jax.random.normal(kbb2, (1, dim), jnp.float32) * 0.01
    g2 = 1.0 + 0.1 * jax.random.normal(kg2, (1, dim), jnp.float32)
    b2 = 0.05 * jax.random.normal(kb2, (1, dim), jnp.float32)
    params = (g1, b1, w1, bb1, w2, bb2, g2, b2)

    fwd = functools.partial(node_embedding_forward,
                            patch_height=p1, patch_width=p2,
                            frame_patch_size=pf)
    out = jax.block_until_ready(fwd(x, params))

    ref_mixed = _reference_mixed(x, params, patch_height=p1, patch_width=p2,
                                 frame_patch_size=pf)
    ref_f32 = _reference_f32(x, params, patch_height=p1, patch_width=p2,
                             frame_patch_size=pf)

    assert out.shape == (b, f, w * h, dim), out.shape
    assert jnp.all(jnp.isfinite(out))
    # Tight check vs the mixed-precision mirror (same math, original feature
    # order) -> validates rearrange, permutation/fold, LN, GEMM and padding.
    assert jnp.allclose(out, ref_mixed, atol=5e-3, rtol=5e-3), (
        float(jnp.max(jnp.abs(out - ref_mixed))))
    # Loose sanity bound vs the pure-f32 PyTorch semantics (bf16-level
    # deviation is expected and intentional).
    assert jnp.max(jnp.abs(out - ref_f32)) < 0.25, (
        float(jnp.max(jnp.abs(out - ref_f32))))

    print("KERNEL_OK")
</pallas_src>

<mosaic_0001>
module attributes {stable_mosaic.version = 11 : i64} {
  func.func @_node_embed_kernel(%arg0: i32, %arg1: i32, %arg2: memref<512x128xbf16, #tpu.memory_space<vmem>>, %arg3: memref<128x256xbf16, #tpu.memory_space<vmem>>, %arg4: memref<1x256xf32, #tpu.memory_space<vmem>>, %arg5: memref<256x128xbf16, #tpu.memory_space<vmem>>, %arg6: memref<1x128xf32, #tpu.memory_space<vmem>>, %arg7: memref<1x128xf32, #tpu.memory_space<vmem>>, %arg8: memref<1x128xf32, #tpu.memory_space<vmem>>, %arg9: memref<512x128xf32, #tpu.memory_space<vmem>>, %arg10: memref<512x128xbf16, #tpu.memory_space<vmem>>, %arg11: memref<512x128xf32, #tpu.memory_space<vmem>>) attributes {dimension_semantics = [#tpu.dimension_semantics<parallel>, #tpu.dimension_semantics<arbitrary>], iteration_bounds = array<i64: 2, 1>, scalar_prefetch = 0 : i64, scratch_operands = 2 : i64, tpu.core_type = #tpu.core_type<tc>, window_params = [{transform_indices = @transform_0, window_bounds = array<i64: 512, 128>}, {pipeline_mode = #tpu.pipeline_mode<synchronous>, transform_indices = @transform_1, window_bounds = array<i64: 128, 256>}, {pipeline_mode = #tpu.pipeline_mode<synchronous>, transform_indices = @transform_2, window_bounds = array<i64: 1, 256>}, {pipeline_mode = #tpu.pipeline_mode<synchronous>, transform_indices = @transform_3, window_bounds = array<i64: 256, 128>}, {pipeline_mode = #tpu.pipeline_mode<synchronous>, transform_indices = @transform_4, window_bounds = array<i64: 1, 128>}, {pipeline_mode = #tpu.pipeline_mode<synchronous>, transform_indices = @transform_5, window_bounds = array<i64: 1, 128>}, {pipeline_mode = #tpu.pipeline_mode<synchronous>, transform_indices = @transform_6, window_bounds = array<i64: 1, 128>}, {transform_indices = @transform_7, window_bounds = array<i64: 512, 128>}]} {
    %c0_i32 = arith.constant 0 : i32
    %0 = arith.cmpi eq, %arg1, %c0_i32 : i32
    %1 = arith.extui %0 : i1 to i32
    %c0_i32_0 = arith.constant 0 : i32
    %2 = arith.cmpi ne, %1, %c0_i32_0 : i32
    scf.if %2 {
      %c0_16 = arith.constant 0 : index
      %c0_17 = arith.constant 0 : index
      %20 = vector.load %arg2[%c0_16, %c0_17] : memref<512x128xbf16, #tpu.memory_space<vmem>>, vector<512x128xbf16>
      %21 = arith.extf %20 : vector<512x128xbf16> to vector<512x128xf32>
      %cst_18 = arith.constant dense<0.000000e+00> : vector<512xf32>
      %22 = vector.multi_reduction <add>, %21, %cst_18 [1] : vector<512x128xf32> to vector<512xf32>
      %23 = vector.shape_cast %22 : vector<512xf32> to vector<512x1xf32>
      %cst_19 = arith.constant 1.280000e+02 : f32
      %24 = vector.broadcast %cst_19 : f32 to vector<512x1xf32>
      %25 = arith.divf %23, %24 : vector<512x1xf32>
      %26 = vector.broadcast %25 : vector<512x1xf32> to vector<512x128xf32>
      %27 = arith.subf %21, %26 : vector<512x128xf32>
      %28 = arith.mulf %27, %27 : vector<512x128xf32>
      %cst_20 = arith.constant dense<0.000000e+00> : vector<512xf32>
      %29 = vector.multi_reduction <add>, %28, %cst_20 [1] : vector<512x128xf32> to vector<512xf32>
      %30 = vector.shape_cast %29 : vector<512xf32> to vector<512x1xf32>
      %cst_21 = arith.constant 1.280000e+02 : f32
      %31 = vector.broadcast %cst_21 : f32 to vector<512x1xf32>
      %32 = arith.divf %30, %31 : vector<512x1xf32>
      %cst_22 = arith.constant 9.99999974E-6 : f32
      %33 = vector.broadcast %cst_22 : f32 to vector<512x1xf32>
      %34 = arith.addf %32, %33 : vector<512x1xf32>
      %35 = math.rsqrt %34 : vector<512x1xf32>
      %36 = vector.broadcast %35 : vector<512x1xf32> to vector<512x128xf32>
      %37 = arith.mulf %27, %36 : vector<512x128xf32>
      %38 = arith.truncf %37 : vector<512x128xf32> to vector<512x128xbf16>
      %c0_23 = arith.constant 0 : index
      %c0_24 = arith.constant 0 : index
      %39 = vector.load %arg10[%c0_23, %c0_24] : memref<512x128xbf16, #tpu.memory_space<vmem>>, vector<512x128xbf16>
      tpu.vector_store %arg10[%c0_23, %c0_24], %38 {strides = array<i32>} : memref<512x128xbf16, #tpu.memory_space<vmem>>, vector<512x128xbf16>,
      %c0_25 = arith.constant 0 : index
      %c0_26 = arith.constant 0 : index
      %40 = vector.load %arg6[%c0_25, %c0_26] : memref<1x128xf32, #tpu.memory_space<vmem>>, vector<1x128xf32>
      %41 = vector.shape_cast %40 : vector<1x128xf32> to vector<1x128xf32>
      %42 = vector.broadcast %41 : vector<1x128xf32> to vector<512x128xf32>
      %c0_27 = arith.constant 0 : index
      %c0_28 = arith.constant 0 : index
      %43 = vector.load %arg11[%c0_27, %c0_28] : memref<512x128xf32, #tpu.memory_space<vmem>>, vector<512x128xf32>
      tpu.vector_store %arg11[%c0_27, %c0_28], %42 {strides = array<i32>} : memref<512x128xf32, #tpu.memory_space<vmem>>, vector<512x128xf32>,
    } else {
    }
    %c0 = arith.constant 0 : index
    %c0_1 = arith.constant 0 : index
    %3 = vector.load %arg10[%c0, %c0_1] : memref<512x128xbf16, #tpu.memory_space<vmem>>, vector<512x128xbf16>
    %c0_2 = arith.constant 0 : index
    %c0_3 = arith.constant 0 : index
    %4 = vector.load %arg3[%c0_2, %c0_3] : memref<128x256xbf16, #tpu.memory_space<vmem>>, vector<128x256xbf16>
    %cst = arith.constant dense<0.000000e+00> : vector<512x256xf32>
    %5 = tpu.matmul %3, %4, %cst {dimension_numbers = #tpu.dot_dimension_numbers<[1], [0], [0], [1], [0, 0, 1, 1], [], []>} : vector<512x128xbf16>, vector<128x256xbf16>, vector<512x256xf32> -> vector<512x256xf32>
    %c0_4 = arith.constant 0 : index
    %c0_5 = arith.constant 0 : index
    %6 = vector.load %arg4[%c0_4, %c0_5] : memref<1x256xf32, #tpu.memory_space<vmem>>, vector<1x256xf32>
    %7 = vector.broadcast %6 : vector<1x256xf32> to vector<512x256xf32>
    %8 = arith.addf %5, %7 : vector<512x256xf32>
    %cst_6 = arith.constant 0.000000e+00 : f32
    %9 = vector.broadcast %cst_6 : f32 to vector<512x256xf32>
    %10 = arith.maximumf %8, %9 : vector<512x256xf32>
    %c0_7 = arith.constant 0 : index
    %c0_8 = arith.constant 0 : index
    %11 = vector.load %arg11[%c0_7, %c0_8] : memref<512x128xf32, #tpu.memory_space<vmem>>, vector<512x128xf32>
    %12 = arith.truncf %10 : vector<512x256xf32> to vector<512x256xbf16>
    %c0_9 = arith.constant 0 : index
    %c0_10 = arith.constant 0 : index
    %13 = vector.load %arg5[%c0_9, %c0_10] : memref<256x128xbf16, #tpu.memory_space<vmem>>, vector<256x128xbf16>
    %cst_11 = arith.constant dense<0.000000e+00> : vector<512x128xf32>
    %14 = tpu.matmul %12, %13, %cst_11 {dimension_numbers = #tpu.dot_dimension_numbers<[1], [0], [0], [1], [0, 0, 1, 1], [], []>} : vector<512x256xbf16>, vector<256x128xbf16>, vector<512x128xf32> -> vector<512x128xf32>
    %15 = arith.addf %11, %14 : vector<512x128xf32>
    %c0_12 = arith.constant 0 : index
    %c0_13 = arith.constant 0 : index
    %16 = vector.load %arg11[%c0_12, %c0_13] : memref<512x128xf32, #tpu.memory_space<vmem>>, vector<512x128xf32>
    tpu.vector_store %arg11[%c0_12, %c0_13], %15 {strides = array<i32>} : memref<512x128xf32, #tpu.memory_space<vmem>>, vector<512x128xf32>,
    %c0_i32_14 = arith.constant 0 : i32
    %17 = arith.cmpi eq, %arg1, %c0_i32_14 : i32
    %18 = arith.extui %17 : i1 to i32
    %c0_i32_15 = arith.constant 0 : i32
    %19 = arith.cmpi ne, %18, %c0_i32_15 : i32
    scf.if %19 {
      %c0_16 = arith.constant 0 : index
      %c0_17 = arith.constant 0 : index
      %20 = vector.load %arg11[%c0_16, %c0_17] : memref<512x128xf32, #tpu.memory_space<vmem>>, vector<512x128xf32>
      %cst_18 = arith.constant dense<0.000000e+00> : vector<512xf32>
      %21 = vector.multi_reduction <add>, %20, %cst_18 [1] : vector<512x128xf32> to vector<512xf32>
      %22 = vector.shape_cast %21 : vector<512xf32> to vector<512x1xf32>
      %cst_19 = arith.constant 1.280000e+02 : f32
      %23 = vector.broadcast %cst_19 : f32 to vector<512x1xf32>
      %24 = arith.divf %22, %23 : vector<512x1xf32>
      %25 = vector.broadcast %24 : vector<512x1xf32> to vector<512x128xf32>
      %26 = arith.subf %20, %25 : vector<512x128xf32>
      %27 = arith.mulf %26, %26 : vector<512x128xf32>
      %cst_20 = arith.constant dense<0.000000e+00> : vector<512xf32>
      %28 = vector.multi_reduction <add>, %27, %cst_20 [1] : vector<512x128xf32> to vector<512xf32>
      %29 = vector.shape_cast %28 : vector<512xf32> to vector<512x1xf32>
      %cst_21 = arith.constant 1.280000e+02 : f32
      %30 = vector.broadcast %cst_21 : f32 to vector<512x1xf32>
      %31 = arith.divf %29, %30 : vector<512x1xf32>
      %cst_22 = arith.constant 9.99999974E-6 : f32
      %32 = vector.broadcast %cst_22 : f32 to vector<512x1xf32>
      %33 = arith.addf %31, %32 : vector<512x1xf32>
      %34 = math.rsqrt %33 : vector<512x1xf32>
      %35 = vector.broadcast %34 : vector<512x1xf32> to vector<512x128xf32>
      %36 = arith.mulf %26, %35 : vector<512x128xf32>
      %c0_23 = arith.constant 0 : index
      %c0_24 = arith.constant 0 : index
      %37 = vector.load %arg7[%c0_23, %c0_24] : memref<1x128xf32, #tpu.memory_space<vmem>>, vector<1x128xf32>
      %38 = vector.broadcast %37 : vector<1x128xf32> to vector<512x128xf32>
      %39 = arith.mulf %36, %38 : vector<512x128xf32>
      %c0_25 = arith.constant 0 : index
      %c0_26 = arith.constant 0 : index
      %40 = vector.load %arg8[%c0_25, %c0_26] : memref<1x128xf32, #tpu.memory_space<vmem>>, vector<1x128xf32>
      %41 = vector.broadcast %40 : vector<1x128xf32> to vector<512x128xf32>
      %42 = arith.addf %39, %41 : vector<512x128xf32>
      %c0_27 = arith.constant 0 : index
      %c0_28 = arith.constant 0 : index
      %43 = vector.load %arg9[%c0_27, %c0_28] : memref<512x128xf32, #tpu.memory_space<vmem>>, vector<512x128xf32>
      tpu.vector_store %arg9[%c0_27, %c0_28], %42 {strides = array<i32>} : memref<512x128xf32, #tpu.memory_space<vmem>>, vector<512x128xf32>,
    } else {
    }
    return
  }
  func.func @transform_0(%arg0: i32, %arg1: i32) -> (i32, i32) {
    %c0_i32 = arith.constant 0 : i32
    %c0_i32_0 = arith.constant 0 : i32
    return %arg0, %c0_i32 : i32, i32
  }
  func.func @transform_1(%arg0: i32, %arg1: i32) -> (i32, i32) {
    %c0_i32 = arith.constant 0 : i32
    %c0_i32_0 = arith.constant 0 : i32
    return %c0_i32, %arg1 : i32, i32
  }
  func.func @transform_2(%arg0: i32, %arg1: i32) -> (i32, i32) {
    %c0_i32 = arith.constant 0 : i32
    %c0_i32_0 = arith.constant 0 : i32
    return %c0_i32, %arg1 : i32, i32
  }
  func.func @transform_3(%arg0: i32, %arg1: i32) -> (i32, i32) {
    %c0_i32 = arith.constant 0 : i32
    %c0_i32_0 = arith.constant 0 : i32
    return %arg1, %c0_i32 : i32, i32
  }
  func.func @transform_4(%arg0: i32, %arg1: i32) -> (i32, i32) {
    %c0_i32 = arith.constant 0 : i32
    %c0_i32_0 = arith.constant 0 : i32
    %c0_i32_1 = arith.constant 0 : i32
    return %c0_i32, %c0_i32_0 : i32, i32
  }
  func.func @transform_5(%arg0: i32, %arg1: i32) -> (i32, i32) {
    %c0_i32 = arith.constant 0 : i32
    %c0_i32_0 = arith.constant 0 : i32
    %c0_i32_1 = arith.constant 0 : i32
    return %c0_i32, %c0_i32_0 : i32, i32
  }
  func.func @transform_6(%arg0: i32, %arg1: i32) -> (i32, i32) {
    %c0_i32 = arith.constant 0 : i32
    %c0_i32_0 = arith.constant 0 : i32
    %c0_i32_1 = arith.constant 0 : i32
    return %c0_i32, %c0_i32_0 : i32, i32
  }
  func.func @transform_7(%arg0: i32, %arg1: i32) -> (i32, i32) {
    %c0_i32 = arith.constant 0 : i32
    %c0_i32_0 = arith.constant 0 : i32
    return %arg0, %c0_i32 : i32, i32
  }
}

</mosaic_0001>

<llo_original>
// kernel: tpu_custom_call.1
$region0: #{tpu_custom_call.1}
  #allocation0 [shape = 'u32[]', space=smem, size = 0x4, offset = 0x4, fixed_abs, tag = 'smem constant byte address 0x4 - core index']
  #allocation1 [shape = 'u32[144,128]{1,0:T(1,128)}', space=vmem, size = 0x12000, scoped, tag = 'internal scratch']
  #allocation2 [shape = 'bf16[512,128]{1,0:T(8,128)(2,1)}', space=vmem, size = 0x20000, scoped, tag = 'scratch operand']
  #allocation3 [shape = 'f32[512,128]{1,0:T(8,128)}', space=vmem, size = 0x40000, scoped, tag = 'scratch operand']
  %s0 = inlined_call_operand.hbm [shape: bf16[1024,128], index: 0, kind: input, shape index: {}]
  %s1 = inlined_call_operand.hbm [shape: bf16[128,256], index: 1, kind: input, shape index: {}]
  %s2 = inlined_call_operand.vmem [shape: f32[1,256], index: 2, kind: input, shape index: {}]
  %s3 = inlined_call_operand.hbm [shape: bf16[256,128], index: 3, kind: input, shape index: {}]
  %s4 = inlined_call_operand.vmem [shape: f32[1,128], index: 4, kind: input, shape index: {}]
  %s5 = inlined_call_operand.vmem [shape: f32[1,128], index: 5, kind: input, shape index: {}]
  %s6 = inlined_call_operand.vmem [shape: f32[1,128], index: 6, kind: input, shape index: {}]
  %s7 = inlined_call_operand.hbm [shape: f32[1024,128], index: 7, kind: output, shape index: {}]
  %s8 = sld [smem:[#allocation0]]
  $region81: #{tpu_custom_call.1} parent=0
    _
  %s10 = ssub.s32 1, %s8
  %s11 = scalar_select 0, %s10, %s8
  $region1: #{tpu_custom_call.1} parent=0
    #allocation4 [shape = 'u8[262144]{0}', space=vmem, size = 0x40000, scoped, tag = 'input window, operand 0']
    #allocation5 [shape = 's32[2]{0}', space=sflag, size = 0x8, scoped, tag = 'scoped memory for tpu_custom_call.1']
    #allocation6 [shape = 's32[2]{0}', space=sflag, size = 0x8, scoped, tag = 'scoped memory for tpu_custom_call.1']
    #allocation7 [shape = 'u8[65536]{0}', space=vmem, size = 0x10000, scoped, tag = 'input window, operand 1, single buffered']
    #allocation8 [shape = 's32[1]{0}', space=sflag, size = 0x4, scoped, tag = 'scoped memory for tpu_custom_call.1']
    #allocation9 [shape = 'u8[65536]{0}', space=vmem, size = 0x10000, scoped, tag = 'input window, operand 3, single buffered']
    #allocation10 [shape = 'u8[524288]{0}', space=vmem, size = 0x80000, scoped, tag = 'output window, operand 0']
    %12 = vsyncpa [#allocation5], 0
    %s13 = scalar_lea.sflag [#allocation5], 1
    %14 = vsyncpa %s13, 0
    %15 = vsyncpa [#allocation8], 0
    %16 = vsyncpa [#allocation6], 0
    %s17 = scalar_lea.sflag [#allocation6], 1
    %18 = vsyncpa %s17, 0
    loop: start=0, step=1, limit=4
    $region2: #{tpu_custom_call.1} parent=1 // loop_pre_header
      _
    $region3: #{tpu_custom_call.1} parent=1 // loop_header
      %s20 = sphi 0, %s24
      %p21 = scmp.ge.s32.totalorder %s20, 4
      %s27 = sphi 0, %s39
      %s28 = sphi 0, %s35
      %s29 = sphi 0, %s27
      %s30 = sphi 0, %s28
      %s31 = sphi 0, %s29
      %s32 = sphi 0, %s30
      %s42 = sphi 0, %s44
      %s45 = sphi 0, %s42
      %s46 = sphi 0, %s45
      %s62 = sphi 0, %s46
      %s68 = sphi 0, %s70
      %s71 = sphi 0, %s68
      %s72 = sphi 0, %s71
      %s88 = sphi 0, %s72
      %s94 = sphi 0, %s96
      %s97 = sphi 0, %s94
      %s98 = sphi 0, %s97
      %s114 = sphi 0, %s98
      %s120 = sphi 0, %s122
      %s123 = sphi 0, %s120
      %s124 = sphi 0, %s123
      %s140 = sphi 0, %s124
      %s144 = sphi 0, %s144
      %s146 = sphi 0, %s144
      %s147 = sphi 0, %s146
      %s161 = sphi 0, %s147
      %s165 = sphi 0, %s165
      %s167 = sphi 0, %s165
      %s168 = sphi 0, %s167
      %s182 = sphi 0, %s168
      %s186 = sphi 0, %s186
      %s188 = sphi 0, %s186
      %s189 = sphi 0, %s188
      %s203 = sphi 0, %s189
      %s209 = sphi 0, %s211
      %s212 = sphi 0, %s209
      %s213 = sphi 0, %s212
      %s229 = sphi 0, %s213
    $region4: #{tpu_custom_call.1} parent=1 // loop_header_branch
      %23 = sbr.rel (%p21) target = $region8
    $region5: #{tpu_custom_call.1} parent=1 // loop_body
      %s25 = ssub.s32 %s20, 1
      %s26 = ssub.s32 %s20, 2
      %s33 = sadd.s32 1, %s28
      %p34 = scmp.ge.s32.totalorder %s33, 1
      %s35 = scalar_select %p34, 0, %s33
      %s36 = sadd.s32 1, %s27
      %s37 = scalar_select %p34, %s36, %s27
      %p38 = scmp.ge.s32.totalorder %s37, 2
      %s39 = scalar_select %p38, 0, %s37
      %s40 = ssub.s32 %s27, %s39
      %p41 = scmp.eq.s32.totalorder %s40, 0
      %s43 = sadd.s32 %s42, 1
      %s44 = scalar_select %p41, %s42, %s43
      %p47 = pneg %p41
      %p48 = scmp.eq.s32.totalorder %s20, 1
      %p49 = por %p47, %p48
      %p50 = scmp.ne.s32.totalorder %s42, %s45
      %p51 = scmp.eq.s32.totalorder %s20, 0
      %p52 = por %p50, %p51
      %p53 = scmp.ne.s32.totalorder %s42, %s45
      %p54 = scmp.eq.s32.totalorder %s25, 1
      %p55 = por %p53, %p54
      %p56 = scmp.ne.s32.totalorder %s45, %s46
      %p57 = scmp.eq.s32.totalorder %s25, 0
      %p58 = por %p56, %p57
      %p59 = scmp.ne.s32.totalorder %s45, %s46
      %p60 = scmp.eq.s32.totalorder %s26, 1
      %p61 = por %p59, %p60
      %p63 = scmp.ne.s32.totalorder %s46, %s62
      %p64 = scmp.eq.s32.totalorder %s26, 0
      %p65 = por %p63, %p64
      %s66 = ssub.s32 %s28, %s35
      %p67 = scmp.eq.s32.totalorder %s66, 0
      %s69 = sadd.s32 %s68, 1
      %s70 = scalar_select %p67, %s68, %s69
      %p73 = pneg %p67
      %p74 = scmp.eq.s32.totalorder %s20, 1
      %p75 = por %p73, %p74
      %p76 = scmp.ne.s32.totalorder %s68, %s71
      %p77 = scmp.eq.s32.totalorder %s20, 0
      %p78 = por %p76, %p77
      %p79 = scmp.ne.s32.totalorder %s68, %s71
      %p80 = scmp.eq.s32.totalorder %s25, 1
      %p81 = por %p79, %p80
      %p82 = scmp.ne.s32.totalorder %s71, %s72
      %p83 = scmp.eq.s32.totalorder %s25, 0
      %p84 = por %p82, %p83
      %p85 = scmp.ne.s32.totalorder %s71, %s72
      %p86 = scmp.eq.s32.totalorder %s26, 1
      %p87 = por %p85, %p86
      %p89 = scmp.ne.s32.totalorder %s72, %s88
      %p90 = scmp.eq.s32.totalorder %s26, 0
      %p91 = por %p89, %p90
      %s92 = ssub.s32 %s28, %s35
      %p93 = scmp.eq.s32.totalorder %s92, 0
      %s95 = sadd.s32 %s94, 1
      %s96 = scalar_select %p93, %s94, %s95
      %p99 = pneg %p93
      %p100 = scmp.eq.s32.totalorder %s20, 1
      %p101 = por %p99, %p100
      %p102 = scmp.ne.s32.totalorder %s94, %s97
      %p103 = scmp.eq.s32.totalorder %s20, 0
      %p104 = por %p102, %p103
      %p105 = scmp.ne.s32.totalorder %s94, %s97
      %p106 = scmp.eq.s32.totalorder %s25, 1
      %p107 = por %p105, %p106
      %p108 = scmp.ne.s32.totalorder %s97, %s98
      %p109 = scmp.eq.s32.totalorder %s25, 0
      %p110 = por %p108, %p109
      %p111 = scmp.ne.s32.totalorder %s97, %s98
      %p112 = scmp.eq.s32.totalorder %s26, 1
      %p113 = por %p111, %p112
      %p115 = scmp.ne.s32.totalorder %s98, %s114
      %p116 = scmp.eq.s32.totalorder %s26, 0
      %p117 = por %p115, %p116
      %s118 = ssub.s32 %s28, %s35
      %p119 = scmp.eq.s32.totalorder %s118, 0
      %s121 = sadd.s32 %s120, 1
      %s122 = scalar_select %p119, %s120, %s121
      %p125 = pneg %p119
      %p126 = scmp.eq.s32.totalorder %s20, 1
      %p127 = por %p125, %p126
      %p128 = scmp.ne.s32.totalorder %s120, %s123
      %p129 = scmp.eq.s32.totalorder %s20, 0
      %p130 = por %p128, %p129
      %p131 = scmp.ne.s32.totalorder %s120, %s123
      %p132 = scmp.eq.s32.totalorder %s25, 1
      %p133 = por %p131, %p132
      %p134 = scmp.ne.s32.totalorder %s123, %s124
      %p135 = scmp.eq.s32.totalorder %s25, 0
      %p136 = por %p134, %p135
      %p137 = scmp.ne.s32.totalorder %s123, %s124
      %p138 = scmp.eq.s32.totalorder %s26, 1
      %p139 = por %p137, %p138
      %p141 = scmp.ne.s32.totalorder %s124, %s140
      %p142 = scmp.eq.s32.totalorder %s26, 0
      %p143 = por %p141, %p142
      %s145 = sadd.s32 %s144, 1
      %p148 = scmp.eq.s32.totalorder %s20, 1
      %p149 = scmp.ne.s32.totalorder %s144, %s146
      %p150 = scmp.eq.s32.totalorder %s20, 0
      %p151 = por %p149, %p150
      %p152 = scmp.ne.s32.totalorder %s144, %s146
      %p153 = scmp.eq.s32.totalorder %s25, 1
      %p154 = por %p152, %p153
      %p155 = scmp.ne.s32.totalorder %s146, %s147
      %p156 = scmp.eq.s32.totalorder %s25, 0
      %p157 = por %p155, %p156
      %p158 = scmp.ne.s32.totalorder %s146, %s147
      %p159 = scmp.eq.s32.totalorder %s26, 1
      %p160 = por %p158, %p159
      %p162 = scmp.ne.s32.totalorder %s147, %s161
      %p163 = scmp.eq.s32.totalorder %s26, 0
      %p164 = por %p162, %p163
      %s166 = sadd.s32 %s165, 1
      %p169 = scmp.eq.s32.totalorder %s20, 1
      %p170 = scmp.ne.s32.totalorder %s165, %s167
      %p171 = scmp.eq.s32.totalorder %s20, 0
      %p172 = por %p170, %p171
      %p173 = scmp.ne.s32.totalorder %s165, %s167
      %p174 = scmp.eq.s32.totalorder %s25, 1
      %p175 = por %p173, %p174
      %p176 = scmp.ne.s32.totalorder %s167, %s168
      %p177 = scmp.eq.s32.totalorder %s25, 0
      %p178 = por %p176, %p177
      %p179 = scmp.ne.s32.totalorder %s167, %s168
      %p180 = scmp.eq.s32.totalorder %s26, 1
      %p181 = por %p179, %p180
      %p183 = scmp.ne.s32.totalorder %s168, %s182
      %p184 = scmp.eq.s32.totalorder %s26, 0
      %p185 = por %p183, %p184
      %s187 = sadd.s32 %s186, 1
      %p190 = scmp.eq.s32.totalorder %s20, 1
      %p191 = scmp.ne.s32.totalorder %s186, %s188
      %p192 = scmp.eq.s32.totalorder %s20, 0
      %p193 = por %p191, %p192
      %p194 = scmp.ne.s32.totalorder %s186, %s188
      %p195 = scmp.eq.s32.totalorder %s25, 1
      %p196 = por %p194, %p195
      %p197 = scmp.ne.s32.totalorder %s188, %s189
      %p198 = scmp.eq.s32.totalorder %s25, 0
      %p199 = por %p197, %p198
      %p200 = scmp.ne.s32.totalorder %s188, %s189
      %p201 = scmp.eq.s32.totalorder %s26, 1
      %p202 = por %p200, %p201
      %p204 = scmp.ne.s32.totalorder %s189, %s203
      %p205 = scmp.eq.s32.totalorder %s26, 0
      %p206 = por %p204, %p205
      %s207 = ssub.s32 %s27, %s39
      %p208 = scmp.eq.s32.totalorder %s207, 0
      %s210 = sadd.s32 %s209, 1
      %s211 = scalar_select %p208, %s209, %s210
      %p214 = pneg %p208
      %p215 = scmp.eq.s32.totalorder %s20, 1
      %p216 = por %p214, %p215
      %p217 = scmp.ne.s32.totalorder %s209, %s212
      %p218 = scmp.eq.s32.totalorder %s20, 0
      %p219 = por %p217, %p218
      %p220 = scmp.ne.s32.totalorder %s209, %s212
      %p221 = scmp.eq.s32.totalorder %s25, 1
      %p222 = por %p220, %p221
      %p223 = scmp.ne.s32.totalorder %s212, %s213
      %p224 = scmp.eq.s32.totalorder %s25, 0
      %p225 = por %p223, %p224
      %p226 = scmp.ne.s32.totalorder %s212, %s213
      %p227 = scmp.eq.s32.totalorder %s26, 1
      %p228 = por %p226, %p227
      %p230 = scmp.ne.s32.totalorder %s213, %s229
      %p231 = scmp.eq.s32.totalorder %s26, 0
      %p232 = por %p230, %p231
      %p233 = scmp.le.s32.totalorder 1, %s20
      %p234 = scmp.lt.s32.totalorder %s20, 3
      %p235 = pnand %p233, %p234
      %p236 = pneg %p235
      // Predicated region
      $region9: #{tpu_custom_call.1} parent=5 // pred_check
        _
      $region10: #{tpu_custom_call.1} parent=5 // pred_check_branch
        %238 = sbr.rel (%p235) target = $region12
      $region11: #{tpu_custom_call.1} parent=5 // pred_region
        %s239 = ssub.s32 %s20, 1
        // Predicated region
        $region13: #{tpu_custom_call.1} parent=11 // pred_check
          %p240 = pneg %p84
        $region14: #{tpu_custom_call.1} parent=11 // pred_check_branch
          %242 = sbr.rel (%p240) target = $region16
        $region15: #{tpu_custom_call.1} parent=11 // pred_region
          %s243 = smul.u32 2, %s30
          %s245 = ssub.s32 2048, 2048
          %246 = vsyncadd [#allocation8], %s245
          %s247 = smul.addr %s243, 64
          %s248 = scalar_lea.hbm %s1, %s247
          %s249 = sshll.u32 [#allocation7], 4
          %s250 = int_to_ptr.vmem [resolvable:$true] %s249
          %255 = dma.hbm_to_vmem [thread:$0]  %s248, 2048, %s250, [#allocation8], 128, 128, 8
        $region16: #{tpu_custom_call.1} parent=11 // pred_fallthru
          _
        // Predicated region
        $region17: #{tpu_custom_call.1} parent=11 // pred_check
          %p256 = pneg %p110
        $region18: #{tpu_custom_call.1} parent=11 // pred_check_branch
          %258 = sbr.rel (%p256) target = $region20
        $region19: #{tpu_custom_call.1} parent=11 // pred_region
          %s259 = smul.u32 2, %s30
          %p260 = scmp.lt.s32.totalorder %s259, 1
          %s261 = scalar_select %p260, %s259, 1
          %s262 = scalar_lea.vmem %s2, %s261
          %s263 = smul.u32 2, %s30
        $region20: #{tpu_custom_call.1} parent=11 // pred_fallthru
          _
        // Predicated region
        $region21: #{tpu_custom_call.1} parent=11 // pred_check
          %p264 = pneg %p136
        $region22: #{tpu_custom_call.1} parent=11 // pred_check_branch
          %266 = sbr.rel (%p264) target = $region24
        $region23: #{tpu_custom_call.1} parent=11 // pred_region
          %s267 = smul.u32 32, %s30
          %s269 = ssub.s32 2048, 2048
          %270 = vsyncadd [#allocation8], %s269
          %s271 = smul.addr %s267, 64
          %s272 = scalar_lea.hbm %s3, %s271
          %s273 = sshll.u32 [#allocation9], 4
          %s274 = int_to_ptr.vmem [resolvable:$true] %s273
          %279 = dma.hbm_to_vmem [thread:$0]  %s272, 2048, %s274, [#allocation8], 64, 64, 4
        $region24: #{tpu_custom_call.1} parent=11 // pred_fallthru
          _
        // Predicated region
        $region25: #{tpu_custom_call.1} parent=11 // pred_check
          %p280 = pneg %p157
        $region26: #{tpu_custom_call.1} parent=11 // pred_check_branch
          %282 = sbr.rel (%p280) target = $region28
        $region27: #{tpu_custom_call.1} parent=11 // pred_region
          _
        $region28: #{tpu_custom_call.1} parent=11 // pred_fallthru
          _
        // Predicated region
        $region29: #{tpu_custom_call.1} parent=11 // pred_check
          %p283 = pneg %p178
        $region30: #{tpu_custom_call.1} parent=11 // pred_check_branch
          %285 = sbr.rel (%p283) target = $region32
        $region31: #{tpu_custom_call.1} parent=11 // pred_region
          _
        $region32: #{tpu_custom_call.1} parent=11 // pred_fallthru
          _
        // Predicated region
        $region33: #{tpu_custom_call.1} parent=11 // pred_check
          %p286 = pneg %p199
        $region34: #{tpu_custom_call.1} parent=11 // pred_check_branch
          %288 = sbr.rel (%p286) target = $region36
        $region35: #{tpu_custom_call.1} parent=11 // pred_region
          _
        $region36: #{tpu_custom_call.1} parent=11 // pred_fallthru
          _
      $region12: #{tpu_custom_call.1} parent=5 // pred_fallthru
        _
      %p289 = scmp.lt.s32.totalorder %s20, 2
      // Predicated region
      $region37: #{tpu_custom_call.1} parent=5 // pred_check
        %p290 = pneg %p289
      $region38: #{tpu_custom_call.1} parent=5 // pred_check_branch
        %292 = sbr.rel (%p290) target = $region40
      $region39: #{tpu_custom_call.1} parent=5 // pred_region
        // Predicated region
        $region41: #{tpu_custom_call.1} parent=39 // pred_check
          %p293 = pneg %p52
        $region42: #{tpu_custom_call.1} parent=39 // pred_check_branch
          %295 = sbr.rel (%p293) target = $region44
        $region43: #{tpu_custom_call.1} parent=39 // pred_region
          %s296 = sand.u32 %s42, 1
          %s297 = scalar_lea.sflag [#allocation5], %s296
          %s298 = sand.u32 %s42, 1
          %s299 = smul.addr %s298, 256
          %s300 = scalar_lea.vmem [#allocation4], %s299
          %s301 = smul.u32 64, %s27
          %s303 = ssub.s32 4096, 4096
          %304 = vsyncadd %s297, %s303
          %s305 = smul.addr %s301, 64
          %s306 = scalar_lea.hbm %s0, %s305
          %s307 = sshll.u32 %s300, 4
          %s308 = int_to_ptr.vmem [resolvable:$true] %s307
          %313 = dma.hbm_to_vmem [thread:$0]  %s306, 4096, %s308, %s297, 64, 64, 4
        $region44: #{tpu_custom_call.1} parent=39 // pred_fallthru
          _
      $region40: #{tpu_custom_call.1} parent=5 // pred_fallthru
        _
      %p314 = scmp.le.s32.totalorder 1, %s20
      %p315 = scmp.lt.s32.totalorder %s20, 3
      %p316 = pnand %p314, %p315
      %p317 = pneg %p316
      // Predicated region
      $region45: #{tpu_custom_call.1} parent=5 // pred_check
        _
      $region46: #{tpu_custom_call.1} parent=5 // pred_check_branch
        %319 = sbr.rel (%p316) target = $region48
      $region47: #{tpu_custom_call.1} parent=5 // pred_region
        %s320 = ssub.s32 %s20, 1
        %s321 = sand.u32 %s45, 1
        %s322 = scalar_lea.sflag [#allocation5], %s321
        %s323 = sand.u32 %s45, 1
        %s324 = smul.addr %s323, 256
        %s325 = scalar_lea.vmem [#allocation4], %s324
        // Predicated region
        $region49: #{tpu_custom_call.1} parent=47 // pred_check
          %p326 = pneg %p58
        $region50: #{tpu_custom_call.1} parent=47 // pred_check_branch
          %328 = sbr.rel (%p326) target = $region52
        $region51: #{tpu_custom_call.1} parent=47 // pred_region
          %329 = dma.done %s322, 4096
        $region52: #{tpu_custom_call.1} parent=47 // pred_fallthru
          _
        // Predicated region
        $region53: #{tpu_custom_call.1} parent=47 // pred_check
          %p330 = pneg %p84
        $region54: #{tpu_custom_call.1} parent=47 // pred_check_branch
          %332 = sbr.rel (%p330) target = $region56
        $region55: #{tpu_custom_call.1} parent=47 // pred_region
          %333 = dma.done [#allocation8], 2048
        $region56: #{tpu_custom_call.1} parent=47 // pred_fallthru
          _
        // Predicated region
        $region57: #{tpu_custom_call.1} parent=47 // pred_check
          %p334 = pneg %p136
        $region58: #{tpu_custom_call.1} parent=47 // pred_check_branch
          %336 = sbr.rel (%p334) target = $region60
        $region59: #{tpu_custom_call.1} parent=47 // pred_region
          %337 = dma.done [#allocation8], 2048
        $region60: #{tpu_custom_call.1} parent=47 // pred_fallthru
          _
        %s338 = sand.u32 %s45, 1
        %s339 = scalar_lea.sflag [#allocation5], %s338
        %s340 = sand.u32 %s45, 1
        %s341 = smul.addr %s340, 256
        %s342 = scalar_lea.vmem [#allocation4], %s341
        %p343 = pneg %p58
        %p344 = pneg %p55
        %p345 = pneg %p84
        %p346 = pneg %p81
        %s347 = smul.u32 2, %s30
        %p348 = scmp.lt.s32.totalorder %s347, 1
        %s349 = scalar_select %p348, %s347, 1
        %s350 = scalar_lea.vmem %s2, %s349
        %p351 = pneg %p110
        %p352 = pneg %p107
        %p353 = pneg %p136
        %p354 = pneg %p133
        %p355 = pneg %p157
        %p356 = pneg %p154
        %p357 = pneg %p178
        %p358 = pneg %p175
        %p359 = pneg %p199
        %p360 = pneg %p196
        %p361 = pneg %p225
        %p362 = pneg %p222
        %s363 = sand.u32 %s212, 1
        %s364 = scalar_lea.sflag [#allocation6], %s363
        %s365 = sand.u32 %s212, 1
        %s366 = smul.addr %s365, 512
        %s367 = scalar_lea.vmem [#allocation10], %s366
        %s368 = smul.u32 64, %s29
        %s369 = smul.u32 2, %s30
        %s370 = smul.u32 2, %s30
        %p371 = scmp.lt.s32.totalorder %s370, 1
        %s372 = scalar_select %p371, %s370, 1
        %s373 = scalar_lea.vmem %s2, %s372
        %s374 = smul.u32 2, %s30
        %s375 = smul.u32 32, %s30
        %s376 = smul.u32 64, %s29
        %p378 = scmp.eq.s32.totalorder %s30, 0
        // Predicated region
        $region61: #{tpu_custom_call.1} parent=47 // pred_check
          %p379 = pneg %p378
        $region62: #{tpu_custom_call.1} parent=47 // pred_check_branch
          %381 = sbr.rel (%p379) target = $region64
        $region63: #{tpu_custom_call.1} parent=47 // pred_region
          %v382 = vld [vmem:[%s325] sm:$0xf]
          %v383 = vld [vmem:[%s325 + $0x4] sm:$0xf]
          %v384 = vld [vmem:[%s325 + $0x8] sm:$0xf]
          %v385 = vld [vmem:[%s325 + $0xc] sm:$0xf]
          %v386 = vld [vmem:[%s325 + $0x10] sm:$0xf]
          %v387 = vld [vmem:[%s325 + $0x14] sm:$0xf]
          %v388 = vld [vmem:[%s325 + $0x18] sm:$0xf]
          %v389 = vld [vmem:[%s325 + $0x1c] sm:$0xf]
          %v390 = vld [vmem:[%s325 + $0x20] sm:$0xf]
          %v391 = vld [vmem:[%s325 + $0x24] sm:$0xf]
          %v392 = vld [vmem:[%s325 + $0x28] sm:$0xf]
          %v393 = vld [vmem:[%s325 + $0x2c] sm:$0xf]
          %v394 = vld [vmem:[%s325 + $0x30] sm:$0xf]
          %v395 = vld [vmem:[%s325 + $0x34] sm:$0xf]
          %v396 = vld [vmem:[%s325 + $0x38] sm:$0xf]
          %v397 = vld [vmem:[%s325 + $0x3c] sm:$0xf]
          %v398 = vld [vmem:[%s325 + $0x40] sm:$0xf]
          %v399 = vld [vmem:[%s325 + $0x44] sm:$0xf]
          %v400 = vld [vmem:[%s325 + $0x48] sm:$0xf]
          %v401 = vld [vmem:[%s325 + $0x4c] sm:$0xf]
          %v402 = vld [vmem:[%s325 + $0x50] sm:$0xf]
          %v403 = vld [vmem:[%s325 + $0x54] sm:$0xf]
          %v404 = vld [vmem:[%s325 + $0x58] sm:$0xf]
          %v405 = vld [vmem:[%s325 + $0x5c] sm:$0xf]
          %v406 = vld [vmem:[%s325 + $0x60] sm:$0xf]
          %v407 = vld [vmem:[%s325 + $0x64] sm:$0xf]
          %v408 = vld [vmem:[%s325 + $0x68] sm:$0xf]
          %v409 = vld [vmem:[%s325 + $0x6c] sm:$0xf]
          %v410 = vld [vmem:[%s325 + $0x70] sm:$0xf]
          %v411 = vld [vmem:[%s325 + $0x74] sm:$0xf]
          %v412 = vld [vmem:[%s325 + $0x78] sm:$0xf]
          %v413 = vld [vmem:[%s325 + $0x7c] sm:$0xf]
          %v414 = vld [vmem:[%s325 + $0x80] sm:$0xf]
          %v415 = vld [vmem:[%s325 + $0x84] sm:$0xf]
          %v416 = vld [vmem:[%s325 + $0x88] sm:$0xf]
          %v417 = vld [vmem:[%s325 + $0x8c] sm:$0xf]
          %v418 = vld [vmem:[%s325 + $0x90] sm:$0xf]
          %v419 = vld [vmem:[%s325 + $0x94] sm:$0xf]
          %v420 = vld [vmem:[%s325 + $0x98] sm:$0xf]
          %v421 = vld [vmem:[%s325 + $0x9c] sm:$0xf]
          %v422 = vld [vmem:[%s325 + $0xa0] sm:$0xf]
          %v423 = vld [vmem:[%s325 + $0xa4] sm:$0xf]
          %v424 = vld [vmem:[%s325 + $0xa8] sm:$0xf]
          %v425 = vld [vmem:[%s325 + $0xac] sm:$0xf]
          %v426 = vld [vmem:[%s325 + $0xb0] sm:$0xf]
          %v427 = vld [vmem:[%s325 + $0xb4] sm:$0xf]
          %v428 = vld [vmem:[%s325 + $0xb8] sm:$0xf]
          %v429 = vld [vmem:[%s325 + $0xbc] sm:$0xf]
          %v430 = vld [vmem:[%s325 + $0xc0] sm:$0xf]
          %v431 = vld [vmem:[%s325 + $0xc4] sm:$0xf]
          %v432 = vld [vmem:[%s325 + $0xc8] sm:$0xf]
          %v433 = vld [vmem:[%s325 + $0xcc] sm:$0xf]
          %v434 = vld [vmem:[%s325 + $0xd0] sm:$0xf]
          %v435 = vld [vmem:[%s325 + $0xd4] sm:$0xf]
          %v436 = vld [vmem:[%s325 + $0xd8] sm:$0xf]
          %v437 = vld [vmem:[%s325 + $0xdc] sm:$0xf]
          %v438 = vld [vmem:[%s325 + $0xe0] sm:$0xf]
          %v439 = vld [vmem:[%s325 + $0xe4] sm:$0xf]
          %v440 = vld [vmem:[%s325 + $0xe8] sm:$0xf]
          %v441 = vld [vmem:[%s325 + $0xec] sm:$0xf]
          %v442 = vld [vmem:[%s325 + $0xf0] sm:$0xf]
          %v443 = vld [vmem:[%s325 + $0xf4] sm:$0xf]
          %v444 = vld [vmem:[%s325 + $0xf8] sm:$0xf]
          %v445 = vld [vmem:[%s325 + $0xfc] sm:$0xf]
          %v446 = vunpack.c.l.bf16 %v382
          %v447 = vunpack.c.l.bf16 %v383
          %v448 = vunpack.c.l.bf16 %v384
          %v449 = vunpack.c.l.bf16 %v385
          %v450 = vunpack.c.l.bf16 %v386
          %v451 = vunpack.c.l.bf16 %v387
          %v452 = vunpack.c.l.bf16 %v388
          %v453 = vunpack.c.l.bf16 %v389
          %v454 = vunpack.c.l.bf16 %v390
          %v455 = vunpack.c.l.bf16 %v391
          %v456 = vunpack.c.l.bf16 %v392
          %v457 = vunpack.c.l.bf16 %v393
          %v458 = vunpack.c.l.bf16 %v394
          %v459 = vunpack.c.l.bf16 %v395
          %v460 = vunpack.c.l.bf16 %v396
          %v461 = vunpack.c.l.bf16 %v397
          %v462 = vunpack.c.l.bf16 %v398
          %v463 = vunpack.c.l.bf16 %v399
          %v464 = vunpack.c.l.bf16 %v400
          %v465 = vunpack.c.l.bf16 %v401
          %v466 = vunpack.c.l.bf16 %v402
          %v467 = vunpack.c.l.bf16 %v403
          %v468 = vunpack.c.l.bf16 %v404
          %v469 = vunpack.c.l.bf16 %v405
          %v470 = vunpack.c.l.bf16 %v406
          %v471 = vunpack.c.l.bf16 %v407
          %v472 = vunpack.c.l.bf16 %v408
          %v473 = vunpack.c.l.bf16 %v409
          %v474 = vunpack.c.l.bf16 %v410
          %v475 = vunpack.c.l.bf16 %v411
          %v476 = vunpack.c.l.bf16 %v412
          %v477 = vunpack.c.l.bf16 %v413
          %v478 = vunpack.c.l.bf16 %v414
          %v479 = vunpack.c.l.bf16 %v415
          %v480 = vunpack.c.l.bf16 %v416
          %v481 = vunpack.c.l.bf16 %v417
          %v482 = vunpack.c.l.bf16 %v418
          %v483 = vunpack.c.l.bf16 %v419
          %v484 = vunpack.c.l.bf16 %v420
          %v485 = vunpack.c.l.bf16 %v421
          %v486 = vunpack.c.l.bf16 %v422
          %v487 = vunpack.c.l.bf16 %v423
          %v488 = vunpack.c.l.bf16 %v424
          %v489 = vunpack.c.l.bf16 %v425
          %v490 = vunpack.c.l.bf16 %v426
          %v491 = vunpack.c.l.bf16 %v427
          %v492 = vunpack.c.l.bf16 %v428
          %v493 = vunpack.c.l.bf16 %v429
          %v494 = vunpack.c.l.bf16 %v430
          %v495 = vunpack.c.l.bf16 %v431
          %v496 = vunpack.c.l.bf16 %v432
          %v497 = vunpack.c.l.bf16 %v433
          %v498 = vunpack.c.l.bf16 %v434
          %v499 = vunpack.c.l.bf16 %v435
          %v500 = vunpack.c.l.bf16 %v436
          %v501 = vunpack.c.l.bf16 %v437
          %v502 = vunpack.c.l.bf16 %v438
          %v503 = vunpack.c.l.bf16 %v439
          %v504 = vunpack.c.l.bf16 %v440
          %v505 = vunpack.c.l.bf16 %v441
          %v506 = vunpack.c.l.bf16 %v442
          %v507 = vunpack.c.l.bf16 %v443
          %v508 = vunpack.c.l.bf16 %v444
          %v509 = vunpack.c.l.bf16 %v445
          %510 = vadd.xlane.f32.xlu0 %v446
          %v511 = vpop.xlane.xlu0 %510
          %512 = vadd.xlane.f32.xlu0 %v447
          %v513 = vpop.xlane.xlu0 %512
          %514 = vadd.xlane.f32.xlu0 %v448
          %v515 = vpop.xlane.xlu0 %514
          %516 = vadd.xlane.f32.xlu0 %v449
          %v517 = vpop.xlane.xlu0 %516
          %518 = vadd.xlane.f32.xlu0 %v450
          %v519 = vpop.xlane.xlu0 %518
          %520 = vadd.xlane.f32.xlu0 %v451
          %v521 = vpop.xlane.xlu0 %520
          %522 = vadd.xlane.f32.xlu0 %v452
          %v523 = vpop.xlane.xlu0 %522
          %524 = vadd.xlane.f32.xlu0 %v453
          %v525 = vpop.xlane.xlu0 %524
          %526 = vadd.xlane.f32.xlu0 %v454
          %v527 = vpop.xlane.xlu0 %526
          %528 = vadd.xlane.f32.xlu0 %v455
          %v529 = vpop.xlane.xlu0 %528
          %530 = vadd.xlane.f32.xlu0 %v456
          %v531 = vpop.xlane.xlu0 %530
          %532 = vadd.xlane.f32.xlu0 %v457
          %v533 = vpop.xlane.xlu0 %532
          %534 = vadd.xlane.f32.xlu0 %v458
          %v535 = vpop.xlane.xlu0 %534
          %536 = vadd.xlane.f32.xlu0 %v459
          %v537 = vpop.xlane.xlu0 %536
          %538 = vadd.xlane.f32.xlu0 %v460
          %v539 = vpop.xlane.xlu0 %538
          %540 = vadd.xlane.f32.xlu0 %v461
          %v541 = vpop.xlane.xlu0 %540
          %542 = vadd.xlane.f32.xlu0 %v462
          %v543 = vpop.xlane.xlu0 %542
          %544 = vadd.xlane.f32.xlu0 %v463
          %v545 = vpop.xlane.xlu0 %544
          %546 = vadd.xlane.f32.xlu0 %v464
          %v547 = vpop.xlane.xlu0 %546
          %548 = vadd.xlane.f32.xlu0 %v465
          %v549 = vpop.xlane.xlu0 %548
          %550 = vadd.xlane.f32.xlu0 %v466
          %v551 = vpop.xlane.xlu0 %550
          %552 = vadd.xlane.f32.xlu0 %v467
          %v553 = vpop.xlane.xlu0 %552
          %554 = vadd.xlane.f32.xlu0 %v468
          %v555 = vpop.xlane.xlu0 %554
          %556 = vadd.xlane.f32.xlu0 %v469
          %v557 = vpop.xlane.xlu0 %556
          %558 = vadd.xlane.f32.xlu0 %v470
          %v559 = vpop.xlane.xlu0 %558
          %560 = vadd.xlane.f32.xlu0 %v471
          %v561 = vpop.xlane.xlu0 %560
          %562 = vadd.xlane.f32.xlu0 %v472
          %v563 = vpop.xlane.xlu0 %562
          %564 = vadd.xlane.f32.xlu0 %v473
          %v565 = vpop.xlane.xlu0 %564
          %566 = vadd.xlane.f32.xlu0 %v474
          %v567 = vpop.xlane.xlu0 %566
          %568 = vadd.xlane.f32.xlu0 %v475
          %v569 = vpop.xlane.xlu0 %568
          %570 = vadd.xlane.f32.xlu0 %v476
          %v571 = vpop.xlane.xlu0 %570
          %572 = vadd.xlane.f32.xlu0 %v477
          %v573 = vpop.xlane.xlu0 %572
          %574 = vadd.xlane.f32.xlu0 %v478
          %v575 = vpop.xlane.xlu0 %574
          %576 = vadd.xlane.f32.xlu0 %v479
          %v577 = vpop.xlane.xlu0 %576
          %578 = vadd.xlane.f32.xlu0 %v480
          %v579 = vpop.xlane.xlu0 %578
          %580 = vadd.xlane.f32.xlu0 %v481
          %v581 = vpop.xlane.xlu0 %580
          %582 = vadd.xlane.f32.xlu0 %v482
          %v583 = vpop.xlane.xlu0 %582
          %584 = vadd.xlane.f32.xlu0 %v483
          %v585 = vpop.xlane.xlu0 %584
          %586 = vadd.xlane.f32.xlu0 %v484
          %v587 = vpop.xlane.xlu0 %586
          %588 = vadd.xlane.f32.xlu0 %v485
          %v589 = vpop.xlane.xlu0 %588
          %590 = vadd.xlane.f32.xlu0 %v486
          %v591 = vpop.xlane.xlu0 %590
          %592 = vadd.xlane.f32.xlu0 %v487
          %v593 = vpop.xlane.xlu0 %592
          %594 = vadd.xlane.f32.xlu0 %v488
          %v595 = vpop.xlane.xlu0 %594
          %596 = vadd.xlane.f32.xlu0 %v489
          %v597 = vpop.xlane.xlu0 %596
          %598 = vadd.xlane.f32.xlu0 %v490
          %v599 = vpop.xlane.xlu0 %598
          %600 = vadd.xlane.f32.xlu0 %v491
          %v601 = vpop.xlane.xlu0 %600
          %602 = vadd.xlane.f32.xlu0 %v492
          %v603 = vpop.xlane.xlu0 %602
          %604 = vadd.xlane.f32.xlu0 %v493
          %v605 = vpop.xlane.xlu0 %604
          %606 = vadd.xlane.f32.xlu0 %v494
          %v607 = vpop.xlane.xlu0 %606
          %608 = vadd.xlane.f32.xlu0 %v495
          %v609 = vpop.xlane.xlu0 %608
          %610 = vadd.xlane.f32.xlu0 %v496
          %v611 = vpop.xlane.xlu0 %610
          %612 = vadd.xlane.f32.xlu0 %v497
          %v613 = vpop.xlane.xlu0 %612
          %614 = vadd.xlane.f32.xlu0 %v498
          %v615 = vpop.xlane.xlu0 %614
          %616 = vadd.xlane.f32.xlu0 %v499
          %v617 = vpop.xlane.xlu0 %616
          %618 = vadd.xlane.f32.xlu0 %v500
          %v619 = vpop.xlane.xlu0 %618
          %620 = vadd.xlane.f32.xlu0 %v501
          %v621 = vpop.xlane.xlu0 %620
          %622 = vadd.xlane.f32.xlu0 %v502
          %v623 = vpop.xlane.xlu0 %622
          %624 = vadd.xlane.f32.xlu0 %v503
          %v625 = vpop.xlane.xlu0 %624
          %626 = vadd.xlane.f32.xlu0 %v504
          %v627 = vpop.xlane.xlu0 %626
          %628 = vadd.xlane.f32.xlu0 %v505
          %v629 = vpop.xlane.xlu0 %628
          %630 = vadd.xlane.f32.xlu0 %v506
          %v631 = vpop.xlane.xlu0 %630
          %632 = vadd.xlane.f32.xlu0 %v507
          %v633 = vpop.xlane.xlu0 %632
          %634 = vadd.xlane.f32.xlu0 %v508
          %v635 = vpop.xlane.xlu0 %634
          %636 = vadd.xlane.f32.xlu0 %v509
          %v637 = vpop.xlane.xlu0 %636
          %v638 = vrcp.pop 128.0
          %v639 = vmul.f32 %v511, %v638
          %v640 = vmul.f32 %v513, %v638
          %v641 = vmul.f32 %v515, %v638
          %v642 = vmul.f32 %v517, %v638
          %v643 = vmul.f32 %v519, %v638
          %v644 = vmul.f32 %v521, %v638
          %v645 = vmul.f32 %v523, %v638
          %v646 = vmul.f32 %v525, %v638
          %v647 = vmul.f32 %v527, %v638
          %v648 = vmul.f32 %v529, %v638
          %v649 = vmul.f32 %v531, %v638
          %v650 = vmul.f32 %v533, %v638
          %v651 = vmul.f32 %v535, %v638
          %v652 = vmul.f32 %v537, %v638
          %v653 = vmul.f32 %v539, %v638
          %v654 = vmul.f32 %v541, %v638
          %v655 = vmul.f32 %v543, %v638
          %v656 = vmul.f32 %v545, %v638
          %v657 = vmul.f32 %v547, %v638
          %v658 = vmul.f32 %v549, %v638
          %v659 = vmul.f32 %v551, %v638
          %v660 = vmul.f32 %v553, %v638
          %v661 = vmul.f32 %v555, %v638
          %v662 = vmul.f32 %v557, %v638
          %v663 = vmul.f32 %v559, %v638
          %v664 = vmul.f32 %v561, %v638
          %v665 = vmul.f32 %v563, %v638
          %v666 = vmul.f32 %v565, %v638
          %v667 = vmul.f32 %v567, %v638
          %v668 = vmul.f32 %v569, %v638
          %v669 = vmul.f32 %v571, %v638
          %v670 = vmul.f32 %v573, %v638
          %v671 = vmul.f32 %v575, %v638
          %v672 = vmul.f32 %v577, %v638
          %v673 = vmul.f32 %v579, %v638
          %v674 = vmul.f32 %v581, %v638
          %v675 = vmul.f32 %v583, %v638
          %v676 = vmul.f32 %v585, %v638
          %v677 = vmul.f32 %v587, %v638
          %v678 = vmul.f32 %v589, %v638
          %v679 = vmul.f32 %v591, %v638
          %v680 = vmul.f32 %v593, %v638
          %v681 = vmul.f32 %v595, %v638
          %v682 = vmul.f32 %v597, %v638
          %v683 = vmul.f32 %v599, %v638
          %v684 = vmul.f32 %v601, %v638
          %v685 = vmul.f32 %v603, %v638
          %v686 = vmul.f32 %v605, %v638
          %v687 = vmul.f32 %v607, %v638
          %v688 = vmul.f32 %v609, %v638
          %v689 = vmul.f32 %v611, %v638
          %v690 = vmul.f32 %v613, %v638
          %v691 = vmul.f32 %v615, %v638
          %v692 = vmul.f32 %v617, %v638
          %v693 = vmul.f32 %v619, %v638
          %v694 = vmul.f32 %v621, %v638
          %v695 = vmul.f32 %v623, %v638
          %v696 = vmul.f32 %v625, %v638
          %v697 = vmul.f32 %v627, %v638
          %v698 = vmul.f32 %v629, %v638
          %v699 = vmul.f32 %v631, %v638
          %v700 = vmul.f32 %v633, %v638
          %v701 = vmul.f32 %v635, %v638
          %v702 = vmul.f32 %v637, %v638
          %v703 = vsub.f32 %v446, %v639
          %v704 = vsub.f32 %v447, %v640
          %v705 = vsub.f32 %v448, %v641
          %v706 = vsub.f32 %v449, %v642
          %v707 = vsub.f32 %v450, %v643
          %v708 = vsub.f32 %v451, %v644
          %v709 = vsub.f32 %v452, %v645
          %v710 = vsub.f32 %v453, %v646
          %v711 = vsub.f32 %v454, %v647
          %v712 = vsub.f32 %v455, %v648
          %v713 = vsub.f32 %v456, %v649
          %v714 = vsub.f32 %v457, %v650
          %v715 = vsub.f32 %v458, %v651
          %v716 = vsub.f32 %v459, %v652
          %v717 = vsub.f32 %v460, %v653
          %v718 = vsub.f32 %v461, %v654
          %v719 = vsub.f32 %v462, %v655
          %v720 = vsub.f32 %v463, %v656
          %v721 = vsub.f32 %v464, %v657
          %v722 = vsub.f32 %v465, %v658
          %v723 = vsub.f32 %v466, %v659
          %v724 = vsub.f32 %v467, %v660
          %v725 = vsub.f32 %v468, %v661
          %v726 = vsub.f32 %v469, %v662
          %v727 = vsub.f32 %v470, %v663
          %v728 = vsub.f32 %v471, %v664
          %v729 = vsub.f32 %v472, %v665
          %v730 = vsub.f32 %v473, %v666
          %v731 = vsub.f32 %v474, %v667
          %v732 = vsub.f32 %v475, %v668
          %v733 = vsub.f32 %v476, %v669
          %v734 = vsub.f32 %v477, %v670
          %v735 = vsub.f32 %v478, %v671
          %v736 = vsub.f32 %v479, %v672
          %v737 = vsub.f32 %v480, %v673
          %v738 = vsub.f32 %v481, %v674
          %v739 = vsub.f32 %v482, %v675
          %v740 = vsub.f32 %v483, %v676
          %v741 = vsub.f32 %v484, %v677
          %v742 = vsub.f32 %v485, %v678
          %v743 = vsub.f32 %v486, %v679
          %v744 = vsub.f32 %v487, %v680
          %v745 = vsub.f32 %v488, %v681
          %v746 = vsub.f32 %v489, %v682
          %v747 = vsub.f32 %v490, %v683
          %v748 = vsub.f32 %v491, %v684
          %v749 = vsub.f32 %v492, %v685
          %v750 = vsub.f32 %v493, %v686
          %v751 = vsub.f32 %v494, %v687
          %v752 = vsub.f32 %v495, %v688
          %v753 = vsub.f32 %v496, %v689
          %v754 = vsub.f32 %v497, %v690
          %v755 = vsub.f32 %v498, %v691
          %v756 = vsub.f32 %v499, %v692
          %v757 = vsub.f32 %v500, %v693
          %v758 = vsub.f32 %v501, %v694
          %v759 = vsub.f32 %v502, %v695
          %v760 = vsub.f32 %v503, %v696
          %v761 = vsub.f32 %v504, %v697
          %v762 = vsub.f32 %v505, %v698
          %v763 = vsub.f32 %v506, %v699
          %v764 = vsub.f32 %v507, %v700
          %v765 = vsub.f32 %v508, %v701
          %v766 = vsub.f32 %v509, %v702
          %v767 = vmul.f32 %v703, %v703
          %v768 = vmul.f32 %v704, %v704
          %v769 = vmul.f32 %v705, %v705
          %v770 = vmul.f32 %v706, %v706
          %v771 = vmul.f32 %v707, %v707
          %v772 = vmul.f32 %v708, %v708
          %v773 = vmul.f32 %v709, %v709
          %v774 = vmul.f32 %v710, %v710
          %v775 = vmul.f32 %v711, %v711
          %v776 = vmul.f32 %v712, %v712
          %v777 = vmul.f32 %v713, %v713
          %v778 = vmul.f32 %v714, %v714
          %v779 = vmul.f32 %v715, %v715
          %v780 = vmul.f32 %v716, %v716
          %v781 = vmul.f32 %v717, %v717
          %v782 = vmul.f32 %v718, %v718
          %v783 = vmul.f32 %v719, %v719
          %v784 = vmul.f32 %v720, %v720
          %v785 = vmul.f32 %v721, %v721
          %v786 = vmul.f32 %v722, %v722
          %v787 = vmul.f32 %v723, %v723
          %v788 = vmul.f32 %v724, %v724
          %v789 = vmul.f32 %v725, %v725
          %v790 = vmul.f32 %v726, %v726
          %v791 = vmul.f32 %v727, %v727
          %v792 = vmul.f32 %v728, %v728
          %v793 = vmul.f32 %v729, %v729
          %v794 = vmul.f32 %v730, %v730
          %v795 = vmul.f32 %v731, %v731
          %v796 = vmul.f32 %v732, %v732
          %v797 = vmul.f32 %v733, %v733
          %v798 = vmul.f32 %v734, %v734
          %v799 = vmul.f32 %v735, %v735
          %v800 = vmul.f32 %v736, %v736
          %v801 = vmul.f32 %v737, %v737
          %v802 = vmul.f32 %v738, %v738
          %v803 = vmul.f32 %v739, %v739
          %v804 = vmul.f32 %v740, %v740
          %v805 = vmul.f32 %v741, %v741
          %v806 = vmul.f32 %v742, %v742
          %v807 = vmul.f32 %v743, %v743
          %v808 = vmul.f32 %v744, %v744
          %v809 = vmul.f32 %v745, %v745
          %v810 = vmul.f32 %v746, %v746
          %v811 = vmul.f32 %v747, %v747
          %v812 = vmul.f32 %v748, %v748
          %v813 = vmul.f32 %v749, %v749
          %v814 = vmul.f32 %v750, %v750
          %v815 = vmul.f32 %v751, %v751
          %v816 = vmul.f32 %v752, %v752
          %v817 = vmul.f32 %v753, %v753
          %v818 = vmul.f32 %v754, %v754
          %v819 = vmul.f32 %v755, %v755
          %v820 = vmul.f32 %v756, %v756
          %v821 = vmul.f32 %v757, %v757
          %v822 = vmul.f32 %v758, %v758
          %v823 = vmul.f32 %v759, %v759
          %v824 = vmul.f32 %v760, %v760
          %v825 = vmul.f32 %v761, %v761
          %v826 = vmul.f32 %v762, %v762
          %v827 = vmul.f32 %v763, %v763
          %v828 = vmul.f32 %v764, %v764
          %v829 = vmul.f32 %v765, %v765
          %v830 = vmul.f32 %v766, %v766
          %831 = vadd.xlane.f32.xlu0 %v767
          %v832 = vpop.xlane.xlu0 %831
          %833 = vadd.xlane.f32.xlu0 %v768
          %v834 = vpop.xlane.xlu0 %833
          %835 = vadd.xlane.f32.xlu0 %v769
          %v836 = vpop.xlane.xlu0 %835
          %837 = vadd.xlane.f32.xlu0 %v770
          %v838 = vpop.xlane.xlu0 %837
          %839 = vadd.xlane.f32.xlu0 %v771
          %v840 = vpop.xlane.xlu0 %839
          %841 = vadd.xlane.f32.xlu0 %v772
          %v842 = vpop.xlane.xlu0 %841
          %843 = vadd.xlane.f32.xlu0 %v773
          %v844 = vpop.xlane.xlu0 %843
          %845 = vadd.xlane.f32.xlu0 %v774
          %v846 = vpop.xlane.xlu0 %845
          %847 = vadd.xlane.f32.xlu0 %v775
          %v848 = vpop.xlane.xlu0 %847
          %849 = vadd.xlane.f32.xlu0 %v776
          %v850 = vpop.xlane.xlu0 %849
          %851 = vadd.xlane.f32.xlu0 %v777
          %v852 = vpop.xlane.xlu0 %851
          %853 = vadd.xlane.f32.xlu0 %v778
          %v854 = vpop.xlane.xlu0 %853
          %855 = vadd.xlane.f32.xlu0 %v779
          %v856 = vpop.xlane.xlu0 %855
          %857 = vadd.xlane.f32.xlu0 %v780
          %v858 = vpop.xlane.xlu0 %857
          %859 = vadd.xlane.f32.xlu0 %v781
          %v860 = vpop.xlane.xlu0 %859
          %861 = vadd.xlane.f32.xlu0 %v782
          %v862 = vpop.xlane.xlu0 %861
          %863 = vadd.xlane.f32.xlu0 %v783
          %v864 = vpop.xlane.xlu0 %863
          %865 = vadd.xlane.f32.xlu0 %v784
          %v866 = vpop.xlane.xlu0 %865
          %867 = vadd.xlane.f32.xlu0 %v785
          %v868 = vpop.xlane.xlu0 %867
          %869 = vadd.xlane.f32.xlu0 %v786
          %v870 = vpop.xlane.xlu0 %869
          %871 = vadd.xlane.f32.xlu0 %v787
          %v872 = vpop.xlane.xlu0 %871
          %873 = vadd.xlane.f32.xlu0 %v788
          %v874 = vpop.xlane.xlu0 %873
          %875 = vadd.xlane.f32.xlu0 %v789
          %v876 = vpop.xlane.xlu0 %875
          %877 = vadd.xlane.f32.xlu0 %v790
          %v878 = vpop.xlane.xlu0 %877
          %879 = vadd.xlane.f32.xlu0 %v791
          %v880 = vpop.xlane.xlu0 %879
          %881 = vadd.xlane.f32.xlu0 %v792
          %v882 = vpop.xlane.xlu0 %881
          %883 = vadd.xlane.f32.xlu0 %v793
          %v884 = vpop.xlane.xlu0 %883
          %885 = vadd.xlane.f32.xlu0 %v794
          %v886 = vpop.xlane.xlu0 %885
          %887 = vadd.xlane.f32.xlu0 %v795
          %v888 = vpop.xlane.xlu0 %887
          %889 = vadd.xlane.f32.xlu0 %v796
          %v890 = vpop.xlane.xlu0 %889
          %891 = vadd.xlane.f32.xlu0 %v797
          %v892 = vpop.xlane.xlu0 %891
          %893 = vadd.xlane.f32.xlu0 %v798
          %v894 = vpop.xlane.xlu0 %893
          %895 = vadd.xlane.f32.xlu0 %v799
          %v896 = vpop.xlane.xlu0 %895
          %897 = vadd.xlane.f32.xlu0 %v800
          %v898 = vpop.xlane.xlu0 %897
          %899 = vadd.xlane.f32.xlu0 %v801
          %v900 = vpop.xlane.xlu0 %899
          %901 = vadd.xlane.f32.xlu0 %v802
          %v902 = vpop.xlane.xlu0 %901
          %903 = vadd.xlane.f32.xlu0 %v803
          %v904 = vpop.xlane.xlu0 %903
          %905 = vadd.xlane.f32.xlu0 %v804
          %v906 = vpop.xlane.xlu0 %905
          %907 = vadd.xlane.f32.xlu0 %v805
          %v908 = vpop.xlane.xlu0 %907
          %909 = vadd.xlane.f32.xlu0 %v806
          %v910 = vpop.xlane.xlu0 %909
          %911 = vadd.xlane.f32.xlu0 %v807
          %v912 = vpop.xlane.xlu0 %911
          %913 = vadd.xlane.f32.xlu0 %v808
          %v914 = vpop.xlane.xlu0 %913
          %915 = vadd.xlane.f32.xlu0 %v809
          %v916 = vpop.xlane.xlu0 %915
          %917 = vadd.xlane.f32.xlu0 %v810
          %v918 = vpop.xlane.xlu0 %917
          %919 = vadd.xlane.f32.xlu0 %v811
          %v920 = vpop.xlane.xlu0 %919
          %921 = vadd.xlane.f32.xlu0 %v812
          %v922 = vpop.xlane.xlu0 %921
          %923 = vadd.xlane.f32.xlu0 %v813
          %v924 = vpop.xlane.xlu0 %923
          %925 = vadd.xlane.f32.xlu0 %v814
          %v926 = vpop.xlane.xlu0 %925
          %927 = vadd.xlane.f32.xlu0 %v815
          %v928 = vpop.xlane.xlu0 %927
          %929 = vadd.xlane.f32.xlu0 %v816
          %v930 = vpop.xlane.xlu0 %929
          %931 = vadd.xlane.f32.xlu0 %v817
          %v932 = vpop.xlane.xlu0 %931
          %933 = vadd.xlane.f32.xlu0 %v818
          %v934 = vpop.xlane.xlu0 %933
          %935 = vadd.xlane.f32.xlu0 %v819
          %v936 = vpop.xlane.xlu0 %935
          %937 = vadd.xlane.f32.xlu0 %v820
          %v938 = vpop.xlane.xlu0 %937
          %939 = vadd.xlane.f32.xlu0 %v821
          %v940 = vpop.xlane.xlu0 %939
          %941 = vadd.xlane.f32.xlu0 %v822
          %v942 = vpop.xlane.xlu0 %941
          %943 = vadd.xlane.f32.xlu0 %v823
          %v944 = vpop.xlane.xlu0 %943
          %945 = vadd.xlane.f32.xlu0 %v824
          %v946 = vpop.xlane.xlu0 %945
          %947 = vadd.xlane.f32.xlu0 %v825
          %v948 = vpop.xlane.xlu0 %947
          %949 = vadd.xlane.f32.xlu0 %v826
          %v950 = vpop.xlane.xlu0 %949
          %951 = vadd.xlane.f32.xlu0 %v827
          %v952 = vpop.xlane.xlu0 %951
          %953 = vadd.xlane.f32.xlu0 %v828
          %v954 = vpop.xlane.xlu0 %953
          %955 = vadd.xlane.f32.xlu0 %v829
          %v956 = vpop.xlane.xlu0 %955
          %957 = vadd.xlane.f32.xlu0 %v830
          %v958 = vpop.xlane.xlu0 %957
          %v959 = vmul.f32 %v832, %v638
          %v960 = vmul.f32 %v834, %v638
          %v961 = vmul.f32 %v836, %v638
          %v962 = vmul.f32 %v838, %v638
          %v963 = vmul.f32 %v840, %v638
          %v964 = vmul.f32 %v842, %v638
          %v965 = vmul.f32 %v844, %v638
          %v966 = vmul.f32 %v846, %v638
          %v967 = vmul.f32 %v848, %v638
          %v968 = vmul.f32 %v850, %v638
          %v969 = vmul.f32 %v852, %v638
          %v970 = vmul.f32 %v854, %v638
          %v971 = vmul.f32 %v856, %v638
          %v972 = vmul.f32 %v858, %v638
          %v973 = vmul.f32 %v860, %v638
          %v974 = vmul.f32 %v862, %v638
          %v975 = vmul.f32 %v864, %v638
          %v976 = vmul.f32 %v866, %v638
          %v977 = vmul.f32 %v868, %v638
          %v978 = vmul.f32 %v870, %v638
          %v979 = vmul.f32 %v872, %v638
          %v980 = vmul.f32 %v874, %v638
          %v981 = vmul.f32 %v876, %v638
          %v982 = vmul.f32 %v878, %v638
          %v983 = vmul.f32 %v880, %v638
          %v984 = vmul.f32 %v882, %v638
          %v985 = vmul.f32 %v884, %v638
          %v986 = vmul.f32 %v886, %v638
          %v987 = vmul.f32 %v888, %v638
          %v988 = vmul.f32 %v890, %v638
          %v989 = vmul.f32 %v892, %v638
          %v990 = vmul.f32 %v894, %v638
          %v991 = vmul.f32 %v896, %v638
          %v992 = vmul.f32 %v898, %v638
          %v993 = vmul.f32 %v900, %v638
          %v994 = vmul.f32 %v902, %v638
          %v995 = vmul.f32 %v904, %v638
          %v996 = vmul.f32 %v906, %v638
          %v997 = vmul.f32 %v908, %v638
          %v998 = vmul.f32 %v910, %v638
          %v999 = vmul.f32 %v912, %v638
          %v1000 = vmul.f32 %v914, %v638
          %v1001 = vmul.f32 %v916, %v638
          %v1002 = vmul.f32 %v918, %v638
          %v1003 = vmul.f32 %v920, %v638
          %v1004 = vmul.f32 %v922, %v638
          %v1005 = vmul.f32 %v924, %v638
          %v1006 = vmul.f32 %v926, %v638
          %v1007 = vmul.f32 %v928, %v638
          %v1008 = vmul.f32 %v930, %v638
          %v1009 = vmul.f32 %v932, %v638
          %v1010 = vmul.f32 %v934, %v638
          %v1011 = vmul.f32 %v936, %v638
          %v1012 = vmul.f32 %v938, %v638
          %v1013 = vmul.f32 %v940, %v638
          %v1014 = vmul.f32 %v942, %v638
          %v1015 = vmul.f32 %v944, %v638
          %v1016 = vmul.f32 %v946, %v638
          %v1017 = vmul.f32 %v948, %v638
          %v1018 = vmul.f32 %v950, %v638
          %v1019 = vmul.f32 %v952, %v638
          %v1020 = vmul.f32 %v954, %v638
          %v1021 = vmul.f32 %v956, %v638
          %v1022 = vmul.f32 %v958, %v638
          %v1023 = vadd.f32 %v959, 1e-05
          %v1024 = vadd.f32 %v960, 1e-05
          %v1025 = vadd.f32 %v961, 1e-05
          %v1026 = vadd.f32 %v962, 1e-05
          %v1027 = vadd.f32 %v963, 1e-05
          %v1028 = vadd.f32 %v964, 1e-05
          %v1029 = vadd.f32 %v965, 1e-05
          %v1030 = vadd.f32 %v966, 1e-05
          %v1031 = vadd.f32 %v967, 1e-05
          %v1032 = vadd.f32 %v968, 1e-05
          %v1033 = vadd.f32 %v969, 1e-05
          %v1034 = vadd.f32 %v970, 1e-05
          %v1035 = vadd.f32 %v971, 1e-05
          %v1036 = vadd.f32 %v972, 1e-05
          %v1037 = vadd.f32 %v973, 1e-05
          %v1038 = vadd.f32 %v974, 1e-05
          %v1039 = vadd.f32 %v975, 1e-05
          %v1040 = vadd.f32 %v976, 1e-05
          %v1041 = vadd.f32 %v977, 1e-05
          %v1042 = vadd.f32 %v978, 1e-05
          %v1043 = vadd.f32 %v979, 1e-05
          %v1044 = vadd.f32 %v980, 1e-05
          %v1045 = vadd.f32 %v981, 1e-05
          %v1046 = vadd.f32 %v982, 1e-05
          %v1047 = vadd.f32 %v983, 1e-05
          %v1048 = vadd.f32 %v984, 1e-05
          %v1049 = vadd.f32 %v985, 1e-05
          %v1050 = vadd.f32 %v986, 1e-05
          %v1051 = vadd.f32 %v987, 1e-05
          %v1052 = vadd.f32 %v988, 1e-05
          %v1053 = vadd.f32 %v989, 1e-05
          %v1054 = vadd.f32 %v990, 1e-05
          %v1055 = vadd.f32 %v991, 1e-05
          %v1056 = vadd.f32 %v992, 1e-05
          %v1057 = vadd.f32 %v993, 1e-05
          %v1058 = vadd.f32 %v994, 1e-05
          %v1059 = vadd.f32 %v995, 1e-05
          %v1060 = vadd.f32 %v996, 1e-05
          %v1061 = vadd.f32 %v997, 1e-05
          %v1062 = vadd.f32 %v998, 1e-05
          %v1063 = vadd.f32 %v999, 1e-05
          %v1064 = vadd.f32 %v1000, 1e-05
          %v1065 = vadd.f32 %v1001, 1e-05
          %v1066 = vadd.f32 %v1002, 1e-05
          %v1067 = vadd.f32 %v1003, 1e-05
          %v1068 = vadd.f32 %v1004, 1e-05
          %v1069 = vadd.f32 %v1005, 1e-05
          %v1070 = vadd.f32 %v1006, 1e-05
          %v1071 = vadd.f32 %v1007, 1e-05
          %v1072 = vadd.f32 %v1008, 1e-05
          %v1073 = vadd.f32 %v1009, 1e-05
          %v1074 = vadd.f32 %v1010, 1e-05
          %v1075 = vadd.f32 %v1011, 1e-05
          %v1076 = vadd.f32 %v1012, 1e-05
          %v1077 = vadd.f32 %v1013, 1e-05
          %v1078 = vadd.f32 %v1014, 1e-05
          %v1079 = vadd.f32 %v1015, 1e-05
          %v1080 = vadd.f32 %v1016, 1e-05
          %v1081 = vadd.f32 %v1017, 1e-05
          %v1082 = vadd.f32 %v1018, 1e-05
          %v1083 = vadd.f32 %v1019, 1e-05
          %v1084 = vadd.f32 %v1020, 1e-05
          %v1085 = vadd.f32 %v1021, 1e-05
          %v1086 = vadd.f32 %v1022, 1e-05
          %v1087 = vrsqrt.pop %v1023
          %v1088 = vrsqrt.pop %v1024
          %v1089 = vrsqrt.pop %v1025
          %v1090 = vrsqrt.pop %v1026
          %v1091 = vrsqrt.pop %v1027
          %v1092 = vrsqrt.pop %v1028
          %v1093 = vrsqrt.pop %v1029
          %v1094 = vrsqrt.pop %v1030
          %v1095 = vrsqrt.pop %v1031
          %v1096 = vrsqrt.pop %v1032
          %v1097 = vrsqrt.pop %v1033
          %v1098 = vrsqrt.pop %v1034
          %v1099 = vrsqrt.pop %v1035
          %v1100 = vrsqrt.pop %v1036
          %v1101 = vrsqrt.pop %v1037
          %v1102 = vrsqrt.pop %v1038
          %v1103 = vrsqrt.pop %v1039
          %v1104 = vrsqrt.pop %v1040
          %v1105 = vrsqrt.pop %v1041
          %v1106 = vrsqrt.pop %v1042
          %v1107 = vrsqrt.pop %v1043
          %v1108 = vrsqrt.pop %v1044
          %v1109 = vrsqrt.pop %v1045
          %v1110 = vrsqrt.pop %v1046
          %v1111 = vrsqrt.pop %v1047
          %v1112 = vrsqrt.pop %v1048
          %v1113 = vrsqrt.pop %v1049
          %v1114 = vrsqrt.pop %v1050
          %v1115 = vrsqrt.pop %v1051
          %v1116 = vrsqrt.pop %v1052
          %v1117 = vrsqrt.pop %v1053
          %v1118 = vrsqrt.pop %v1054
          %v1119 = vrsqrt.pop %v1055
          %v1120 = vrsqrt.pop %v1056
          %v1121 = vrsqrt.pop %v1057
          %v1122 = vrsqrt.pop %v1058
          %v1123 = vrsqrt.pop %v1059
          %v1124 = vrsqrt.pop %v1060
          %v1125 = vrsqrt.pop %v1061
          %v1126 = vrsqrt.pop %v1062
          %v1127 = vrsqrt.pop %v1063
          %v1128 = vrsqrt.pop %v1064
          %v1129 = vrsqrt.pop %v1065
          %v1130 = vrsqrt.pop %v1066
          %v1131 = vrsqrt.pop %v1067
          %v1132 = vrsqrt.pop %v1068
          %v1133 = vrsqrt.pop %v1069
          %v1134 = vrsqrt.pop %v1070
          %v1135 = vrsqrt.pop %v1071
          %v1136 = vrsqrt.pop %v1072
          %v1137 = vrsqrt.pop %v1073
          %v1138 = vrsqrt.pop %v1074
          %v1139 = vrsqrt.pop %v1075
          %v1140 = vrsqrt.pop %v1076
          %v1141 = vrsqrt.pop %v1077
          %v1142 = vrsqrt.pop %v1078
          %v1143 = vrsqrt.pop %v1079
          %v1144 = vrsqrt.pop %v1080
          %v1145 = vrsqrt.pop %v1081
          %v1146 = vrsqrt.pop %v1082
          %v1147 = vrsqrt.pop %v1083
          %v1148 = vrsqrt.pop %v1084
          %v1149 = vrsqrt.pop %v1085
          %v1150 = vrsqrt.pop %v1086
          %v1151 = vmul.f32 %v703, %v1087
          %v1152 = vmul.f32 %v704, %v1088
          %v1153 = vmul.f32 %v705, %v1089
          %v1154 = vmul.f32 %v706, %v1090
          %v1155 = vmul.f32 %v707, %v1091
          %v1156 = vmul.f32 %v708, %v1092
          %v1157 = vmul.f32 %v709, %v1093
          %v1158 = vmul.f32 %v710, %v1094
          %v1159 = vmul.f32 %v711, %v1095
          %v1160 = vmul.f32 %v712, %v1096
          %v1161 = vmul.f32 %v713, %v1097
          %v1162 = vmul.f32 %v714, %v1098
          %v1163 = vmul.f32 %v715, %v1099
          %v1164 = vmul.f32 %v716, %v1100
          %v1165 = vmul.f32 %v717, %v1101
          %v1166 = vmul.f32 %v718, %v1102
          %v1167 = vmul.f32 %v719, %v1103
          %v1168 = vmul.f32 %v720, %v1104
          %v1169 = vmul.f32 %v721, %v1105
          %v1170 = vmul.f32 %v722, %v1106
          %v1171 = vmul.f32 %v723, %v1107
          %v1172 = vmul.f32 %v724, %v1108
          %v1173 = vmul.f32 %v725, %v1109
          %v1174 = vmul.f32 %v726, %v1110
          %v1175 = vmul.f32 %v727, %v1111
          %v1176 = vmul.f32 %v728, %v1112
          %v1177 = vmul.f32 %v729, %v1113
          %v1178 = vmul.f32 %v730, %v1114
          %v1179 = vmul.f32 %v731, %v1115
          %v1180 = vmul.f32 %v732, %v1116
          %v1181 = vmul.f32 %v733, %v1117
          %v1182 = vmul.f32 %v734, %v1118
          %v1183 = vmul.f32 %v735, %v1119
          %v1184 = vmul.f32 %v736, %v1120
          %v1185 = vmul.f32 %v737, %v1121
          %v1186 = vmul.f32 %v738, %v1122
          %v1187 = vmul.f32 %v739, %v1123
          %v1188 = vmul.f32 %v740, %v1124
          %v1189 = vmul.f32 %v741, %v1125
          %v1190 = vmul.f32 %v742, %v1126
          %v1191 = vmul.f32 %v743, %v1127
          %v1192 = vmul.f32 %v744, %v1128
          %v1193 = vmul.f32 %v745, %v1129
          %v1194 = vmul.f32 %v746, %v1130
          %v1195 = vmul.f32 %v747, %v1131
          %v1196 = vmul.f32 %v748, %v1132
          %v1197 = vmul.f32 %v749, %v1133
          %v1198 = vmul.f32 %v750, %v1134
          %v1199 = vmul.f32 %v751, %v1135
          %v1200 = vmul.f32 %v752, %v1136
          %v1201 = vmul.f32 %v753, %v1137
          %v1202 = vmul.f32 %v754, %v1138
          %v1203 = vmul.f32 %v755, %v1139
          %v1204 = vmul.f32 %v756, %v1140
          %v1205 = vmul.f32 %v757, %v1141
          %v1206 = vmul.f32 %v758, %v1142
          %v1207 = vmul.f32 %v759, %v1143
          %v1208 = vmul.f32 %v760, %v1144
          %v1209 = vmul.f32 %v761, %v1145
          %v1210 = vmul.f32 %v762, %v1146
          %v1211 = vmul.f32 %v763, %v1147
          %v1212 = vmul.f32 %v764, %v1148
          %v1213 = vmul.f32 %v765, %v1149
          %v1214 = vmul.f32 %v766, %v1150
          %v1215 = vpack.c.bf16 %v1152, %v1151
          %v1216 = vpack.c.bf16 %v1154, %v1153
          %v1217 = vpack.c.bf16 %v1156, %v1155
          %v1218 = vpack.c.bf16 %v1158, %v1157
          %v1219 = vpack.c.bf16 %v1160, %v1159
          %v1220 = vpack.c.bf16 %v1162, %v1161
          %v1221 = vpack.c.bf16 %v1164, %v1163
          %v1222 = vpack.c.bf16 %v1166, %v1165
          %v1223 = vpack.c.bf16 %v1168, %v1167
          %v1224 = vpack.c.bf16 %v1170, %v1169
          %v1225 = vpack.c.bf16 %v1172, %v1171
          %v1226 = vpack.c.bf16 %v1174, %v1173
          %v1227 = vpack.c.bf16 %v1176, %v1175
          %v1228 = vpack.c.bf16 %v1178, %v1177
          %v1229 = vpack.c.bf16 %v1180, %v1179
          %v1230 = vpack.c.bf16 %v1182, %v1181
          %v1231 = vpack.c.bf16 %v1184, %v1183
          %v1232 = vpack.c.bf16 %v1186, %v1185
          %v1233 = vpack.c.bf16 %v1188, %v1187
          %v1234 = vpack.c.bf16 %v1190, %v1189
          %v1235 = vpack.c.bf16 %v1192, %v1191
          %v1236 = vpack.c.bf16 %v1194, %v1193
          %v1237 = vpack.c.bf16 %v1196, %v1195
          %v1238 = vpack.c.bf16 %v1198, %v1197
          %v1239 = vpack.c.bf16 %v1200, %v1199
          %v1240 = vpack.c.bf16 %v1202, %v1201
          %v1241 = vpack.c.bf16 %v1204, %v1203
          %v1242 = vpack.c.bf16 %v1206, %v1205
          %v1243 = vpack.c.bf16 %v1208, %v1207
          %v1244 = vpack.c.bf16 %v1210, %v1209
          %v1245 = vpack.c.bf16 %v1212, %v1211
          %v1246 = vpack.c.bf16 %v1214, %v1213
          %v1279 = vunpack.c.l.b16 %v1215
          %v1280 = vunpack.c.h.b16 %v1215
          %v1281 = vunpack.c.l.b16 %v1216
          %v1282 = vunpack.c.h.b16 %v1216
          %v1283 = vunpack.c.l.b16 %v1217
          %v1284 = vunpack.c.h.b16 %v1217
          %v1285 = vunpack.c.l.b16 %v1218
          %v1286 = vunpack.c.h.b16 %v1218
          %v1287 = vunpack.c.l.b16 %v1219
          %v1288 = vunpack.c.h.b16 %v1219
          %v1289 = vunpack.c.l.b16 %v1220
          %v1290 = vunpack.c.h.b16 %v1220
          %v1291 = vunpack.c.l.b16 %v1221
          %v1292 = vunpack.c.h.b16 %v1221
          %v1293 = vunpack.c.l.b16 %v1222
          %v1294 = vunpack.c.h.b16 %v1222
          %v1295 = vunpack.c.l.b16 %v1223
          %v1296 = vunpack.c.h.b16 %v1223
          %v1297 = vunpack.c.l.b16 %v1224
          %v1298 = vunpack.c.h.b16 %v1224
          %v1299 = vunpack.c.l.b16 %v1225
          %v1300 = vunpack.c.h.b16 %v1225
          %v1301 = vunpack.c.l.b16 %v1226
          %v1302 = vunpack.c.h.b16 %v1226
          %v1303 = vunpack.c.l.b16 %v1227
          %v1304 = vunpack.c.h.b16 %v1227
          %v1305 = vunpack.c.l.b16 %v1228
          %v1306 = vunpack.c.h.b16 %v1228
          %v1307 = vunpack.c.l.b16 %v1229
          %v1308 = vunpack.c.h.b16 %v1229
          %v1309 = vunpack.c.l.b16 %v1230
          %v1310 = vunpack.c.h.b16 %v1230
          %v1311 = vunpack.c.l.b16 %v1231
          %v1312 = vunpack.c.h.b16 %v1231
          %v1313 = vunpack.c.l.b16 %v1232
          %v1314 = vunpack.c.h.b16 %v1232
          %v1315 = vunpack.c.l.b16 %v1233
          %v1316 = vunpack.c.h.b16 %v1233
          %v1317 = vunpack.c.l.b16 %v1234
          %v1318 = vunpack.c.h.b16 %v1234
          %v1319 = vunpack.c.l.b16 %v1235
          %v1320 = vunpack.c.h.b16 %v1235
          %v1321 = vunpack.c.l.b16 %v1236
          %v1322 = vunpack.c.h.b16 %v1236
          %v1323 = vunpack.c.l.b16 %v1237
          %v1324 = vunpack.c.h.b16 %v1237
          %v1325 = vunpack.c.l.b16 %v1238
          %v1326 = vunpack.c.h.b16 %v1238
          %v1327 = vunpack.c.l.b16 %v1239
          %v1328 = vunpack.c.h.b16 %v1239
          %v1329 = vunpack.c.l.b16 %v1240
          %v1330 = vunpack.c.h.b16 %v1240
          %v1331 = vunpack.c.l.b16 %v1241
          %v1332 = vunpack.c.h.b16 %v1241
          %v1333 = vunpack.c.l.b16 %v1242
          %v1334 = vunpack.c.h.b16 %v1242
          %v1335 = vunpack.c.l.b16 %v1243
          %v1336 = vunpack.c.h.b16 %v1243
          %v1337 = vunpack.c.l.b16 %v1244
          %v1338 = vunpack.c.h.b16 %v1244
          %v1339 = vunpack.c.l.b16 %v1245
          %v1340 = vunpack.c.h.b16 %v1245
          %v1341 = vunpack.c.l.b16 %v1246
          %v1342 = vunpack.c.h.b16 %v1246
          %v1343 = vpack.c.b16 %v1279, %v1279
          %v1344 = vpack.c.b16 %v1280, %v1280
          %v1345 = vpack.c.b16 %v1281, %v1281
          %v1346 = vpack.c.b16 %v1282, %v1282
          %v1347 = vpack.c.b16 %v1283, %v1283
          %v1348 = vpack.c.b16 %v1284, %v1284
          %v1349 = vpack.c.b16 %v1285, %v1285
          %v1350 = vpack.c.b16 %v1286, %v1286
          %v1351 = vpack.c.b16 %v1287, %v1287
          %v1352 = vpack.c.b16 %v1288, %v1288
          %v1353 = vpack.c.b16 %v1289, %v1289
          %v1354 = vpack.c.b16 %v1290, %v1290
          %v1355 = vpack.c.b16 %v1291, %v1291
          %v1356 = vpack.c.b16 %v1292, %v1292
          %v1357 = vpack.c.b16 %v1293, %v1293
          %v1358 = vpack.c.b16 %v1294, %v1294
          %v1359 = vpack.c.b16 %v1295, %v1295
          %v1360 = vpack.c.b16 %v1296, %v1296
          %v1361 = vpack.c.b16 %v1297, %v1297
          %v1362 = vpack.c.b16 %v1298, %v1298
          %v1363 = vpack.c.b16 %v1299, %v1299
          %v1364 = vpack.c.b16 %v1300, %v1300
          %v1365 = vpack.c.b16 %v1301, %v1301
          %v1366 = vpack.c.b16 %v1302, %v1302
          %v1367 = vpack.c.b16 %v1303, %v1303
          %v1368 = vpack.c.b16 %v1304, %v1304
          %v1369 = vpack.c.b16 %v1305, %v1305
          %v1370 = vpack.c.b16 %v1306, %v1306
          %v1371 = vpack.c.b16 %v1307, %v1307
          %v1372 = vpack.c.b16 %v1308, %v1308
          %v1373 = vpack.c.b16 %v1309, %v1309
          %v1374 = vpack.c.b16 %v1310, %v1310
          %v1375 = vpack.c.b16 %v1311, %v1311
          %v1376 = vpack.c.b16 %v1312, %v1312
          %v1377 = vpack.c.b16 %v1313, %v1313
          %v1378 = vpack.c.b16 %v1314, %v1314
          %v1379 = vpack.c.b16 %v1315, %v1315
          %v1380 = vpack.c.b16 %v1316, %v1316
          %v1381 = vpack.c.b16 %v1317, %v1317
          %v1382 = vpack.c.b16 %v1318, %v1318
          %v1383 = vpack.c.b16 %v1319, %v1319
          %v1384 = vpack.c.b16 %v1320, %v1320
          %v1385 = vpack.c.b16 %v1321, %v1321
          %v1386 = vpack.c.b16 %v1322, %v1322
          %v1387 = vpack.c.b16 %v1323, %v1323
          %v1388 = vpack.c.b16 %v1324, %v1324
          %v1389 = vpack.c.b16 %v1325, %v1325
          %v1390 = vpack.c.b16 %v1326, %v1326
          %v1391 = vpack.c.b16 %v1327, %v1327
          %v1392 = vpack.c.b16 %v1328, %v1328
          %v1393 = vpack.c.b16 %v1329, %v1329
          %v1394 = vpack.c.b16 %v1330, %v1330
          %v1395 = vpack.c.b16 %v1331, %v1331
          %v1396 = vpack.c.b16 %v1332, %v1332
          %v1397 = vpack.c.b16 %v1333, %v1333
          %v1398 = vpack.c.b16 %v1334, %v1334
          %v1399 = vpack.c.b16 %v1335, %v1335
          %v1400 = vpack.c.b16 %v1336, %v1336
          %v1401 = vpack.c.b16 %v1337, %v1337
          %v1402 = vpack.c.b16 %v1338, %v1338
          %v1403 = vpack.c.b16 %v1339, %v1339
          %v1404 = vpack.c.b16 %v1340, %v1340
          %v1405 = vpack.c.b16 %v1341, %v1341
          %v1406 = vpack.c.b16 %v1342, %v1342
          %1471 = vst [vmem:[#allocation2] sm:$0xf] %v1343
          %1472 = vst [vmem:[#allocation2 + $0x4] sm:$0xf] %v1344
          %1473 = vst [vmem:[#allocation2 + $0x8] sm:$0xf] %v1345
          %1474 = vst [vmem:[#allocation2 + $0xc] sm:$0xf] %v1346
          %1475 = vst [vmem:[#allocation2 + $0x10] sm:$0xf] %v1347
          %1476 = vst [vmem:[#allocation2 + $0x14] sm:$0xf] %v1348
          %1477 = vst [vmem:[#allocation2 + $0x18] sm:$0xf] %v1349
          %1478 = vst [vmem:[#allocation2 + $0x1c] sm:$0xf] %v1350
          %1479 = vst [vmem:[#allocation2 + $0x20] sm:$0xf] %v1351
          %1480 = vst [vmem:[#allocation2 + $0x24] sm:$0xf] %v1352
          %1481 = vst [vmem:[#allocation2 + $0x28] sm:$0xf] %v1353
          %1482 = vst [vmem:[#allocation2 + $0x2c] sm:$0xf] %v1354
          %1483 = vst [vmem:[#allocation2 + $0x30] sm:$0xf] %v1355
          %1484 = vst [vmem:[#allocation2 + $0x34] sm:$0xf] %v1356
          %1485 = vst [vmem:[#allocation2 + $0x38] sm:$0xf] %v1357
          %1486 = vst [vmem:[#allocation2 + $0x3c] sm:$0xf] %v1358
          %1487 = vst [vmem:[#allocation2 + $0x40] sm:$0xf] %v1359
          %1488 = vst [vmem:[#allocation2 + $0x44] sm:$0xf] %v1360
          %1489 = vst [vmem:[#allocation2 + $0x48] sm:$0xf] %v1361
          %1490 = vst [vmem:[#allocation2 + $0x4c] sm:$0xf] %v1362
          %1491 = vst [vmem:[#allocation2 + $0x50] sm:$0xf] %v1363
          %1492 = vst [vmem:[#allocation2 + $0x54] sm:$0xf] %v1364
          %1493 = vst [vmem:[#allocation2 + $0x58] sm:$0xf] %v1365
          %1494 = vst [vmem:[#allocation2 + $0x5c] sm:$0xf] %v1366
          %1495 = vst [vmem:[#allocation2 + $0x60] sm:$0xf] %v1367
          %1496 = vst [vmem:[#allocation2 + $0x64] sm:$0xf] %v1368
          %1497 = vst [vmem:[#allocation2 + $0x68] sm:$0xf] %v1369
          %1498 = vst [vmem:[#allocation2 + $0x6c] sm:$0xf] %v1370
          %1499 = vst [vmem:[#allocation2 + $0x70] sm:$0xf] %v1371
          %1500 = vst [vmem:[#allocation2 + $0x74] sm:$0xf] %v1372
          %1501 = vst [vmem:[#allocation2 + $0x78] sm:$0xf] %v1373
          %1502 = vst [vmem:[#allocation2 + $0x7c] sm:$0xf] %v1374
          %1503 = vst [vmem:[#allocation2 + $0x80] sm:$0xf] %v1375
          %1504 = vst [vmem:[#allocation2 + $0x84] sm:$0xf] %v1376
          %1505 = vst [vmem:[#allocation2 + $0x88] sm:$0xf] %v1377
          %1506 = vst [vmem:[#allocation2 + $0x8c] sm:$0xf] %v1378
          %1507 = vst [vmem:[#allocation2 + $0x90] sm:$0xf] %v1379
          %1508 = vst [vmem:[#allocation2 + $0x94] sm:$0xf] %v1380
          %1509 = vst [vmem:[#allocation2 + $0x98] sm:$0xf] %v1381
          %1510 = vst [vmem:[#allocation2 + $0x9c] sm:$0xf] %v1382
          %1511 = vst [vmem:[#allocation2 + $0xa0] sm:$0xf] %v1383
          %1512 = vst [vmem:[#allocation2 + $0xa4] sm:$0xf] %v1384
          %1513 = vst [vmem:[#allocation2 + $0xa8] sm:$0xf] %v1385
          %1514 = vst [vmem:[#allocation2 + $0xac] sm:$0xf] %v1386
          %1515 = vst [vmem:[#allocation2 + $0xb0] sm:$0xf] %v1387
          %1516 = vst [vmem:[#allocation2 + $0xb4] sm:$0xf] %v1388
          %1517 = vst [vmem:[#allocation2 + $0xb8] sm:$0xf] %v1389
          %1518 = vst [vmem:[#allocation2 + $0xbc] sm:$0xf] %v1390
          %1519 = vst [vmem:[#allocation2 + $0xc0] sm:$0xf] %v1391
          %1520 = vst [vmem:[#allocation2 + $0xc4] sm:$0xf] %v1392
          %1521 = vst [vmem:[#allocation2 + $0xc8] sm:$0xf] %v1393
          %1522 = vst [vmem:[#allocation2 + $0xcc] sm:$0xf] %v1394
          %1523 = vst [vmem:[#allocation2 + $0xd0] sm:$0xf] %v1395
          %1524 = vst [vmem:[#allocation2 + $0xd4] sm:$0xf] %v1396
          %1525 = vst [vmem:[#allocation2 + $0xd8] sm:$0xf] %v1397
          %1526 = vst [vmem:[#allocation2 + $0xdc] sm:$0xf] %v1398
          %1527 = vst [vmem:[#allocation2 + $0xe0] sm:$0xf] %v1399
          %1528 = vst [vmem:[#allocation2 + $0xe4] sm:$0xf] %v1400
          %1529 = vst [vmem:[#allocation2 + $0xe8] sm:$0xf] %v1401
          %1530 = vst [vmem:[#allocation2 + $0xec] sm:$0xf] %v1402
          %1531 = vst [vmem:[#allocation2 + $0xf0] sm:$0xf] %v1403
          %1532 = vst [vmem:[#allocation2 + $0xf4] sm:$0xf] %v1404
          %1533 = vst [vmem:[#allocation2 + $0xf8] sm:$0xf] %v1405
          %1534 = vst [vmem:[#allocation2 + $0xfc] sm:$0xf] %v1406
          %v1535 = vld [vmem:[%s4] sm:$0x1]
          %v1537 = vlaneseq
          %v1538 = vshrl.u32 %v1537, 7
          %v1539 = vsub.s32 0, %v1538
          %v1540 = vrot.slane %v1535, %v1539
          %1542 = vst [vmem:[#allocation3] sm:$0xff] %v1540
          %1543 = vst [vmem:[#allocation3 + $0x8] sm:$0xff] %v1540
          %1544 = vst [vmem:[#allocation3 + $0x10] sm:$0xff] %v1540
          %1545 = vst [vmem:[#allocation3 + $0x18] sm:$0xff] %v1540
          %1546 = vst [vmem:[#allocation3 + $0x20] sm:$0xff] %v1540
          %1547 = vst [vmem:[#allocation3 + $0x28] sm:$0xff] %v1540
          %1548 = vst [vmem:[#allocation3 + $0x30] sm:$0xff] %v1540
          %1549 = vst [vmem:[#allocation3 + $0x38] sm:$0xff] %v1540
          %1550 = vst [vmem:[#allocation3 + $0x40] sm:$0xff] %v1540
          %1551 = vst [vmem:[#allocation3 + $0x48] sm:$0xff] %v1540
          %1552 = vst [vmem:[#allocation3 + $0x50] sm:$0xff] %v1540
          %1553 = vst [vmem:[#allocation3 + $0x58] sm:$0xff] %v1540
          %1554 = vst [vmem:[#allocation3 + $0x60] sm:$0xff] %v1540
          %1555 = vst [vmem:[#allocation3 + $0x68] sm:$0xff] %v1540
          %1556 = vst [vmem:[#allocation3 + $0x70] sm:$0xff] %v1540
          %1557 = vst [vmem:[#allocation3 + $0x78] sm:$0xff] %v1540
          %1558 = vst [vmem:[#allocation3 + $0x80] sm:$0xff] %v1540
          %1559 = vst [vmem:[#allocation3 + $0x88] sm:$0xff] %v1540
          %1560 = vst [vmem:[#allocation3 + $0x90] sm:$0xff] %v1540
          %1561 = vst [vmem:[#allocation3 + $0x98] sm:$0xff] %v1540
          %1562 = vst [vmem:[#allocation3 + $0xa0] sm:$0xff] %v1540
          %1563 = vst [vmem:[#allocation3 + $0xa8] sm:$0xff] %v1540
          %1564 = vst [vmem:[#allocation3 + $0xb0] sm:$0xff] %v1540
          %1565 = vst [vmem:[#allocation3 + $0xb8] sm:$0xff] %v1540
          %1566 = vst [vmem:[#allocation3 + $0xc0] sm:$0xff] %v1540
          %1567 = vst [vmem:[#allocation3 + $0xc8] sm:$0xff] %v1540
          %1568 = vst [vmem:[#allocation3 + $0xd0] sm:$0xff] %v1540
          %1569 = vst [vmem:[#allocation3 + $0xd8] sm:$0xff] %v1540
          %1570 = vst [vmem:[#allocation3 + $0xe0] sm:$0xff] %v1540
          %1571 = vst [vmem:[#allocation3 + $0xe8] sm:$0xff] %v1540
          %1572 = vst [vmem:[#allocation3 + $0xf0] sm:$0xff] %v1540
          %1573 = vst [vmem:[#allocation3 + $0xf8] sm:$0xff] %v1540
          %1574 = vst [vmem:[#allocation3 + $0x100] sm:$0xff] %v1540
          %1575 = vst [vmem:[#allocation3 + $0x108] sm:$0xff] %v1540
          %1576 = vst [vmem:[#allocation3 + $0x110] sm:$0xff] %v1540
          %1577 = vst [vmem:[#allocation3 + $0x118] sm:$0xff] %v1540
          %1578 = vst [vmem:[#allocation3 + $0x120] sm:$0xff] %v1540
          %1579 = vst [vmem:[#allocation3 + $0x128] sm:$0xff] %v1540
          %1580 = vst [vmem:[#allocation3 + $0x130] sm:$0xff] %v1540
          %1581 = vst [vmem:[#allocation3 + $0x138] sm:$0xff] %v1540
          %1582 = vst [vmem:[#allocation3 + $0x140] sm:$0xff] %v1540
          %1583 = vst [vmem:[#allocation3 + $0x148] sm:$0xff] %v1540
          %1584 = vst [vmem:[#allocation3 + $0x150] sm:$0xff] %v1540
          %1585 = vst [vmem:[#allocation3 + $0x158] sm:$0xff] %v1540
          %1586 = vst [vmem:[#allocation3 + $0x160] sm:$0xff] %v1540
          %1587 = vst [vmem:[#allocation3 + $0x168] sm:$0xff] %v1540
          %1588 = vst [vmem:[#allocation3 + $0x170] sm:$0xff] %v1540
          %1589 = vst [vmem:[#allocation3 + $0x178] sm:$0xff] %v1540
          %1590 = vst [vmem:[#allocation3 + $0x180] sm:$0xff] %v1540
          %1591 = vst [vmem:[#allocation3 + $0x188] sm:$0xff] %v1540
          %1592 = vst [vmem:[#allocation3 + $0x190] sm:$0xff] %v1540
          %1593 = vst [vmem:[#allocation3 + $0x198] sm:$0xff] %v1540
          %1594 = vst [vmem:[#allocation3 + $0x1a0] sm:$0xff] %v1540
          %1595 = vst [vmem:[#allocation3 + $0x1a8] sm:$0xff] %v1540
          %1596 = vst [vmem:[#allocation3 + $0x1b0] sm:$0xff] %v1540
          %1597 = vst [vmem:[#allocation3 + $0x1b8] sm:$0xff] %v1540
          %1598 = vst [vmem:[#allocation3 + $0x1c0] sm:$0xff] %v1540
          %1599 = vst [vmem:[#allocation3 + $0x1c8] sm:$0xff] %v1540
          %1600 = vst [vmem:[#allocation3 + $0x1d0] sm:$0xff] %v1540
          %1601 = vst [vmem:[#allocation3 + $0x1d8] sm:$0xff] %v1540
          %1602 = vst [vmem:[#allocation3 + $0x1e0] sm:$0xff] %v1540
          %1603 = vst [vmem:[#allocation3 + $0x1e8] sm:$0xff] %v1540
          %1604 = vst [vmem:[#allocation3 + $0x1f0] sm:$0xff] %v1540
          %1605 = vst [vmem:[#allocation3 + $0x1f8] sm:$0xff] %v1540
        $region64: #{tpu_custom_call.1} parent=47 // pred_fallthru
          _
        %v1606 = vld [vmem:[#allocation2] sm:$0xf]
        %v1607 = vld [vmem:[#allocation2 + $0x4] sm:$0xf]
        %v1608 = vld [vmem:[#allocation2 + $0x8] sm:$0xf]
        %v1609 = vld [vmem:[#allocation2 + $0xc] sm:$0xf]
        %v1610 = vld [vmem:[#allocation2 + $0x10] sm:$0xf]
        %v1611 = vld [vmem:[#allocation2 + $0x14] sm:$0xf]
        %v1612 = vld [vmem:[#allocation2 + $0x18] sm:$0xf]
        %v1613 = vld [vmem:[#allocation2 + $0x1c] sm:$0xf]
        %v1614 = vld [vmem:[#allocation2 + $0x20] sm:$0xf]
        %v1615 = vld [vmem:[#allocation2 + $0x24] sm:$0xf]
        %v1616 = vld [vmem:[#allocation2 + $0x28] sm:$0xf]
        %v1617 = vld [vmem:[#allocation2 + $0x2c] sm:$0xf]
        %v1618 = vld [vmem:[#allocation2 + $0x30] sm:$0xf]
        %v1619 = vld [vmem:[#allocation2 + $0x34] sm:$0xf]
        %v1620 = vld [vmem:[#allocation2 + $0x38] sm:$0xf]
        %v1621 = vld [vmem:[#allocation2 + $0x3c] sm:$0xf]
        %v1622 = vld [vmem:[#allocation2 + $0x40] sm:$0xf]
        %v1623 = vld [vmem:[#allocation2 + $0x44] sm:$0xf]
        %v1624 = vld [vmem:[#allocation2 + $0x48] sm:$0xf]
        %v1625 = vld [vmem:[#allocation2 + $0x4c] sm:$0xf]
        %v1626 = vld [vmem:[#allocation2 + $0x50] sm:$0xf]
        %v1627 = vld [vmem:[#allocation2 + $0x54] sm:$0xf]
        %v1628 = vld [vmem:[#allocation2 + $0x58] sm:$0xf]
        %v1629 = vld [vmem:[#allocation2 + $0x5c] sm:$0xf]
        %v1630 = vld [vmem:[#allocation2 + $0x60] sm:$0xf]
        %v1631 = vld [vmem:[#allocation2 + $0x64] sm:$0xf]
        %v1632 = vld [vmem:[#allocation2 + $0x68] sm:$0xf]
        %v1633 = vld [vmem:[#allocation2 + $0x6c] sm:$0xf]
        %v1634 = vld [vmem:[#allocation2 + $0x70] sm:$0xf]
        %v1635 = vld [vmem:[#allocation2 + $0x74] sm:$0xf]
        %v1636 = vld [vmem:[#allocation2 + $0x78] sm:$0xf]
        %v1637 = vld [vmem:[#allocation2 + $0x7c] sm:$0xf]
        %v1638 = vld [vmem:[#allocation2 + $0x80] sm:$0xf]
        %v1639 = vld [vmem:[#allocation2 + $0x84] sm:$0xf]
        %v1640 = vld [vmem:[#allocation2 + $0x88] sm:$0xf]
        %v1641 = vld [vmem:[#allocation2 + $0x8c] sm:$0xf]
        %v1642 = vld [vmem:[#allocation2 + $0x90] sm:$0xf]
        %v1643 = vld [vmem:[#allocation2 + $0x94] sm:$0xf]
        %v1644 = vld [vmem:[#allocation2 + $0x98] sm:$0xf]
        %v1645 = vld [vmem:[#allocation2 + $0x9c] sm:$0xf]
        %v1646 = vld [vmem:[#allocation2 + $0xa0] sm:$0xf]
        %v1647 = vld [vmem:[#allocation2 + $0xa4] sm:$0xf]
        %v1648 = vld [vmem:[#allocation2 + $0xa8] sm:$0xf]
        %v1649 = vld [vmem:[#allocation2 + $0xac] sm:$0xf]
        %v1650 = vld [vmem:[#allocation2 + $0xb0] sm:$0xf]
        %v1651 = vld [vmem:[#allocation2 + $0xb4] sm:$0xf]
        %v1652 = vld [vmem:[#allocation2 + $0xb8] sm:$0xf]
        %v1653 = vld [vmem:[#allocation2 + $0xbc] sm:$0xf]
        %v1654 = vld [vmem:[#allocation2 + $0xc0] sm:$0xf]
        %v1655 = vld [vmem:[#allocation2 + $0xc4] sm:$0xf]
        %v1656 = vld [vmem:[#allocation2 + $0xc8] sm:$0xf]
        %v1657 = vld [vmem:[#allocation2 + $0xcc] sm:$0xf]
        %v1658 = vld [vmem:[#allocation2 + $0xd0] sm:$0xf]
        %v1659 = vld [vmem:[#allocation2 + $0xd4] sm:$0xf]
        %v1660 = vld [vmem:[#allocation2 + $0xd8] sm:$0xf]
        %v1661 = vld [vmem:[#allocation2 + $0xdc] sm:$0xf]
        %v1662 = vld [vmem:[#allocation2 + $0xe0] sm:$0xf]
        %v1663 = vld [vmem:[#allocation2 + $0xe4] sm:$0xf]
        %v1664 = vld [vmem:[#allocation2 + $0xe8] sm:$0xf]
        %v1665 = vld [vmem:[#allocation2 + $0xec] sm:$0xf]
        %v1666 = vld [vmem:[#allocation2 + $0xf0] sm:$0xf]
        %v1667 = vld [vmem:[#allocation2 + $0xf4] sm:$0xf]
        %v1668 = vld [vmem:[#allocation2 + $0xf8] sm:$0xf]
        %v1669 = vld [vmem:[#allocation2 + $0xfc] sm:$0xf]
        %v1670 = vld [vmem:[#allocation7] sm:$0xff]
        %v1671 = vld [vmem:[#allocation7 + $0x8] sm:$0xff]
        %v1672 = vld [vmem:[#allocation7 + $0x10] sm:$0xff]
        %v1673 = vld [vmem:[#allocation7 + $0x18] sm:$0xff]
        %v1674 = vld [vmem:[#allocation7 + $0x20] sm:$0xff]
        %v1675 = vld [vmem:[#allocation7 + $0x28] sm:$0xff]
        %v1676 = vld [vmem:[#allocation7 + $0x30] sm:$0xff]
        %v1677 = vld [vmem:[#allocation7 + $0x38] sm:$0xff]
        %v1678 = vld [vmem:[#allocation7 + $0x40] sm:$0xff]
        %v1679 = vld [vmem:[#allocation7 + $0x48] sm:$0xff]
        %v1680 = vld [vmem:[#allocation7 + $0x50] sm:$0xff]
        %v1681 = vld [vmem:[#allocation7 + $0x58] sm:$0xff]
        %v1682 = vld [vmem:[#allocation7 + $0x60] sm:$0xff]
        %v1683 = vld [vmem:[#allocation7 + $0x68] sm:$0xff]
        %v1684 = vld [vmem:[#allocation7 + $0x70] sm:$0xff]
        %v1685 = vld [vmem:[#allocation7 + $0x78] sm:$0xff]
        %v1686 = vld [vmem:[%s373] sm:$0x3]
        %v1688 = vlaneseq
        %v1689 = vshrl.u32 %v1688, 7
        %v1690 = vsub.s32 0, %v1689
        %v1691 = vrot.slane %v1686, %v1690
        %v1692 = vlaneseq
        %v1693 = vshrl.u32 %v1692, 7
        %v1694 = vsub.s32 1, %v1693
        %v1695 = vrot.slane %v1686, %v1694
        %v1762 = vunpack.c.l.b16 %v1606
        %v1763 = vunpack.c.l.b16 %v1607
        %v1764 = vunpack.c.l.b16 %v1608
        %v1765 = vunpack.c.l.b16 %v1609
        %v1766 = vunpack.c.l.b16 %v1610
        %v1767 = vunpack.c.l.b16 %v1611
        %v1768 = vunpack.c.l.b16 %v1612
        %v1769 = vunpack.c.l.b16 %v1613
        %v1770 = vunpack.c.l.b16 %v1614
        %v1771 = vunpack.c.l.b16 %v1615
        %v1772 = vunpack.c.l.b16 %v1616
        %v1773 = vunpack.c.l.b16 %v1617
        %v1774 = vunpack.c.l.b16 %v1618
        %v1775 = vunpack.c.l.b16 %v1619
        %v1776 = vunpack.c.l.b16 %v1620
        %v1777 = vunpack.c.l.b16 %v1621
        %v1778 = vunpack.c.l.b16 %v1622
        %v1779 = vunpack.c.l.b16 %v1623
        %v1780 = vunpack.c.l.b16 %v1624
        %v1781 = vunpack.c.l.b16 %v1625
        %v1782 = vunpack.c.l.b16 %v1626
        %v1783 = vunpack.c.l.b16 %v1627
        %v1784 = vunpack.c.l.b16 %v1628
        %v1785 = vunpack.c.l.b16 %v1629
        %v1786 = vunpack.c.l.b16 %v1630
        %v1787 = vunpack.c.l.b16 %v1631
        %v1788 = vunpack.c.l.b16 %v1632
        %v1789 = vunpack.c.l.b16 %v1633
        %v1790 = vunpack.c.l.b16 %v1634
        %v1791 = vunpack.c.l.b16 %v1635
        %v1792 = vunpack.c.l.b16 %v1636
        %v1793 = vunpack.c.l.b16 %v1637
        %v1794 = vunpack.c.l.b16 %v1638
        %v1795 = vunpack.c.l.b16 %v1639
        %v1796 = vunpack.c.l.b16 %v1640
        %v1797 = vunpack.c.l.b16 %v1641
        %v1798 = vunpack.c.l.b16 %v1642
        %v1799 = vunpack.c.l.b16 %v1643
        %v1800 = vunpack.c.l.b16 %v1644
        %v1801 = vunpack.c.l.b16 %v1645
        %v1802 = vunpack.c.l.b16 %v1646
        %v1803 = vunpack.c.l.b16 %v1647
        %v1804 = vunpack.c.l.b16 %v1648
        %v1805 = vunpack.c.l.b16 %v1649
        %v1806 = vunpack.c.l.b16 %v1650
        %v1807 = vunpack.c.l.b16 %v1651
        %v1808 = vunpack.c.l.b16 %v1652
        %v1809 = vunpack.c.l.b16 %v1653
        %v1810 = vunpack.c.l.b16 %v1654
        %v1811 = vunpack.c.l.b16 %v1655
        %v1812 = vunpack.c.l.b16 %v1656
        %v1813 = vunpack.c.l.b16 %v1657
        %v1814 = vunpack.c.l.b16 %v1658
        %v1815 = vunpack.c.l.b16 %v1659
        %v1816 = vunpack.c.l.b16 %v1660
        %v1817 = vunpack.c.l.b16 %v1661
        %v1818 = vunpack.c.l.b16 %v1662
        %v1819 = vunpack.c.l.b16 %v1663
        %v1820 = vunpack.c.l.b16 %v1664
        %v1821 = vunpack.c.l.b16 %v1665
        %v1822 = vunpack.c.l.b16 %v1666
        %v1823 = vunpack.c.l.b16 %v1667
        %v1824 = vunpack.c.l.b16 %v1668
        %v1825 = vunpack.c.l.b16 %v1669
        %v1826 = vpack.c.b16 %v1763, %v1762
        %v1827 = vpack.c.b16 %v1765, %v1764
        %v1828 = vpack.c.b16 %v1767, %v1766
        %v1829 = vpack.c.b16 %v1769, %v1768
        %v1830 = vpack.c.b16 %v1771, %v1770
        %v1831 = vpack.c.b16 %v1773, %v1772
        %v1832 = vpack.c.b16 %v1775, %v1774
        %v1833 = vpack.c.b16 %v1777, %v1776
        %v1834 = vpack.c.b16 %v1779, %v1778
        %v1835 = vpack.c.b16 %v1781, %v1780
        %v1836 = vpack.c.b16 %v1783, %v1782
        %v1837 = vpack.c.b16 %v1785, %v1784
        %v1838 = vpack.c.b16 %v1787, %v1786
        %v1839 = vpack.c.b16 %v1789, %v1788
        %v1840 = vpack.c.b16 %v1791, %v1790
        %v1841 = vpack.c.b16 %v1793, %v1792
        %v1842 = vpack.c.b16 %v1795, %v1794
        %v1843 = vpack.c.b16 %v1797, %v1796
        %v1844 = vpack.c.b16 %v1799, %v1798
        %v1845 = vpack.c.b16 %v1801, %v1800
        %v1846 = vpack.c.b16 %v1803, %v1802
        %v1847 = vpack.c.b16 %v1805, %v1804
        %v1848 = vpack.c.b16 %v1807, %v1806
        %v1849 = vpack.c.b16 %v1809, %v1808
        %v1850 = vpack.c.b16 %v1811, %v1810
        %v1851 = vpack.c.b16 %v1813, %v1812
        %v1852 = vpack.c.b16 %v1815, %v1814
        %v1853 = vpack.c.b16 %v1817, %v1816
        %v1854 = vpack.c.b16 %v1819, %v1818
        %v1855 = vpack.c.b16 %v1821, %v1820
        %v1856 = vpack.c.b16 %v1823, %v1822
        %v1857 = vpack.c.b16 %v1825, %v1824
        %v1906 = vunpack.c.l.b16 %v1670
        %v1907 = vunpack.c.h.b16 %v1670
        %v1908 = vunpack.c.l.b16 %v1671
        %v1909 = vunpack.c.h.b16 %v1671
        %v1910 = vunpack.c.l.b16 %v1672
        %v1911 = vunpack.c.h.b16 %v1672
        %v1912 = vunpack.c.l.b16 %v1673
        %v1913 = vunpack.c.h.b16 %v1673
        %v1914 = vunpack.c.l.b16 %v1674
        %v1915 = vunpack.c.h.b16 %v1674
        %v1916 = vunpack.c.l.b16 %v1675
        %v1917 = vunpack.c.h.b16 %v1675
        %v1918 = vunpack.c.l.b16 %v1676
        %v1919 = vunpack.c.h.b16 %v1676
        %v1920 = vunpack.c.l.b16 %v1677
        %v1921 = vunpack.c.h.b16 %v1677
        %v1922 = vunpack.c.l.b16 %v1678
        %v1923 = vunpack.c.h.b16 %v1678
        %v1924 = vunpack.c.l.b16 %v1679
        %v1925 = vunpack.c.h.b16 %v1679
        %v1926 = vunpack.c.l.b16 %v1680
        %v1927 = vunpack.c.h.b16 %v1680
        %v1928 = vunpack.c.l.b16 %v1681
        %v1929 = vunpack.c.h.b16 %v1681
        %v1930 = vunpack.c.l.b16 %v1682
        %v1931 = vunpack.c.h.b16 %v1682
        %v1932 = vunpack.c.l.b16 %v1683
        %v1933 = vunpack.c.h.b16 %v1683
        %v1934 = vunpack.c.l.b16 %v1684
        %v1935 = vunpack.c.h.b16 %v1684
        %v1936 = vunpack.c.l.b16 %v1685
        %v1937 = vunpack.c.h.b16 %v1685
        %v1938 = vpack.c.b16 %v1908, %v1906
        %v1939 = vpack.c.b16 %v1909, %v1907
        %v1940 = vpack.c.b16 %v1912, %v1910
        %v1941 = vpack.c.b16 %v1913, %v1911
        %v1942 = vpack.c.b16 %v1916, %v1914
        %v1943 = vpack.c.b16 %v1917, %v1915
        %v1944 = vpack.c.b16 %v1920, %v1918
        %v1945 = vpack.c.b16 %v1921, %v1919
        %v1946 = vpack.c.b16 %v1924, %v1922
        %v1947 = vpack.c.b16 %v1925, %v1923
        %v1948 = vpack.c.b16 %v1928, %v1926
        %v1949 = vpack.c.b16 %v1929, %v1927
        %v1950 = vpack.c.b16 %v1932, %v1930
        %v1951 = vpack.c.b16 %v1933, %v1931
        %v1952 = vpack.c.b16 %v1936, %v1934
        %v1953 = vpack.c.b16 %v1937, %v1935
        %1970 = vmatprep.subr.bf16.mxu0 %v1953
        %1971 = vmatpush1.bf16.msra.mxu0 %v1952
        %1972 = vmatprep.subr.bf16.mxu0 %v1951
        %1973 = vmatpush1.bf16.msra.mxu0 %v1950
        %1974 = vmatprep.subr.bf16.mxu0 %v1949
        %1975 = vmatpush1.bf16.msra.mxu0 %v1948
        %1976 = vmatprep.subr.bf16.mxu0 %v1947
        %1977 = vmatpush1.bf16.msra.mxu0 %v1946
        %1978 = vmatprep.subr.bf16.mxu0 %v1945
        %1979 = vmatpush1.bf16.msra.mxu0 %v1944
        %1980 = vmatprep.subr.bf16.mxu0 %v1943
        %1981 = vmatpush1.bf16.msra.mxu0 %v1942
        %1982 = vmatprep.subr.bf16.mxu0 %v1941
        %1983 = vmatpush1.bf16.msra.mxu0 %v1940
        %1984 = vmatprep.subr.bf16.mxu0 %v1939
        %1985 = vmatpush1.bf16.msra.mxu0 %v1938
        %1986 = vmatprep.subr.bf16.mxu0 0
        %1987 = vmatpush2.bf16.msra.mxu0 0
        %1988 = vmatprep.subr.bf16.mxu0 0
        %1989 = vmatpush2.bf16.msra.mxu0 0
        %1990 = vmatprep.subr.bf16.mxu0 0
        %1991 = vmatpush2.bf16.msra.mxu0 0
        %1992 = vmatprep.subr.bf16.mxu0 0
        %1993 = vmatpush2.bf16.msra.mxu0 0
        %1994 = vmatprep.subr.bf16.mxu0 0
        %1995 = vmatpush2.bf16.msra.mxu0 0
        %1996 = vmatprep.subr.bf16.mxu0 0
        %1997 = vmatpush2.bf16.msra.mxu0 0
        %1998 = vmatprep.subr.bf16.mxu0 0
        %1999 = vmatpush2.bf16.msra.mxu0 0
        %2000 = vmatprep.subr.bf16.mxu0 0
        %2001 = vmatpush2.bf16.msra.mxu0 0
        %2002 = vmatprep.mubr.bf16.mxu0 0
        %2003 = vmatmul.mubr.bf16.gmra.mxu0 %v1826
        %v2004 = vpop.f32.mrf.mxu0
        %v2005 = vadd.f32 %v1691, %v2004
        %v2006 = vpop.f32.mrf.mxu0
        %v2007 = vadd.f32 %v1695, %v2006
        %v2008 = vpop.f32.mrf.mxu0
        %v2009 = vadd.f32 %v1691, %v2008
        %v2010 = vpop.f32.mrf.mxu0
        %v2011 = vadd.f32 %v1695, %v2010
        %2012 = vmatprep.mubr.bf16.mxu0 0
        %2013 = vmatmul.mubr.bf16.gmra.mxu0 %v1827
        %v2014 = vpop.f32.mrf.mxu0
        %v2015 = vadd.f32 %v1691, %v2014
        %v2016 = vpop.f32.mrf.mxu0
        %v2017 = vadd.f32 %v1695, %v2016
        %v2018 = vpop.f32.mrf.mxu0
        %v2019 = vadd.f32 %v1691, %v2018
        %v2020 = vpop.f32.mrf.mxu0
        %v2021 = vadd.f32 %v1695, %v2020
        %2022 = vmatprep.mubr.bf16.mxu0 0
        %2023 = vmatmul.mubr.bf16.gmra.mxu0 %v1828
        %v2024 = vpop.f32.mrf.mxu0
        %v2025 = vadd.f32 %v1691, %v2024
        %v2026 = vpop.f32.mrf.mxu0
        %v2027 = vadd.f32 %v1695, %v2026
        %v2028 = vpop.f32.mrf.mxu0
        %v2029 = vadd.f32 %v1691, %v2028
        %v2030 = vpop.f32.mrf.mxu0
        %v2031 = vadd.f32 %v1695, %v2030
        %2032 = vmatprep.mubr.bf16.mxu0 0
        %2033 = vmatmul.mubr.bf16.gmra.mxu0 %v1829
        %v2034 = vpop.f32.mrf.mxu0
        %v2035 = vadd.f32 %v1691, %v2034
        %v2036 = vpop.f32.mrf.mxu0
        %v2037 = vadd.f32 %v1695, %v2036
        %v2038 = vpop.f32.mrf.mxu0
        %v2039 = vadd.f32 %v1691, %v2038
        %v2040 = vpop.f32.mrf.mxu0
        %v2041 = vadd.f32 %v1695, %v2040
        %2042 = vmatprep.mubr.bf16.mxu0 0
        %2043 = vmatmul.mubr.bf16.gmra.mxu0 %v1830
        %v2044 = vpop.f32.mrf.mxu0
        %v2045 = vadd.f32 %v1691, %v2044
        %v2046 = vpop.f32.mrf.mxu0
        %v2047 = vadd.f32 %v1695, %v2046
        %v2048 = vpop.f32.mrf.mxu0
        %v2049 = vadd.f32 %v1691, %v2048
        %v2050 = vpop.f32.mrf.mxu0
        %v2051 = vadd.f32 %v1695, %v2050
        %2052 = vmatprep.mubr.bf16.mxu0 0
        %2053 = vmatmul.mubr.bf16.gmra.mxu0 %v1831
        %v2054 = vpop.f32.mrf.mxu0
        %v2055 = vadd.f32 %v1691, %v2054
        %v2056 = vpop.f32.mrf.mxu0
        %v2057 = vadd.f32 %v1695, %v2056
        %v2058 = vpop.f32.mrf.mxu0
        %v2059 = vadd.f32 %v1691, %v2058
        %v2060 = vpop.f32.mrf.mxu0
        %v2061 = vadd.f32 %v1695, %v2060
        %2062 = vmatprep.mubr.bf16.mxu0 0
        %2063 = vmatmul.mubr.bf16.gmra.mxu0 %v1832
        %v2064 = vpop.f32.mrf.mxu0
        %v2065 = vadd.f32 %v1691, %v2064
        %v2066 = vpop.f32.mrf.mxu0
        %v2067 = vadd.f32 %v1695, %v2066
        %v2068 = vpop.f32.mrf.mxu0
        %v2069 = vadd.f32 %v1691, %v2068
        %v2070 = vpop.f32.mrf.mxu0
        %v2071 = vadd.f32 %v1695, %v2070
        %2072 = vmatprep.mubr.bf16.mxu0 0
        %2073 = vmatmul.mubr.bf16.gmra.mxu0 %v1833
        %v2074 = vpop.f32.mrf.mxu0
        %v2075 = vadd.f32 %v1691, %v2074
        %v2076 = vpop.f32.mrf.mxu0
        %v2077 = vadd.f32 %v1695, %v2076
        %v2078 = vpop.f32.mrf.mxu0
        %v2079 = vadd.f32 %v1691, %v2078
        %v2080 = vpop.f32.mrf.mxu0
        %v2081 = vadd.f32 %v1695, %v2080
        %2082 = vmatprep.mubr.bf16.mxu0 0
        %2083 = vmatmul.mubr.bf16.gmra.mxu0 %v1834
        %v2084 = vpop.f32.mrf.mxu0
        %v2085 = vadd.f32 %v1691, %v2084
        %v2086 = vpop.f32.mrf.mxu0
        %v2087 = vadd.f32 %v1695, %v2086
        %v2088 = vpop.f32.mrf.mxu0
        %v2089 = vadd.f32 %v1691, %v2088
        %v2090 = vpop.f32.mrf.mxu0
        %v2091 = vadd.f32 %v1695, %v2090
        %2092 = vmatprep.mubr.bf16.mxu0 0
        %2093 = vmatmul.mubr.bf16.gmra.mxu0 %v1835
        %v2094 = vpop.f32.mrf.mxu0
        %v2095 = vadd.f32 %v1691, %v2094
        %v2096 = vpop.f32.mrf.mxu0
        %v2097 = vadd.f32 %v1695, %v2096
        %v2098 = vpop.f32.mrf.mxu0
        %v2099 = vadd.f32 %v1691, %v2098
        %v2100 = vpop.f32.mrf.mxu0
        %v2101 = vadd.f32 %v1695, %v2100
        %2102 = vmatprep.mubr.bf16.mxu0 0
        %2103 = vmatmul.mubr.bf16.gmra.mxu0 %v1836
        %v2104 = vpop.f32.mrf.mxu0
        %v2105 = vadd.f32 %v1691, %v2104
        %v2106 = vpop.f32.mrf.mxu0
        %v2107 = vadd.f32 %v1695, %v2106
        %v2108 = vpop.f32.mrf.mxu0
        %v2109 = vadd.f32 %v1691, %v2108
        %v2110 = vpop.f32.mrf.mxu0
        %v2111 = vadd.f32 %v1695, %v2110
        %2112 = vmatprep.mubr.bf16.mxu0 0
        %2113 = vmatmul.mubr.bf16.gmra.mxu0 %v1837
        %v2114 = vpop.f32.mrf.mxu0
        %v2115 = vadd.f32 %v1691, %v2114
        %v2116 = vpop.f32.mrf.mxu0
        %v2117 = vadd.f32 %v1695, %v2116
        %v2118 = vpop.f32.mrf.mxu0
        %v2119 = vadd.f32 %v1691, %v2118
        %v2120 = vpop.f32.mrf.mxu0
        %v2121 = vadd.f32 %v1695, %v2120
        %2122 = vmatprep.mubr.bf16.mxu0 0
        %2123 = vmatmul.mubr.bf16.gmra.mxu0 %v1838
        %v2124 = vpop.f32.mrf.mxu0
        %v2125 = vadd.f32 %v1691, %v2124
        %v2126 = vpop.f32.mrf.mxu0
        %v2127 = vadd.f32 %v1695, %v2126
        %v2128 = vpop.f32.mrf.mxu0
        %v2129 = vadd.f32 %v1691, %v2128
        %v2130 = vpop.f32.mrf.mxu0
        %v2131 = vadd.f32 %v1695, %v2130
        %2132 = vmatprep.mubr.bf16.mxu0 0
        %2133 = vmatmul.mubr.bf16.gmra.mxu0 %v1839
        %v2134 = vpop.f32.mrf.mxu0
        %v2135 = vadd.f32 %v1691, %v2134
        %v2136 = vpop.f32.mrf.mxu0
        %v2137 = vadd.f32 %v1695, %v2136
        %v2138 = vpop.f32.mrf.mxu0
        %v2139 = vadd.f32 %v1691, %v2138
        %v2140 = vpop.f32.mrf.mxu0
        %v2141 = vadd.f32 %v1695, %v2140
        %2142 = vmatprep.mubr.bf16.mxu0 0
        %2143 = vmatmul.mubr.bf16.gmra.mxu0 %v1840
        %v2144 = vpop.f32.mrf.mxu0
        %v2145 = vadd.f32 %v1691, %v2144
        %v2146 = vpop.f32.mrf.mxu0
        %v2147 = vadd.f32 %v1695, %v2146
        %v2148 = vpop.f32.mrf.mxu0
        %v2149 = vadd.f32 %v1691, %v2148
        %v2150 = vpop.f32.mrf.mxu0
        %v2151 = vadd.f32 %v1695, %v2150
        %2152 = vmatprep.mubr.bf16.mxu0 0
        %2153 = vmatmul.mubr.bf16.gmra.mxu0 %v1841
        %v2154 = vpop.f32.mrf.mxu0
        %v2155 = vadd.f32 %v1691, %v2154
        %v2156 = vpop.f32.mrf.mxu0
        %v2157 = vadd.f32 %v1695, %v2156
        %v2158 = vpop.f32.mrf.mxu0
        %v2159 = vadd.f32 %v1691, %v2158
        %v2160 = vpop.f32.mrf.mxu0
        %v2161 = vadd.f32 %v1695, %v2160
        %2162 = vmatprep.mubr.bf16.mxu0 0
        %2163 = vmatmul.mubr.bf16.gmra.mxu0 %v1842
        %v2164 = vpop.f32.mrf.mxu0
        %v2165 = vadd.f32 %v1691, %v2164
        %v2166 = vpop.f32.mrf.mxu0
        %v2167 = vadd.f32 %v1695, %v2166
        %v2168 = vpop.f32.mrf.mxu0
        %v2169 = vadd.f32 %v1691, %v2168
        %v2170 = vpop.f32.mrf.mxu0
        %v2171 = vadd.f32 %v1695, %v2170
        %2172 = vmatprep.mubr.bf16.mxu0 0
        %2173 = vmatmul.mubr.bf16.gmra.mxu0 %v1843
        %v2174 = vpop.f32.mrf.mxu0
        %v2175 = vadd.f32 %v1691, %v2174
        %v2176 = vpop.f32.mrf.mxu0
        %v2177 = vadd.f32 %v1695, %v2176
        %v2178 = vpop.f32.mrf.mxu0
        %v2179 = vadd.f32 %v1691, %v2178
        %v2180 = vpop.f32.mrf.mxu0
        %v2181 = vadd.f32 %v1695, %v2180
        %2182 = vmatprep.mubr.bf16.mxu0 0
        %2183 = vmatmul.mubr.bf16.gmra.mxu0 %v1844
        %v2184 = vpop.f32.mrf.mxu0
        %v2185 = vadd.f32 %v1691, %v2184
        %v2186 = vpop.f32.mrf.mxu0
        %v2187 = vadd.f32 %v1695, %v2186
        %v2188 = vpop.f32.mrf.mxu0
        %v2189 = vadd.f32 %v1691, %v2188
        %v2190 = vpop.f32.mrf.mxu0
        %v2191 = vadd.f32 %v1695, %v2190
        %2192 = vmatprep.mubr.bf16.mxu0 0
        %2193 = vmatmul.mubr.bf16.gmra.mxu0 %v1845
        %v2194 = vpop.f32.mrf.mxu0
        %v2195 = vadd.f32 %v1691, %v2194
        %v2196 = vpop.f32.mrf.mxu0
        %v2197 = vadd.f32 %v1695, %v2196
        %v2198 = vpop.f32.mrf.mxu0
        %v2199 = vadd.f32 %v1691, %v2198
        %v2200 = vpop.f32.mrf.mxu0
        %v2201 = vadd.f32 %v1695, %v2200
        %2202 = vmatprep.mubr.bf16.mxu0 0
        %2203 = vmatmul.mubr.bf16.gmra.mxu0 %v1846
        %v2204 = vpop.f32.mrf.mxu0
        %v2205 = vadd.f32 %v1691, %v2204
        %v2206 = vpop.f32.mrf.mxu0
        %v2207 = vadd.f32 %v1695, %v2206
        %v2208 = vpop.f32.mrf.mxu0
        %v2209 = vadd.f32 %v1691, %v2208
        %v2210 = vpop.f32.mrf.mxu0
        %v2211 = vadd.f32 %v1695, %v2210
        %2212 = vmatprep.mubr.bf16.mxu0 0
        %2213 = vmatmul.mubr.bf16.gmra.mxu0 %v1847
        %v2214 = vpop.f32.mrf.mxu0
        %v2215 = vadd.f32 %v1691, %v2214
        %v2216 = vpop.f32.mrf.mxu0
        %v2217 = vadd.f32 %v1695, %v2216
        %v2218 = vpop.f32.mrf.mxu0
        %v2219 = vadd.f32 %v1691, %v2218
        %v2220 = vpop.f32.mrf.mxu0
        %v2221 = vadd.f32 %v1695, %v2220
        %2222 = vmatprep.mubr.bf16.mxu0 0
        %2223 = vmatmul.mubr.bf16.gmra.mxu0 %v1848
        %v2224 = vpop.f32.mrf.mxu0
        %v2225 = vadd.f32 %v1691, %v2224
        %v2226 = vpop.f32.mrf.mxu0
        %v2227 = vadd.f32 %v1695, %v2226
        %v2228 = vpop.f32.mrf.mxu0
        %v2229 = vadd.f32 %v1691, %v2228
        %v2230 = vpop.f32.mrf.mxu0
        %v2231 = vadd.f32 %v1695, %v2230
        %2232 = vmatprep.mubr.bf16.mxu0 0
        %2233 = vmatmul.mubr.bf16.gmra.mxu0 %v1849
        %v2234 = vpop.f32.mrf.mxu0
        %v2235 = vadd.f32 %v1691, %v2234
        %v2236 = vpop.f32.mrf.mxu0
        %v2237 = vadd.f32 %v1695, %v2236
        %v2238 = vpop.f32.mrf.mxu0
        %v2239 = vadd.f32 %v1691, %v2238
        %v2240 = vpop.f32.mrf.mxu0
        %v2241 = vadd.f32 %v1695, %v2240
        %2242 = vmatprep.mubr.bf16.mxu0 0
        %2243 = vmatmul.mubr.bf16.gmra.mxu0 %v1850
        %v2244 = vpop.f32.mrf.mxu0
        %v2245 = vadd.f32 %v1691, %v2244
        %v2246 = vpop.f32.mrf.mxu0
        %v2247 = vadd.f32 %v1695, %v2246
        %v2248 = vpop.f32.mrf.mxu0
        %v2249 = vadd.f32 %v1691, %v2248
        %v2250 = vpop.f32.mrf.mxu0
        %v2251 = vadd.f32 %v1695, %v2250
        %2252 = vmatprep.mubr.bf16.mxu0 0
        %2253 = vmatmul.mubr.bf16.gmra.mxu0 %v1851
        %v2254 = vpop.f32.mrf.mxu0
        %v2255 = vadd.f32 %v1691, %v2254
        %v2256 = vpop.f32.mrf.mxu0
        %v2257 = vadd.f32 %v1695, %v2256
        %v2258 = vpop.f32.mrf.mxu0
        %v2259 = vadd.f32 %v1691, %v2258
        %v2260 = vpop.f32.mrf.mxu0
        %v2261 = vadd.f32 %v1695, %v2260
        %2262 = vmatprep.mubr.bf16.mxu0 0
        %2263 = vmatmul.mubr.bf16.gmra.mxu0 %v1852
        %v2264 = vpop.f32.mrf.mxu0
        %v2265 = vadd.f32 %v1691, %v2264
        %v2266 = vpop.f32.mrf.mxu0
        %v2267 = vadd.f32 %v1695, %v2266
        %v2268 = vpop.f32.mrf.mxu0
        %v2269 = vadd.f32 %v1691, %v2268
        %v2270 = vpop.f32.mrf.mxu0
        %v2271 = vadd.f32 %v1695, %v2270
        %2272 = vmatprep.mubr.bf16.mxu0 0
        %2273 = vmatmul.mubr.bf16.gmra.mxu0 %v1853
        %v2274 = vpop.f32.mrf.mxu0
        %v2275 = vadd.f32 %v1691, %v2274
        %v2276 = vpop.f32.mrf.mxu0
        %v2277 = vadd.f32 %v1695, %v2276
        %v2278 = vpop.f32.mrf.mxu0
        %v2279 = vadd.f32 %v1691, %v2278
        %v2280 = vpop.f32.mrf.mxu0
        %v2281 = vadd.f32 %v1695, %v2280
        %2282 = vmatprep.mubr.bf16.mxu0 0
        %2283 = vmatmul.mubr.bf16.gmra.mxu0 %v1854
        %v2284 = vpop.f32.mrf.mxu0
        %v2285 = vadd.f32 %v1691, %v2284
        %v2286 = vpop.f32.mrf.mxu0
        %v2287 = vadd.f32 %v1695, %v2286
        %v2288 = vpop.f32.mrf.mxu0
        %v2289 = vadd.f32 %v1691, %v2288
        %v2290 = vpop.f32.mrf.mxu0
        %v2291 = vadd.f32 %v1695, %v2290
        %2292 = vmatprep.mubr.bf16.mxu0 0
        %2293 = vmatmul.mubr.bf16.gmra.mxu0 %v1855
        %v2294 = vpop.f32.mrf.mxu0
        %v2295 = vadd.f32 %v1691, %v2294
        %v2296 = vpop.f32.mrf.mxu0
        %v2297 = vadd.f32 %v1695, %v2296
        %v2298 = vpop.f32.mrf.mxu0
        %v2299 = vadd.f32 %v1691, %v2298
        %v2300 = vpop.f32.mrf.mxu0
        %v2301 = vadd.f32 %v1695, %v2300
        %2302 = vmatprep.mubr.bf16.mxu0 0
        %2303 = vmatmul.mubr.bf16.gmra.mxu0 %v1856
        %v2304 = vpop.f32.mrf.mxu0
        %v2305 = vadd.f32 %v1691, %v2304
        %v2306 = vpop.f32.mrf.mxu0
        %v2307 = vadd.f32 %v1695, %v2306
        %v2308 = vpop.f32.mrf.mxu0
        %v2309 = vadd.f32 %v1691, %v2308
        %v2310 = vpop.f32.mrf.mxu0
        %v2311 = vadd.f32 %v1695, %v2310
        %2312 = vmatprep.mubr.bf16.mxu0 0
        %2313 = vmatmul.mubr.bf16.gmra.mxu0 %v1857
        %v2314 = vpop.f32.mrf.mxu0
        %v2315 = vadd.f32 %v1691, %v2314
        %v2316 = vpop.f32.mrf.mxu0
        %v2317 = vadd.f32 %v1695, %v2316
        %v2318 = vpop.f32.mrf.mxu0
        %v2319 = vadd.f32 %v1691, %v2318
        %v2320 = vpop.f32.mrf.mxu0
        %v2321 = vadd.f32 %v1695, %v2320
        %2322 = vdwg.mxu0
        %v2323 = vmax.f32 %v2005, 0.0
        %v2324 = vmax.f32 %v2007, 0.0
        %v2325 = vmax.f32 %v2009, 0.0
        %v2326 = vmax.f32 %v2011, 0.0
        %v2327 = vmax.f32 %v2015, 0.0
        %v2328 = vmax.f32 %v2017, 0.0
        %v2329 = vmax.f32 %v2019, 0.0
        %v2330 = vmax.f32 %v2021, 0.0
        %v2331 = vmax.f32 %v2025, 0.0
        %v2332 = vmax.f32 %v2027, 0.0
        %v2333 = vmax.f32 %v2029, 0.0
        %v2334 = vmax.f32 %v2031, 0.0
        %v2335 = vmax.f32 %v2035, 0.0
        %v2336 = vmax.f32 %v2037, 0.0
        %v2337 = vmax.f32 %v2039, 0.0
        %v2338 = vmax.f32 %v2041, 0.0
        %v2339 = vmax.f32 %v2045, 0.0
        %v2340 = vmax.f32 %v2047, 0.0
        %v2341 = vmax.f32 %v2049, 0.0
        %v2342 = vmax.f32 %v2051, 0.0
        %v2343 = vmax.f32 %v2055, 0.0
        %v2344 = vmax.f32 %v2057, 0.0
        %v2345 = vmax.f32 %v2059, 0.0
        %v2346 = vmax.f32 %v2061, 0.0
        %v2347 = vmax.f32 %v2065, 0.0
        %v2348 = vmax.f32 %v2067, 0.0
        %v2349 = vmax.f32 %v2069, 0.0
        %v2350 = vmax.f32 %v2071, 0.0
        %v2351 = vmax.f32 %v2075, 0.0
        %v2352 = vmax.f32 %v2077, 0.0
        %v2353 = vmax.f32 %v2079, 0.0
        %v2354 = vmax.f32 %v2081, 0.0
        %v2355 = vmax.f32 %v2085, 0.0
        %v2356 = vmax.f32 %v2087, 0.0
        %v2357 = vmax.f32 %v2089, 0.0
        %v2358 = vmax.f32 %v2091, 0.0
        %v2359 = vmax.f32 %v2095, 0.0
        %v2360 = vmax.f32 %v2097, 0.0
        %v2361 = vmax.f32 %v2099, 0.0
        %v2362 = vmax.f32 %v2101, 0.0
        %v2363 = vmax.f32 %v2105, 0.0
        %v2364 = vmax.f32 %v2107, 0.0
        %v2365 = vmax.f32 %v2109, 0.0
        %v2366 = vmax.f32 %v2111, 0.0
        %v2367 = vmax.f32 %v2115, 0.0
        %v2368 = vmax.f32 %v2117, 0.0
        %v2369 = vmax.f32 %v2119, 0.0
        %v2370 = vmax.f32 %v2121, 0.0
        %v2371 = vmax.f32 %v2125, 0.0
        %v2372 = vmax.f32 %v2127, 0.0
        %v2373 = vmax.f32 %v2129, 0.0
        %v2374 = vmax.f32 %v2131, 0.0
        %v2375 = vmax.f32 %v2135, 0.0
        %v2376 = vmax.f32 %v2137, 0.0
        %v2377 = vmax.f32 %v2139, 0.0
        %v2378 = vmax.f32 %v2141, 0.0
        %v2379 = vmax.f32 %v2145, 0.0
        %v2380 = vmax.f32 %v2147, 0.0
        %v2381 = vmax.f32 %v2149, 0.0
        %v2382 = vmax.f32 %v2151, 0.0
        %v2383 = vmax.f32 %v2155, 0.0
        %v2384 = vmax.f32 %v2157, 0.0
        %v2385 = vmax.f32 %v2159, 0.0
        %v2386 = vmax.f32 %v2161, 0.0
        %v2387 = vmax.f32 %v2165, 0.0
        %v2388 = vmax.f32 %v2167, 0.0
        %v2389 = vmax.f32 %v2169, 0.0
        %v2390 = vmax.f32 %v2171, 0.0
        %v2391 = vmax.f32 %v2175, 0.0
        %v2392 = vmax.f32 %v2177, 0.0
        %v2393 = vmax.f32 %v2179, 0.0
        %v2394 = vmax.f32 %v2181, 0.0
        %v2395 = vmax.f32 %v2185, 0.0
        %v2396 = vmax.f32 %v2187, 0.0
        %v2397 = vmax.f32 %v2189, 0.0
        %v2398 = vmax.f32 %v2191, 0.0
        %v2399 = vmax.f32 %v2195, 0.0
        %v2400 = vmax.f32 %v2197, 0.0
        %v2401 = vmax.f32 %v2199, 0.0
        %v2402 = vmax.f32 %v2201, 0.0
        %v2403 = vmax.f32 %v2205, 0.0
        %v2404 = vmax.f32 %v2207, 0.0
        %v2405 = vmax.f32 %v2209, 0.0
        %v2406 = vmax.f32 %v2211, 0.0
        %v2407 = vmax.f32 %v2215, 0.0
        %v2408 = vmax.f32 %v2217, 0.0
        %v2409 = vmax.f32 %v2219, 0.0
        %v2410 = vmax.f32 %v2221, 0.0
        %v2411 = vmax.f32 %v2225, 0.0
        %v2412 = vmax.f32 %v2227, 0.0
        %v2413 = vmax.f32 %v2229, 0.0
        %v2414 = vmax.f32 %v2231, 0.0
        %v2415 = vmax.f32 %v2235, 0.0
        %v2416 = vmax.f32 %v2237, 0.0
        %v2417 = vmax.f32 %v2239, 0.0
        %v2418 = vmax.f32 %v2241, 0.0
        %v2419 = vmax.f32 %v2245, 0.0
        %v2420 = vmax.f32 %v2247, 0.0
        %v2421 = vmax.f32 %v2249, 0.0
        %v2422 = vmax.f32 %v2251, 0.0
        %v2423 = vmax.f32 %v2255, 0.0
        %v2424 = vmax.f32 %v2257, 0.0
        %v2425 = vmax.f32 %v2259, 0.0
        %v2426 = vmax.f32 %v2261, 0.0
        %v2427 = vmax.f32 %v2265, 0.0
        %v2428 = vmax.f32 %v2267, 0.0
        %v2429 = vmax.f32 %v2269, 0.0
        %v2430 = vmax.f32 %v2271, 0.0
        %v2431 = vmax.f32 %v2275, 0.0
        %v2432 = vmax.f32 %v2277, 0.0
        %v2433 = vmax.f32 %v2279, 0.0
        %v2434 = vmax.f32 %v2281, 0.0
        %v2435 = vmax.f32 %v2285, 0.0
        %v2436 = vmax.f32 %v2287, 0.0
        %v2437 = vmax.f32 %v2289, 0.0
        %v2438 = vmax.f32 %v2291, 0.0
        %v2439 = vmax.f32 %v2295, 0.0
        %v2440 = vmax.f32 %v2297, 0.0
        %v2441 = vmax.f32 %v2299, 0.0
        %v2442 = vmax.f32 %v2301, 0.0
        %v2443 = vmax.f32 %v2305, 0.0
        %v2444 = vmax.f32 %v2307, 0.0
        %v2445 = vmax.f32 %v2309, 0.0
        %v2446 = vmax.f32 %v2311, 0.0
        %v2447 = vmax.f32 %v2315, 0.0
        %v2448 = vmax.f32 %v2317, 0.0
        %v2449 = vmax.f32 %v2319, 0.0
        %v2450 = vmax.f32 %v2321, 0.0
        %v2451 = vld [vmem:[#allocation3] sm:$0xff]
        %v2452 = vld [vmem:[#allocation3 + $0x8] sm:$0xff]
        %v2453 = vld [vmem:[#allocation3 + $0x10] sm:$0xff]
        %v2454 = vld [vmem:[#allocation3 + $0x18] sm:$0xff]
        %v2455 = vld [vmem:[#allocation3 + $0x20] sm:$0xff]
        %v2456 = vld [vmem:[#allocation3 + $0x28] sm:$0xff]
        %v2457 = vld [vmem:[#allocation3 + $0x30] sm:$0xff]
        %v2458 = vld [vmem:[#allocation3 + $0x38] sm:$0xff]
        %v2459 = vld [vmem:[#allocation3 + $0x40] sm:$0xff]
        %v2460 = vld [vmem:[#allocation3 + $0x48] sm:$0xff]
        %v2461 = vld [vmem:[#allocation3 + $0x50] sm:$0xff]
        %v2462 = vld [vmem:[#allocation3 + $0x58] sm:$0xff]
        %v2463 = vld [vmem:[#allocation3 + $0x60] sm:$0xff]
        %v2464 = vld [vmem:[#allocation3 + $0x68] sm:$0xff]
        %v2465 = vld [vmem:[#allocation3 + $0x70] sm:$0xff]
        %v2466 = vld [vmem:[#allocation3 + $0x78] sm:$0xff]
        %v2467 = vld [vmem:[#allocation3 + $0x80] sm:$0xff]
        %v2468 = vld [vmem:[#allocation3 + $0x88] sm:$0xff]
        %v2469 = vld [vmem:[#allocation3 + $0x90] sm:$0xff]
        %v2470 = vld [vmem:[#allocation3 + $0x98] sm:$0xff]
        %v2471 = vld [vmem:[#allocation3 + $0xa0] sm:$0xff]
        %v2472 = vld [vmem:[#allocation3 + $0xa8] sm:$0xff]
        %v2473 = vld [vmem:[#allocation3 + $0xb0] sm:$0xff]
        %v2474 = vld [vmem:[#allocation3 + $0xb8] sm:$0xff]
        %v2475 = vld [vmem:[#allocation3 + $0xc0] sm:$0xff]
        %v2476 = vld [vmem:[#allocation3 + $0xc8] sm:$0xff]
        %v2477 = vld [vmem:[#allocation3 + $0xd0] sm:$0xff]
        %v2478 = vld [vmem:[#allocation3 + $0xd8] sm:$0xff]
        %v2479 = vld [vmem:[#allocation3 + $0xe0] sm:$0xff]
        %v2480 = vld [vmem:[#allocation3 + $0xe8] sm:$0xff]
        %v2481 = vld [vmem:[#allocation3 + $0xf0] sm:$0xff]
        %v2482 = vld [vmem:[#allocation3 + $0xf8] sm:$0xff]
        %v2483 = vld [vmem:[#allocation3 + $0x100] sm:$0xff]
        %v2484 = vld [vmem:[#allocation3 + $0x108] sm:$0xff]
        %v2485 = vld [vmem:[#allocation3 + $0x110] sm:$0xff]
        %v2486 = vld [vmem:[#allocation3 + $0x118] sm:$0xff]
        %v2487 = vld [vmem:[#allocation3 + $0x120] sm:$0xff]
        %v2488 = vld [vmem:[#allocation3 + $0x128] sm:$0xff]
        %v2489 = vld [vmem:[#allocation3 + $0x130] sm:$0xff]
        %v2490 = vld [vmem:[#allocation3 + $0x138] sm:$0xff]
        %v2491 = vld [vmem:[#allocation3 + $0x140] sm:$0xff]
        %v2492 = vld [vmem:[#allocation3 + $0x148] sm:$0xff]
        %v2493 = vld [vmem:[#allocation3 + $0x150] sm:$0xff]
        %v2494 = vld [vmem:[#allocation3 + $0x158] sm:$0xff]
        %v2495 = vld [vmem:[#allocation3 + $0x160] sm:$0xff]
        %v2496 = vld [vmem:[#allocation3 + $0x168] sm:$0xff]
        %v2497 = vld [vmem:[#allocation3 + $0x170] sm:$0xff]
        %v2498 = vld [vmem:[#allocation3 + $0x178] sm:$0xff]
        %v2499 = vld [vmem:[#allocation3 + $0x180] sm:$0xff]
        %v2500 = vld [vmem:[#allocation3 + $0x188] sm:$0xff]
        %v2501 = vld [vmem:[#allocation3 + $0x190] sm:$0xff]
        %v2502 = vld [vmem:[#allocation3 + $0x198] sm:$0xff]
        %v2503 = vld [vmem:[#allocation3 + $0x1a0] sm:$0xff]
        %v2504 = vld [vmem:[#allocation3 + $0x1a8] sm:$0xff]
        %v2505 = vld [vmem:[#allocation3 + $0x1b0] sm:$0xff]
        %v2506 = vld [vmem:[#allocation3 + $0x1b8] sm:$0xff]
        %v2507 = vld [vmem:[#allocation3 + $0x1c0] sm:$0xff]
        %v2508 = vld [vmem:[#allocation3 + $0x1c8] sm:$0xff]
        %v2509 = vld [vmem:[#allocation3 + $0x1d0] sm:$0xff]
        %v2510 = vld [vmem:[#allocation3 + $0x1d8] sm:$0xff]
        %v2511 = vld [vmem:[#allocation3 + $0x1e0] sm:$0xff]
        %v2512 = vld [vmem:[#allocation3 + $0x1e8] sm:$0xff]
        %v2513 = vld [vmem:[#allocation3 + $0x1f0] sm:$0xff]
        %v2514 = vld [vmem:[#allocation3 + $0x1f8] sm:$0xff]
        %v2515 = vpack.c.bf16 %v2325, %v2323
        %v2516 = vpack.c.bf16 %v2326, %v2324
        %v2517 = vpack.c.bf16 %v2329, %v2327
        %v2518 = vpack.c.bf16 %v2330, %v2328
        %v2519 = vpack.c.bf16 %v2333, %v2331
        %v2520 = vpack.c.bf16 %v2334, %v2332
        %v2521 = vpack.c.bf16 %v2337, %v2335
        %v2522 = vpack.c.bf16 %v2338, %v2336
        %v2523 = vpack.c.bf16 %v2341, %v2339
        %v2524 = vpack.c.bf16 %v2342, %v2340
        %v2525 = vpack.c.bf16 %v2345, %v2343
        %v2526 = vpack.c.bf16 %v2346, %v2344
        %v2527 = vpack.c.bf16 %v2349, %v2347
        %v2528 = vpack.c.bf16 %v2350, %v2348
        %v2529 = vpack.c.bf16 %v2353, %v2351
        %v2530 = vpack.c.bf16 %v2354, %v2352
        %v2531 = vpack.c.bf16 %v2357, %v2355
        %v2532 = vpack.c.bf16 %v2358, %v2356
        %v2533 = vpack.c.bf16 %v2361, %v2359
        %v2534 = vpack.c.bf16 %v2362, %v2360
        %v2535 = vpack.c.bf16 %v2365, %v2363
        %v2536 = vpack.c.bf16 %v2366, %v2364
        %v2537 = vpack.c.bf16 %v2369, %v2367
        %v2538 = vpack.c.bf16 %v2370, %v2368
        %v2539 = vpack.c.bf16 %v2373, %v2371
        %v2540 = vpack.c.bf16 %v2374, %v2372
        %v2541 = vpack.c.bf16 %v2377, %v2375
        %v2542 = vpack.c.bf16 %v2378, %v2376
        %v2543 = vpack.c.bf16 %v2381, %v2379
        %v2544 = vpack.c.bf16 %v2382, %v2380
        %v2545 = vpack.c.bf16 %v2385, %v2383
        %v2546 = vpack.c.bf16 %v2386, %v2384
        %v2547 = vpack.c.bf16 %v2389, %v2387
        %v2548 = vpack.c.bf16 %v2390, %v2388
        %v2549 = vpack.c.bf16 %v2393, %v2391
        %v2550 = vpack.c.bf16 %v2394, %v2392
        %v2551 = vpack.c.bf16 %v2397, %v2395
        %v2552 = vpack.c.bf16 %v2398, %v2396
        %v2553 = vpack.c.bf16 %v2401, %v2399
        %v2554 = vpack.c.bf16 %v2402, %v2400
        %v2555 = vpack.c.bf16 %v2405, %v2403
        %v2556 = vpack.c.bf16 %v2406, %v2404
        %v2557 = vpack.c.bf16 %v2409, %v2407
        %v2558 = vpack.c.bf16 %v2410, %v2408
        %v2559 = vpack.c.bf16 %v2413, %v2411
        %v2560 = vpack.c.bf16 %v2414, %v2412
        %v2561 = vpack.c.bf16 %v2417, %v2415
        %v2562 = vpack.c.bf16 %v2418, %v2416
        %v2563 = vpack.c.bf16 %v2421, %v2419
        %v2564 = vpack.c.bf16 %v2422, %v2420
        %v2565 = vpack.c.bf16 %v2425, %v2423
        %v2566 = vpack.c.bf16 %v2426, %v2424
        %v2567 = vpack.c.bf16 %v2429, %v2427
        %v2568 = vpack.c.bf16 %v2430, %v2428
        %v2569 = vpack.c.bf16 %v2433, %v2431
        %v2570 = vpack.c.bf16 %v2434, %v2432
        %v2571 = vpack.c.bf16 %v2437, %v2435
        %v2572 = vpack.c.bf16 %v2438, %v2436
        %v2573 = vpack.c.bf16 %v2441, %v2439
        %v2574 = vpack.c.bf16 %v2442, %v2440
        %v2575 = vpack.c.bf16 %v2445, %v2443
        %v2576 = vpack.c.bf16 %v2446, %v2444
        %v2577 = vpack.c.bf16 %v2449, %v2447
        %v2578 = vpack.c.bf16 %v2450, %v2448
        %v2579 = vld [vmem:[#allocation9] sm:$0xf]
        %v2580 = vld [vmem:[#allocation9 + $0x4] sm:$0xf]
        %v2581 = vld [vmem:[#allocation9 + $0x8] sm:$0xf]
        %v2582 = vld [vmem:[#allocation9 + $0xc] sm:$0xf]
        %v2583 = vld [vmem:[#allocation9 + $0x10] sm:$0xf]
        %v2584 = vld [vmem:[#allocation9 + $0x14] sm:$0xf]
        %v2585 = vld [vmem:[#allocation9 + $0x18] sm:$0xf]
        %v2586 = vld [vmem:[#allocation9 + $0x1c] sm:$0xf]
        %v2587 = vld [vmem:[#allocation9 + $0x20] sm:$0xf]
        %v2588 = vld [vmem:[#allocation9 + $0x24] sm:$0xf]
        %v2589 = vld [vmem:[#allocation9 + $0x28] sm:$0xf]
        %v2590 = vld [vmem:[#allocation9 + $0x2c] sm:$0xf]
        %v2591 = vld [vmem:[#allocation9 + $0x30] sm:$0xf]
        %v2592 = vld [vmem:[#allocation9 + $0x34] sm:$0xf]
        %v2593 = vld [vmem:[#allocation9 + $0x38] sm:$0xf]
        %v2594 = vld [vmem:[#allocation9 + $0x3c] sm:$0xf]
        %v2595 = vld [vmem:[#allocation9 + $0x40] sm:$0xf]
        %v2596 = vld [vmem:[#allocation9 + $0x44] sm:$0xf]
        %v2597 = vld [vmem:[#allocation9 + $0x48] sm:$0xf]
        %v2598 = vld [vmem:[#allocation9 + $0x4c] sm:$0xf]
        %v2599 = vld [vmem:[#allocation9 + $0x50] sm:$0xf]
        %v2600 = vld [vmem:[#allocation9 + $0x54] sm:$0xf]
        %v2601 = vld [vmem:[#allocation9 + $0x58] sm:$0xf]
        %v2602 = vld [vmem:[#allocation9 + $0x5c] sm:$0xf]
        %v2603 = vld [vmem:[#allocation9 + $0x60] sm:$0xf]
        %v2604 = vld [vmem:[#allocation9 + $0x64] sm:$0xf]
        %v2605 = vld [vmem:[#allocation9 + $0x68] sm:$0xf]
        %v2606 = vld [vmem:[#allocation9 + $0x6c] sm:$0xf]
        %v2607 = vld [vmem:[#allocation9 + $0x70] sm:$0xf]
        %v2608 = vld [vmem:[#allocation9 + $0x74] sm:$0xf]
        %v2609 = vld [vmem:[#allocation9 + $0x78] sm:$0xf]
        %v2610 = vld [vmem:[#allocation9 + $0x7c] sm:$0xf]
        %v2643 = vunpack.c.l.b16 %v2579
        %v2644 = vunpack.c.l.b16 %v2580
        %v2645 = vunpack.c.l.b16 %v2581
        %v2646 = vunpack.c.l.b16 %v2582
        %v2647 = vunpack.c.l.b16 %v2583
        %v2648 = vunpack.c.l.b16 %v2584
        %v2649 = vunpack.c.l.b16 %v2585
        %v2650 = vunpack.c.l.b16 %v2586
        %v2651 = vunpack.c.l.b16 %v2587
        %v2652 = vunpack.c.l.b16 %v2588
        %v2653 = vunpack.c.l.b16 %v2589
        %v2654 = vunpack.c.l.b16 %v2590
        %v2655 = vunpack.c.l.b16 %v2591
        %v2656 = vunpack.c.l.b16 %v2592
        %v2657 = vunpack.c.l.b16 %v2593
        %v2658 = vunpack.c.l.b16 %v2594
        %v2659 = vunpack.c.l.b16 %v2595
        %v2660 = vunpack.c.l.b16 %v2596
        %v2661 = vunpack.c.l.b16 %v2597
        %v2662 = vunpack.c.l.b16 %v2598
        %v2663 = vunpack.c.l.b16 %v2599
        %v2664 = vunpack.c.l.b16 %v2600
        %v2665 = vunpack.c.l.b16 %v2601
        %v2666 = vunpack.c.l.b16 %v2602
        %v2667 = vunpack.c.l.b16 %v2603
        %v2668 = vunpack.c.l.b16 %v2604
        %v2669 = vunpack.c.l.b16 %v2605
        %v2670 = vunpack.c.l.b16 %v2606
        %v2671 = vunpack.c.l.b16 %v2607
        %v2672 = vunpack.c.l.b16 %v2608
        %v2673 = vunpack.c.l.b16 %v2609
        %v2674 = vunpack.c.l.b16 %v2610
        %v2675 = vpack.c.b16 %v2644, %v2643
        %v2676 = vpack.c.b16 %v2646, %v2645
        %v2677 = vpack.c.b16 %v2648, %v2647
        %v2678 = vpack.c.b16 %v2650, %v2649
        %v2679 = vpack.c.b16 %v2652, %v2651
        %v2680 = vpack.c.b16 %v2654, %v2653
        %v2681 = vpack.c.b16 %v2656, %v2655
        %v2682 = vpack.c.b16 %v2658, %v2657
        %v2683 = vpack.c.b16 %v2660, %v2659
        %v2684 = vpack.c.b16 %v2662, %v2661
        %v2685 = vpack.c.b16 %v2664, %v2663
        %v2686 = vpack.c.b16 %v2666, %v2665
        %v2687 = vpack.c.b16 %v2668, %v2667
        %v2688 = vpack.c.b16 %v2670, %v2669
        %v2689 = vpack.c.b16 %v2672, %v2671
        %v2690 = vpack.c.b16 %v2674, %v2673
        %2707 = vmatprep.subr.bf16.mxu0 0
        %2708 = vmatpush1.bf16.msra.mxu0 %v2682
        %2709 = vmatprep.subr.bf16.mxu0 0
        %2710 = vmatpush1.bf16.msra.mxu0 %v2681
        %2711 = vmatprep.subr.bf16.mxu0 0
        %2712 = vmatpush1.bf16.msra.mxu0 %v2680
        %2713 = vmatprep.subr.bf16.mxu0 0
        %2714 = vmatpush1.bf16.msra.mxu0 %v2679
        %2715 = vmatprep.subr.bf16.mxu0 0
        %2716 = vmatpush1.bf16.msra.mxu0 %v2678
        %2717 = vmatprep.subr.bf16.mxu0 0
        %2718 = vmatpush1.bf16.msra.mxu0 %v2677
        %2719 = vmatprep.subr.bf16.mxu0 0
        %2720 = vmatpush1.bf16.msra.mxu0 %v2676
        %2721 = vmatprep.subr.bf16.mxu0 0
        %2722 = vmatpush1.bf16.msra.mxu0 %v2675
        %2723 = vmatprep.subr.bf16.mxu0 0
        %2724 = vmatpush2.bf16.msra.mxu0 %v2690
        %2725 = vmatprep.subr.bf16.mxu0 0
        %2726 = vmatpush2.bf16.msra.mxu0 %v2689
        %2727 = vmatprep.subr.bf16.mxu0 0
        %2728 = vmatpush2.bf16.msra.mxu0 %v2688
        %2729 = vmatprep.subr.bf16.mxu0 0
        %2730 = vmatpush2.bf16.msra.mxu0 %v2687
        %2731 = vmatprep.subr.bf16.mxu0 0
        %2732 = vmatpush2.bf16.msra.mxu0 %v2686
        %2733 = vmatprep.subr.bf16.mxu0 0
        %2734 = vmatpush2.bf16.msra.mxu0 %v2685
        %2735 = vmatprep.subr.bf16.mxu0 0
        %2736 = vmatpush2.bf16.msra.mxu0 %v2684
        %2737 = vmatprep.subr.bf16.mxu0 0
        %2738 = vmatpush2.bf16.msra.mxu0 %v2683
        %2739 = vmatprep.mubr.bf16.mxu0 %v2516
        %2740 = vmatmul.mubr.bf16.gmra.mxu0 %v2515
        %v2741 = vpop.f32.mrf.mxu0
        %v2742 = vadd.f32 0.0, %v2741
        %v2743 = vpop.f32.mrf.mxu0
        %v2744 = vpop.f32.mrf.mxu0
        %v2745 = vadd.f32 0.0, %v2744
        %v2746 = vpop.f32.mrf.mxu0
        %2747 = vmatprep.mubr.bf16.mxu0 %v2518
        %2748 = vmatmul.mubr.bf16.gmra.mxu0 %v2517
        %v2749 = vpop.f32.mrf.mxu0
        %v2750 = vadd.f32 0.0, %v2749
        %v2751 = vpop.f32.mrf.mxu0
        %v2752 = vpop.f32.mrf.mxu0
        %v2753 = vadd.f32 0.0, %v2752
        %v2754 = vpop.f32.mrf.mxu0
        %2755 = vmatprep.mubr.bf16.mxu0 %v2520
        %2756 = vmatmul.mubr.bf16.gmra.mxu0 %v2519
        %v2757 = vpop.f32.mrf.mxu0
        %v2758 = vadd.f32 0.0, %v2757
        %v2759 = vpop.f32.mrf.mxu0
        %v2760 = vpop.f32.mrf.mxu0
        %v2761 = vadd.f32 0.0, %v2760
        %v2762 = vpop.f32.mrf.mxu0
        %2763 = vmatprep.mubr.bf16.mxu0 %v2522
        %2764 = vmatmul.mubr.bf16.gmra.mxu0 %v2521
        %v2765 = vpop.f32.mrf.mxu0
        %v2766 = vadd.f32 0.0, %v2765
        %v2767 = vpop.f32.mrf.mxu0
        %v2768 = vpop.f32.mrf.mxu0
        %v2769 = vadd.f32 0.0, %v2768
        %v2770 = vpop.f32.mrf.mxu0
        %2771 = vmatprep.mubr.bf16.mxu0 %v2524
        %2772 = vmatmul.mubr.bf16.gmra.mxu0 %v2523
        %v2773 = vpop.f32.mrf.mxu0
        %v2774 = vadd.f32 0.0, %v2773
        %v2775 = vpop.f32.mrf.mxu0
        %v2776 = vpop.f32.mrf.mxu0
        %v2777 = vadd.f32 0.0, %v2776
        %v2778 = vpop.f32.mrf.mxu0
        %2779 = vmatprep.mubr.bf16.mxu0 %v2526
        %2780 = vmatmul.mubr.bf16.gmra.mxu0 %v2525
        %v2781 = vpop.f32.mrf.mxu0
        %v2782 = vadd.f32 0.0, %v2781
        %v2783 = vpop.f32.mrf.mxu0
        %v2784 = vpop.f32.mrf.mxu0
        %v2785 = vadd.f32 0.0, %v2784
        %v2786 = vpop.f32.mrf.mxu0
        %2787 = vmatprep.mubr.bf16.mxu0 %v2528
        %2788 = vmatmul.mubr.bf16.gmra.mxu0 %v2527
        %v2789 = vpop.f32.mrf.mxu0
        %v2790 = vadd.f32 0.0, %v2789
        %v2791 = vpop.f32.mrf.mxu0
        %v2792 = vpop.f32.mrf.mxu0
        %v2793 = vadd.f32 0.0, %v2792
        %v2794 = vpop.f32.mrf.mxu0
        %2795 = vmatprep.mubr.bf16.mxu0 %v2530
        %2796 = vmatmul.mubr.bf16.gmra.mxu0 %v2529
        %v2797 = vpop.f32.mrf.mxu0
        %v2798 = vadd.f32 0.0, %v2797
        %v2799 = vpop.f32.mrf.mxu0
        %v2800 = vpop.f32.mrf.mxu0
        %v2801 = vadd.f32 0.0, %v2800
        %v2802 = vpop.f32.mrf.mxu0
        %2803 = vmatprep.mubr.bf16.mxu0 %v2532
        %2804 = vmatmul.mubr.bf16.gmra.mxu0 %v2531
        %v2805 = vpop.f32.mrf.mxu0
        %v2806 = vadd.f32 0.0, %v2805
        %v2807 = vpop.f32.mrf.mxu0
        %v2808 = vpop.f32.mrf.mxu0
        %v2809 = vadd.f32 0.0, %v2808
        %v2810 = vpop.f32.mrf.mxu0
        %2811 = vmatprep.mubr.bf16.mxu0 %v2534
        %2812 = vmatmul.mubr.bf16.gmra.mxu0 %v2533
        %v2813 = vpop.f32.mrf.mxu0
        %v2814 = vadd.f32 0.0, %v2813
        %v2815 = vpop.f32.mrf.mxu0
        %v2816 = vpop.f32.mrf.mxu0
        %v2817 = vadd.f32 0.0, %v2816
        %v2818 = vpop.f32.mrf.mxu0
        %2819 = vmatprep.mubr.bf16.mxu0 %v2536
        %2820 = vmatmul.mubr.bf16.gmra.mxu0 %v2535
        %v2821 = vpop.f32.mrf.mxu0
        %v2822 = vadd.f32 0.0, %v2821
        %v2823 = vpop.f32.mrf.mxu0
        %v2824 = vpop.f32.mrf.mxu0
        %v2825 = vadd.f32 0.0, %v2824
        %v2826 = vpop.f32.mrf.mxu0
        %2827 = vmatprep.mubr.bf16.mxu0 %v2538
        %2828 = vmatmul.mubr.bf16.gmra.mxu0 %v2537
        %v2829 = vpop.f32.mrf.mxu0
        %v2830 = vadd.f32 0.0, %v2829
        %v2831 = vpop.f32.mrf.mxu0
        %v2832 = vpop.f32.mrf.mxu0
        %v2833 = vadd.f32 0.0, %v2832
        %v2834 = vpop.f32.mrf.mxu0
        %2835 = vmatprep.mubr.bf16.mxu0 %v2540
        %2836 = vmatmul.mubr.bf16.gmra.mxu0 %v2539
        %v2837 = vpop.f32.mrf.mxu0
        %v2838 = vadd.f32 0.0, %v2837
        %v2839 = vpop.f32.mrf.mxu0
        %v2840 = vpop.f32.mrf.mxu0
        %v2841 = vadd.f32 0.0, %v2840
        %v2842 = vpop.f32.mrf.mxu0
        %2843 = vmatprep.mubr.bf16.mxu0 %v2542
        %2844 = vmatmul.mubr.bf16.gmra.mxu0 %v2541
        %v2845 = vpop.f32.mrf.mxu0
        %v2846 = vadd.f32 0.0, %v2845
        %v2847 = vpop.f32.mrf.mxu0
        %v2848 = vpop.f32.mrf.mxu0
        %v2849 = vadd.f32 0.0, %v2848
        %v2850 = vpop.f32.mrf.mxu0
        %2851 = vmatprep.mubr.bf16.mxu0 %v2544
        %2852 = vmatmul.mubr.bf16.gmra.mxu0 %v2543
        %v2853 = vpop.f32.mrf.mxu0
        %v2854 = vadd.f32 0.0, %v2853
        %v2855 = vpop.f32.mrf.mxu0
        %v2856 = vpop.f32.mrf.mxu0
        %v2857 = vadd.f32 0.0, %v2856
        %v2858 = vpop.f32.mrf.mxu0
        %2859 = vmatprep.mubr.bf16.mxu0 %v2546
        %2860 = vmatmul.mubr.bf16.gmra.mxu0 %v2545
        %v2861 = vpop.f32.mrf.mxu0
        %v2862 = vadd.f32 0.0, %v2861
        %v2863 = vpop.f32.mrf.mxu0
        %v2864 = vpop.f32.mrf.mxu0
        %v2865 = vadd.f32 0.0, %v2864
        %v2866 = vpop.f32.mrf.mxu0
        %2867 = vmatprep.mubr.bf16.mxu0 %v2548
        %2868 = vmatmul.mubr.bf16.gmra.mxu0 %v2547
        %v2869 = vpop.f32.mrf.mxu0
        %v2870 = vadd.f32 0.0, %v2869
        %v2871 = vpop.f32.mrf.mxu0
        %v2872 = vpop.f32.mrf.mxu0
        %v2873 = vadd.f32 0.0, %v2872
        %v2874 = vpop.f32.mrf.mxu0
        %2875 = vmatprep.mubr.bf16.mxu0 %v2550
        %2876 = vmatmul.mubr.bf16.gmra.mxu0 %v2549
        %v2877 = vpop.f32.mrf.mxu0
        %v2878 = vadd.f32 0.0, %v2877
        %v2879 = vpop.f32.mrf.mxu0
        %v2880 = vpop.f32.mrf.mxu0
        %v2881 = vadd.f32 0.0, %v2880
        %v2882 = vpop.f32.mrf.mxu0
        %2883 = vmatprep.mubr.bf16.mxu0 %v2552
        %2884 = vmatmul.mubr.bf16.gmra.mxu0 %v2551
        %v2885 = vpop.f32.mrf.mxu0
        %v2886 = vadd.f32 0.0, %v2885
        %v2887 = vpop.f32.mrf.mxu0
        %v2888 = vpop.f32.mrf.mxu0
        %v2889 = vadd.f32 0.0, %v2888
        %v2890 = vpop.f32.mrf.mxu0
        %2891 = vmatprep.mubr.bf16.mxu0 %v2554
        %2892 = vmatmul.mubr.bf16.gmra.mxu0 %v2553
        %v2893 = vpop.f32.mrf.mxu0
        %v2894 = vadd.f32 0.0, %v2893
        %v2895 = vpop.f32.mrf.mxu0
        %v2896 = vpop.f32.mrf.mxu0
        %v2897 = vadd.f32 0.0, %v2896
        %v2898 = vpop.f32.mrf.mxu0
        %2899 = vmatprep.mubr.bf16.mxu0 %v2556
        %2900 = vmatmul.mubr.bf16.gmra.mxu0 %v2555
        %v2901 = vpop.f32.mrf.mxu0
        %v2902 = vadd.f32 0.0, %v2901
        %v2903 = vpop.f32.mrf.mxu0
        %v2904 = vpop.f32.mrf.mxu0
        %v2905 = vadd.f32 0.0, %v2904
        %v2906 = vpop.f32.mrf.mxu0
        %2907 = vmatprep.mubr.bf16.mxu0 %v2558
        %2908 = vmatmul.mubr.bf16.gmra.mxu0 %v2557
        %v2909 = vpop.f32.mrf.mxu0
        %v2910 = vadd.f32 0.0, %v2909
        %v2911 = vpop.f32.mrf.mxu0
        %v2912 = vpop.f32.mrf.mxu0
        %v2913 = vadd.f32 0.0, %v2912
        %v2914 = vpop.f32.mrf.mxu0
        %2915 = vmatprep.mubr.bf16.mxu0 %v2560
        %2916 = vmatmul.mubr.bf16.gmra.mxu0 %v2559
        %v2917 = vpop.f32.mrf.mxu0
        %v2918 = vadd.f32 0.0, %v2917
        %v2919 = vpop.f32.mrf.mxu0
        %v2920 = vpop.f32.mrf.mxu0
        %v2921 = vadd.f32 0.0, %v2920
        %v2922 = vpop.f32.mrf.mxu0
        %2923 = vmatprep.mubr.bf16.mxu0 %v2562
        %2924 = vmatmul.mubr.bf16.gmra.mxu0 %v2561
        %v2925 = vpop.f32.mrf.mxu0
        %v2926 = vadd.f32 0.0, %v2925
        %v2927 = vpop.f32.mrf.mxu0
        %v2928 = vpop.f32.mrf.mxu0
        %v2929 = vadd.f32 0.0, %v2928
        %v2930 = vpop.f32.mrf.mxu0
        %2931 = vmatprep.mubr.bf16.mxu0 %v2564
        %2932 = vmatmul.mubr.bf16.gmra.mxu0 %v2563
        %v2933 = vpop.f32.mrf.mxu0
        %v2934 = vadd.f32 0.0, %v2933
        %v2935 = vpop.f32.mrf.mxu0
        %v2936 = vpop.f32.mrf.mxu0
        %v2937 = vadd.f32 0.0, %v2936
        %v2938 = vpop.f32.mrf.mxu0
        %2939 = vmatprep.mubr.bf16.mxu0 %v2566
        %2940 = vmatmul.mubr.bf16.gmra.mxu0 %v2565
        %v2941 = vpop.f32.mrf.mxu0
        %v2942 = vadd.f32 0.0, %v2941
        %v2943 = vpop.f32.mrf.mxu0
        %v2944 = vpop.f32.mrf.mxu0
        %v2945 = vadd.f32 0.0, %v2944
        %v2946 = vpop.f32.mrf.mxu0
        %2947 = vmatprep.mubr.bf16.mxu0 %v2568
        %2948 = vmatmul.mubr.bf16.gmra.mxu0 %v2567
        %v2949 = vpop.f32.mrf.mxu0
        %v2950 = vadd.f32 0.0, %v2949
        %v2951 = vpop.f32.mrf.mxu0
        %v2952 = vpop.f32.mrf.mxu0
        %v2953 = vadd.f32 0.0, %v2952
        %v2954 = vpop.f32.mrf.mxu0
        %2955 = vmatprep.mubr.bf16.mxu0 %v2570
        %2956 = vmatmul.mubr.bf16.gmra.mxu0 %v2569
        %v2957 = vpop.f32.mrf.mxu0
        %v2958 = vadd.f32 0.0, %v2957
        %v2959 = vpop.f32.mrf.mxu0
        %v2960 = vpop.f32.mrf.mxu0
        %v2961 = vadd.f32 0.0, %v2960
        %v2962 = vpop.f32.mrf.mxu0
        %2963 = vmatprep.mubr.bf16.mxu0 %v2572
        %2964 = vmatmul.mubr.bf16.gmra.mxu0 %v2571
        %v2965 = vpop.f32.mrf.mxu0
        %v2966 = vadd.f32 0.0, %v2965
        %v2967 = vpop.f32.mrf.mxu0
        %v2968 = vpop.f32.mrf.mxu0
        %v2969 = vadd.f32 0.0, %v2968
        %v2970 = vpop.f32.mrf.mxu0
        %2971 = vmatprep.mubr.bf16.mxu0 %v2574
        %2972 = vmatmul.mubr.bf16.gmra.mxu0 %v2573
        %v2973 = vpop.f32.mrf.mxu0
        %v2974 = vadd.f32 0.0, %v2973
        %v2975 = vpop.f32.mrf.mxu0
        %v2976 = vpop.f32.mrf.mxu0
        %v2977 = vadd.f32 0.0, %v2976
        %v2978 = vpop.f32.mrf.mxu0
        %2979 = vmatprep.mubr.bf16.mxu0 %v2576
        %2980 = vmatmul.mubr.bf16.gmra.mxu0 %v2575
        %v2981 = vpop.f32.mrf.mxu0
        %v2982 = vadd.f32 0.0, %v2981
        %v2983 = vpop.f32.mrf.mxu0
        %v2984 = vpop.f32.mrf.mxu0
        %v2985 = vadd.f32 0.0, %v2984
        %v2986 = vpop.f32.mrf.mxu0
        %2987 = vmatprep.mubr.bf16.mxu0 %v2578
        %2988 = vmatmul.mubr.bf16.gmra.mxu0 %v2577
        %v2989 = vpop.f32.mrf.mxu0
        %v2990 = vadd.f32 0.0, %v2989
        %v2991 = vpop.f32.mrf.mxu0
        %v2992 = vpop.f32.mrf.mxu0
        %v2993 = vadd.f32 0.0, %v2992
        %v2994 = vpop.f32.mrf.mxu0
        %2995 = vdwg.mxu0
        %v2996 = vadd.f32 %v2451, %v2742
        %v2997 = vadd.f32 %v2452, %v2745
        %v2998 = vadd.f32 %v2453, %v2750
        %v2999 = vadd.f32 %v2454, %v2753
        %v3000 = vadd.f32 %v2455, %v2758
        %v3001 = vadd.f32 %v2456, %v2761
        %v3002 = vadd.f32 %v2457, %v2766
        %v3003 = vadd.f32 %v2458, %v2769
        %v3004 = vadd.f32 %v2459, %v2774
        %v3005 = vadd.f32 %v2460, %v2777
        %v3006 = vadd.f32 %v2461, %v2782
        %v3007 = vadd.f32 %v2462, %v2785
        %v3008 = vadd.f32 %v2463, %v2790
        %v3009 = vadd.f32 %v2464, %v2793
        %v3010 = vadd.f32 %v2465, %v2798
        %v3011 = vadd.f32 %v2466, %v2801
        %v3012 = vadd.f32 %v2467, %v2806
        %v3013 = vadd.f32 %v2468, %v2809
        %v3014 = vadd.f32 %v2469, %v2814
        %v3015 = vadd.f32 %v2470, %v2817
        %v3016 = vadd.f32 %v2471, %v2822
        %v3017 = vadd.f32 %v2472, %v2825
        %v3018 = vadd.f32 %v2473, %v2830
        %v3019 = vadd.f32 %v2474, %v2833
        %v3020 = vadd.f32 %v2475, %v2838
        %v3021 = vadd.f32 %v2476, %v2841
        %v3022 = vadd.f32 %v2477, %v2846
        %v3023 = vadd.f32 %v2478, %v2849
        %v3024 = vadd.f32 %v2479, %v2854
        %v3025 = vadd.f32 %v2480, %v2857
        %v3026 = vadd.f32 %v2481, %v2862
        %v3027 = vadd.f32 %v2482, %v2865
        %v3028 = vadd.f32 %v2483, %v2870
        %v3029 = vadd.f32 %v2484, %v2873
        %v3030 = vadd.f32 %v2485, %v2878
        %v3031 = vadd.f32 %v2486, %v2881
        %v3032 = vadd.f32 %v2487, %v2886
        %v3033 = vadd.f32 %v2488, %v2889
        %v3034 = vadd.f32 %v2489, %v2894
        %v3035 = vadd.f32 %v2490, %v2897
        %v3036 = vadd.f32 %v2491, %v2902
        %v3037 = vadd.f32 %v2492, %v2905
        %v3038 = vadd.f32 %v2493, %v2910
        %v3039 = vadd.f32 %v2494, %v2913
        %v3040 = vadd.f32 %v2495, %v2918
        %v3041 = vadd.f32 %v2496, %v2921
        %v3042 = vadd.f32 %v2497, %v2926
        %v3043 = vadd.f32 %v2498, %v2929
        %v3044 = vadd.f32 %v2499, %v2934
        %v3045 = vadd.f32 %v2500, %v2937
        %v3046 = vadd.f32 %v2501, %v2942
        %v3047 = vadd.f32 %v2502, %v2945
        %v3048 = vadd.f32 %v2503, %v2950
        %v3049 = vadd.f32 %v2504, %v2953
        %v3050 = vadd.f32 %v2505, %v2958
        %v3051 = vadd.f32 %v2506, %v2961
        %v3052 = vadd.f32 %v2507, %v2966
        %v3053 = vadd.f32 %v2508, %v2969
        %v3054 = vadd.f32 %v2509, %v2974
        %v3055 = vadd.f32 %v2510, %v2977
        %v3056 = vadd.f32 %v2511, %v2982
        %v3057 = vadd.f32 %v2512, %v2985
        %v3058 = vadd.f32 %v2513, %v2990
        %v3059 = vadd.f32 %v2514, %v2993
        %3060 = vst [vmem:[#allocation3] sm:$0xff] %v2996
        %3061 = vst [vmem:[#allocation3 + $0x8] sm:$0xff] %v2997
        %3062 = vst [vmem:[#allocation3 + $0x10] sm:$0xff] %v2998
        %3063 = vst [vmem:[#allocation3 + $0x18] sm:$0xff] %v2999
        %3064 = vst [vmem:[#allocation3 + $0x20] sm:$0xff] %v3000
        %3065 = vst [vmem:[#allocation3 + $0x28] sm:$0xff] %v3001
        %3066 = vst [vmem:[#allocation3 + $0x30] sm:$0xff] %v3002
        %3067 = vst [vmem:[#allocation3 + $0x38] sm:$0xff] %v3003
        %3068 = vst [vmem:[#allocation3 + $0x40] sm:$0xff] %v3004
        %3069 = vst [vmem:[#allocation3 + $0x48] sm:$0xff] %v3005
        %3070 = vst [vmem:[#allocation3 + $0x50] sm:$0xff] %v3006
        %3071 = vst [vmem:[#allocation3 + $0x58] sm:$0xff] %v3007
        %3072 = vst [vmem:[#allocation3 + $0x60] sm:$0xff] %v3008
        %3073 = vst [vmem:[#allocation3 + $0x68] sm:$0xff] %v3009
        %3074 = vst [vmem:[#allocation3 + $0x70] sm:$0xff] %v3010
        %3075 = vst [vmem:[#allocation3 + $0x78] sm:$0xff] %v3011
        %3076 = vst [vmem:[#allocation3 + $0x80] sm:$0xff] %v3012
        %3077 = vst [vmem:[#allocation3 + $0x88] sm:$0xff] %v3013
        %3078 = vst [vmem:[#allocation3 + $0x90] sm:$0xff] %v3014
        %3079 = vst [vmem:[#allocation3 + $0x98] sm:$0xff] %v3015
        %3080 = vst [vmem:[#allocation3 + $0xa0] sm:$0xff] %v3016
        %3081 = vst [vmem:[#allocation3 + $0xa8] sm:$0xff] %v3017
        %3082 = vst [vmem:[#allocation3 + $0xb0] sm:$0xff] %v3018
        %3083 = vst [vmem:[#allocation3 + $0xb8] sm:$0xff] %v3019
        %3084 = vst [vmem:[#allocation3 + $0xc0] sm:$0xff] %v3020
        %3085 = vst [vmem:[#allocation3 + $0xc8] sm:$0xff] %v3021
        %3086 = vst [vmem:[#allocation3 + $0xd0] sm:$0xff] %v3022
        %3087 = vst [vmem:[#allocation3 + $0xd8] sm:$0xff] %v3023
        %3088 = vst [vmem:[#allocation3 + $0xe0] sm:$0xff] %v3024
        %3089 = vst [vmem:[#allocation3 + $0xe8] sm:$0xff] %v3025
        %3090 = vst [vmem:[#allocation3 + $0xf0] sm:$0xff] %v3026
        %3091 = vst [vmem:[#allocation3 + $0xf8] sm:$0xff] %v3027
        %3092 = vst [vmem:[#allocation3 + $0x100] sm:$0xff] %v3028
        %3093 = vst [vmem:[#allocation3 + $0x108] sm:$0xff] %v3029
        %3094 = vst [vmem:[#allocation3 + $0x110] sm:$0xff] %v3030
        %3095 = vst [vmem:[#allocation3 + $0x118] sm:$0xff] %v3031
        %3096 = vst [vmem:[#allocation3 + $0x120] sm:$0xff] %v3032
        %3097 = vst [vmem:[#allocation3 + $0x128] sm:$0xff] %v3033
        %3098 = vst [vmem:[#allocation3 + $0x130] sm:$0xff] %v3034
        %3099 = vst [vmem:[#allocation3 + $0x138] sm:$0xff] %v3035
        %3100 = vst [vmem:[#allocation3 + $0x140] sm:$0xff] %v3036
        %3101 = vst [vmem:[#allocation3 + $0x148] sm:$0xff] %v3037
        %3102 = vst [vmem:[#allocation3 + $0x150] sm:$0xff] %v3038
        %3103 = vst [vmem:[#allocation3 + $0x158] sm:$0xff] %v3039
        %3104 = vst [vmem:[#allocation3 + $0x160] sm:$0xff] %v3040
        %3105 = vst [vmem:[#allocation3 + $0x168] sm:$0xff] %v3041
        %3106 = vst [vmem:[#allocation3 + $0x170] sm:$0xff] %v3042
        %3107 = vst [vmem:[#allocation3 + $0x178] sm:$0xff] %v3043
        %3108 = vst [vmem:[#allocation3 + $0x180] sm:$0xff] %v3044
        %3109 = vst [vmem:[#allocation3 + $0x188] sm:$0xff] %v3045
        %3110 = vst [vmem:[#allocation3 + $0x190] sm:$0xff] %v3046
        %3111 = vst [vmem:[#allocation3 + $0x198] sm:$0xff] %v3047
        %3112 = vst [vmem:[#allocation3 + $0x1a0] sm:$0xff] %v3048
        %3113 = vst [vmem:[#allocation3 + $0x1a8] sm:$0xff] %v3049
        %3114 = vst [vmem:[#allocation3 + $0x1b0] sm:$0xff] %v3050
        %3115 = vst [vmem:[#allocation3 + $0x1b8] sm:$0xff] %v3051
        %3116 = vst [vmem:[#allocation3 + $0x1c0] sm:$0xff] %v3052
        %3117 = vst [vmem:[#allocation3 + $0x1c8] sm:$0xff] %v3053
        %3118 = vst [vmem:[#allocation3 + $0x1d0] sm:$0xff] %v3054
        %3119 = vst [vmem:[#allocation3 + $0x1d8] sm:$0xff] %v3055
        %3120 = vst [vmem:[#allocation3 + $0x1e0] sm:$0xff] %v3056
        %3121 = vst [vmem:[#allocation3 + $0x1e8] sm:$0xff] %v3057
        %3122 = vst [vmem:[#allocation3 + $0x1f0] sm:$0xff] %v3058
        %3123 = vst [vmem:[#allocation3 + $0x1f8] sm:$0xff] %v3059
        // Predicated region
        $region65: #{tpu_custom_call.1} parent=47 // pred_check
          %p3124 = pneg %p378
        $region66: #{tpu_custom_call.1} parent=47 // pred_check_branch
          %3126 = sbr.rel (%p3124) target = $region68
        $region67: #{tpu_custom_call.1} parent=47 // pred_region
          %v3127 = vld [vmem:[#allocation3] sm:$0xff]
          %v3128 = vld [vmem:[#allocation3 + $0x8] sm:$0xff]
          %v3129 = vld [vmem:[#allocation3 + $0x10] sm:$0xff]
          %v3130 = vld [vmem:[#allocation3 + $0x18] sm:$0xff]
          %v3131 = vld [vmem:[#allocation3 + $0x20] sm:$0xff]
          %v3132 = vld [vmem:[#allocation3 + $0x28] sm:$0xff]
          %v3133 = vld [vmem:[#allocation3 + $0x30] sm:$0xff]
          %v3134 = vld [vmem:[#allocation3 + $0x38] sm:$0xff]
          %v3135 = vld [vmem:[#allocation3 + $0x40] sm:$0xff]
          %v3136 = vld [vmem:[#allocation3 + $0x48] sm:$0xff]
          %v3137 = vld [vmem:[#allocation3 + $0x50] sm:$0xff]
          %v3138 = vld [vmem:[#allocation3 + $0x58] sm:$0xff]
          %v3139 = vld [vmem:[#allocation3 + $0x60] sm:$0xff]
          %v3140 = vld [vmem:[#allocation3 + $0x68] sm:$0xff]
          %v3141 = vld [vmem:[#allocation3 + $0x70] sm:$0xff]
          %v3142 = vld [vmem:[#allocation3 + $0x78] sm:$0xff]
          %v3143 = vld [vmem:[#allocation3 + $0x80] sm:$0xff]
          %v3144 = vld [vmem:[#allocation3 + $0x88] sm:$0xff]
          %v3145 = vld [vmem:[#allocation3 + $0x90] sm:$0xff]
          %v3146 = vld [vmem:[#allocation3 + $0x98] sm:$0xff]
          %v3147 = vld [vmem:[#allocation3 + $0xa0] sm:$0xff]
          %v3148 = vld [vmem:[#allocation3 + $0xa8] sm:$0xff]
          %v3149 = vld [vmem:[#allocation3 + $0xb0] sm:$0xff]
          %v3150 = vld [vmem:[#allocation3 + $0xb8] sm:$0xff]
          %v3151 = vld [vmem:[#allocation3 + $0xc0] sm:$0xff]
          %v3152 = vld [vmem:[#allocation3 + $0xc8] sm:$0xff]
          %v3153 = vld [vmem:[#allocation3 + $0xd0] sm:$0xff]
          %v3154 = vld [vmem:[#allocation3 + $0xd8] sm:$0xff]
          %v3155 = vld [vmem:[#allocation3 + $0xe0] sm:$0xff]
          %v3156 = vld [vmem:[#allocation3 + $0xe8] sm:$0xff]
          %v3157 = vld [vmem:[#allocation3 + $0xf0] sm:$0xff]
          %v3158 = vld [vmem:[#allocation3 + $0xf8] sm:$0xff]
          %v3159 = vld [vmem:[#allocation3 + $0x100] sm:$0xff]
          %v3160 = vld [vmem:[#allocation3 + $0x108] sm:$0xff]
          %v3161 = vld [vmem:[#allocation3 + $0x110] sm:$0xff]
          %v3162 = vld [vmem:[#allocation3 + $0x118] sm:$0xff]
          %v3163 = vld [vmem:[#allocation3 + $0x120] sm:$0xff]
          %v3164 = vld [vmem:[#allocation3 + $0x128] sm:$0xff]
          %v3165 = vld [vmem:[#allocation3 + $0x130] sm:$0xff]
          %v3166 = vld [vmem:[#allocation3 + $0x138] sm:$0xff]
          %v3167 = vld [vmem:[#allocation3 + $0x140] sm:$0xff]
          %v3168 = vld [vmem:[#allocation3 + $0x148] sm:$0xff]
          %v3169 = vld [vmem:[#allocation3 + $0x150] sm:$0xff]
          %v3170 = vld [vmem:[#allocation3 + $0x158] sm:$0xff]
          %v3171 = vld [vmem:[#allocation3 + $0x160] sm:$0xff]
          %v3172 = vld [vmem:[#allocation3 + $0x168] sm:$0xff]
          %v3173 = vld [vmem:[#allocation3 + $0x170] sm:$0xff]
          %v3174 = vld [vmem:[#allocation3 + $0x178] sm:$0xff]
          %v3175 = vld [vmem:[#allocation3 + $0x180] sm:$0xff]
          %v3176 = vld [vmem:[#allocation3 + $0x188] sm:$0xff]
          %v3177 = vld [vmem:[#allocation3 + $0x190] sm:$0xff]
          %v3178 = vld [vmem:[#allocation3 + $0x198] sm:$0xff]
          %v3179 = vld [vmem:[#allocation3 + $0x1a0] sm:$0xff]
          %v3180 = vld [vmem:[#allocation3 + $0x1a8] sm:$0xff]
          %v3181 = vld [vmem:[#allocation3 + $0x1b0] sm:$0xff]
          %v3182 = vld [vmem:[#allocation3 + $0x1b8] sm:$0xff]
          %v3183 = vld [vmem:[#allocation3 + $0x1c0] sm:$0xff]
          %v3184 = vld [vmem:[#allocation3 + $0x1c8] sm:$0xff]
          %v3185 = vld [vmem:[#allocation3 + $0x1d0] sm:$0xff]
          %v3186 = vld [vmem:[#allocation3 + $0x1d8] sm:$0xff]
          %v3187 = vld [vmem:[#allocation3 + $0x1e0] sm:$0xff]
          %v3188 = vld [vmem:[#allocation3 + $0x1e8] sm:$0xff]
          %v3189 = vld [vmem:[#allocation3 + $0x1f0] sm:$0xff]
          %v3190 = vld [vmem:[#allocation3 + $0x1f8] sm:$0xff]
          %3191 = vadd.xlane.f32.xlu0 %v3127
          %v3192 = vpop.xlane.xlu0 %3191
          %3193 = vadd.xlane.f32.xlu0 %v3128
          %v3194 = vpop.xlane.xlu0 %3193
          %3195 = vadd.xlane.f32.xlu0 %v3129
          %v3196 = vpop.xlane.xlu0 %3195
          %3197 = vadd.xlane.f32.xlu0 %v3130
          %v3198 = vpop.xlane.xlu0 %3197
          %3199 = vadd.xlane.f32.xlu0 %v3131
          %v3200 = vpop.xlane.xlu0 %3199
          %3201 = vadd.xlane.f32.xlu0 %v3132
          %v3202 = vpop.xlane.xlu0 %3201
          %3203 = vadd.xlane.f32.xlu0 %v3133
          %v3204 = vpop.xlane.xlu0 %3203
          %3205 = vadd.xlane.f32.xlu0 %v3134
          %v3206 = vpop.xlane.xlu0 %3205
          %3207 = vadd.xlane.f32.xlu0 %v3135
          %v3208 = vpop.xlane.xlu0 %3207
          %3209 = vadd.xlane.f32.xlu0 %v3136
          %v3210 = vpop.xlane.xlu0 %3209
          %3211 = vadd.xlane.f32.xlu0 %v3137
          %v3212 = vpop.xlane.xlu0 %3211
          %3213 = vadd.xlane.f32.xlu0 %v3138
          %v3214 = vpop.xlane.xlu0 %3213
          %3215 = vadd.xlane.f32.xlu0 %v3139
          %v3216 = vpop.xlane.xlu0 %3215
          %3217 = vadd.xlane.f32.xlu0 %v3140
          %v3218 = vpop.xlane.xlu0 %3217
          %3219 = vadd.xlane.f32.xlu0 %v3141
          %v3220 = vpop.xlane.xlu0 %3219
          %3221 = vadd.xlane.f32.xlu0 %v3142
          %v3222 = vpop.xlane.xlu0 %3221
          %3223 = vadd.xlane.f32.xlu0 %v3143
          %v3224 = vpop.xlane.xlu0 %3223
          %3225 = vadd.xlane.f32.xlu0 %v3144
          %v3226 = vpop.xlane.xlu0 %3225
          %3227 = vadd.xlane.f32.xlu0 %v3145
          %v3228 = vpop.xlane.xlu0 %3227
          %3229 = vadd.xlane.f32.xlu0 %v3146
          %v3230 = vpop.xlane.xlu0 %3229
          %3231 = vadd.xlane.f32.xlu0 %v3147
          %v3232 = vpop.xlane.xlu0 %3231
          %3233 = vadd.xlane.f32.xlu0 %v3148
          %v3234 = vpop.xlane.xlu0 %3233
          %3235 = vadd.xlane.f32.xlu0 %v3149
          %v3236 = vpop.xlane.xlu0 %3235
          %3237 = vadd.xlane.f32.xlu0 %v3150
          %v3238 = vpop.xlane.xlu0 %3237
          %3239 = vadd.xlane.f32.xlu0 %v3151
          %v3240 = vpop.xlane.xlu0 %3239
          %3241 = vadd.xlane.f32.xlu0 %v3152
          %v3242 = vpop.xlane.xlu0 %3241
          %3243 = vadd.xlane.f32.xlu0 %v3153
          %v3244 = vpop.xlane.xlu0 %3243
          %3245 = vadd.xlane.f32.xlu0 %v3154
          %v3246 = vpop.xlane.xlu0 %3245
          %3247 = vadd.xlane.f32.xlu0 %v3155
          %v3248 = vpop.xlane.xlu0 %3247
          %3249 = vadd.xlane.f32.xlu0 %v3156
          %v3250 = vpop.xlane.xlu0 %3249
          %3251 = vadd.xlane.f32.xlu0 %v3157
          %v3252 = vpop.xlane.xlu0 %3251
          %3253 = vadd.xlane.f32.xlu0 %v3158
          %v3254 = vpop.xlane.xlu0 %3253
          %3255 = vadd.xlane.f32.xlu0 %v3159
          %v3256 = vpop.xlane.xlu0 %3255
          %3257 = vadd.xlane.f32.xlu0 %v3160
          %v3258 = vpop.xlane.xlu0 %3257
          %3259 = vadd.xlane.f32.xlu0 %v3161
          %v3260 = vpop.xlane.xlu0 %3259
          %3261 = vadd.xlane.f32.xlu0 %v3162
          %v3262 = vpop.xlane.xlu0 %3261
          %3263 = vadd.xlane.f32.xlu0 %v3163
          %v3264 = vpop.xlane.xlu0 %3263
          %3265 = vadd.xlane.f32.xlu0 %v3164
          %v3266 = vpop.xlane.xlu0 %3265
          %3267 = vadd.xlane.f32.xlu0 %v3165
          %v3268 = vpop.xlane.xlu0 %3267
          %3269 = vadd.xlane.f32.xlu0 %v3166
          %v3270 = vpop.xlane.xlu0 %3269
          %3271 = vadd.xlane.f32.xlu0 %v3167
          %v3272 = vpop.xlane.xlu0 %3271
          %3273 = vadd.xlane.f32.xlu0 %v3168
          %v3274 = vpop.xlane.xlu0 %3273
          %3275 = vadd.xlane.f32.xlu0 %v3169
          %v3276 = vpop.xlane.xlu0 %3275
          %3277 = vadd.xlane.f32.xlu0 %v3170
          %v3278 = vpop.xlane.xlu0 %3277
          %3279 = vadd.xlane.f32.xlu0 %v3171
          %v3280 = vpop.xlane.xlu0 %3279
          %3281 = vadd.xlane.f32.xlu0 %v3172
          %v3282 = vpop.xlane.xlu0 %3281
          %3283 = vadd.xlane.f32.xlu0 %v3173
          %v3284 = vpop.xlane.xlu0 %3283
          %3285 = vadd.xlane.f32.xlu0 %v3174
          %v3286 = vpop.xlane.xlu0 %3285
          %3287 = vadd.xlane.f32.xlu0 %v3175
          %v3288 = vpop.xlane.xlu0 %3287
          %3289 = vadd.xlane.f32.xlu0 %v3176
          %v3290 = vpop.xlane.xlu0 %3289
          %3291 = vadd.xlane.f32.xlu0 %v3177
          %v3292 = vpop.xlane.xlu0 %3291
          %3293 = vadd.xlane.f32.xlu0 %v3178
          %v3294 = vpop.xlane.xlu0 %3293
          %3295 = vadd.xlane.f32.xlu0 %v3179
          %v3296 = vpop.xlane.xlu0 %3295
          %3297 = vadd.xlane.f32.xlu0 %v3180
          %v3298 = vpop.xlane.xlu0 %3297
          %3299 = vadd.xlane.f32.xlu0 %v3181
          %v3300 = vpop.xlane.xlu0 %3299
          %3301 = vadd.xlane.f32.xlu0 %v3182
          %v3302 = vpop.xlane.xlu0 %3301
          %3303 = vadd.xlane.f32.xlu0 %v3183
          %v3304 = vpop.xlane.xlu0 %3303
          %3305 = vadd.xlane.f32.xlu0 %v3184
          %v3306 = vpop.xlane.xlu0 %3305
          %3307 = vadd.xlane.f32.xlu0 %v3185
          %v3308 = vpop.xlane.xlu0 %3307
          %3309 = vadd.xlane.f32.xlu0 %v3186
          %v3310 = vpop.xlane.xlu0 %3309
          %3311 = vadd.xlane.f32.xlu0 %v3187
          %v3312 = vpop.xlane.xlu0 %3311
          %3313 = vadd.xlane.f32.xlu0 %v3188
          %v3314 = vpop.xlane.xlu0 %3313
          %3315 = vadd.xlane.f32.xlu0 %v3189
          %v3316 = vpop.xlane.xlu0 %3315
          %3317 = vadd.xlane.f32.xlu0 %v3190
          %v3318 = vpop.xlane.xlu0 %3317
          %v3319 = vrcp.pop 128.0
          %v3320 = vmul.f32 %v3192, %v3319
          %v3321 = vmul.f32 %v3194, %v3319
          %v3322 = vmul.f32 %v3196, %v3319
          %v3323 = vmul.f32 %v3198, %v3319
          %v3324 = vmul.f32 %v3200, %v3319
          %v3325 = vmul.f32 %v3202, %v3319
          %v3326 = vmul.f32 %v3204, %v3319
          %v3327 = vmul.f32 %v3206, %v3319
          %v3328 = vmul.f32 %v3208, %v3319
          %v3329 = vmul.f32 %v3210, %v3319
          %v3330 = vmul.f32 %v3212, %v3319
          %v3331 = vmul.f32 %v3214, %v3319
          %v3332 = vmul.f32 %v3216, %v3319
          %v3333 = vmul.f32 %v3218, %v3319
          %v3334 = vmul.f32 %v3220, %v3319
          %v3335 = vmul.f32 %v3222, %v3319
          %v3336 = vmul.f32 %v3224, %v3319
          %v3337 = vmul.f32 %v3226, %v3319
          %v3338 = vmul.f32 %v3228, %v3319
          %v3339 = vmul.f32 %v3230, %v3319
          %v3340 = vmul.f32 %v3232, %v3319
          %v3341 = vmul.f32 %v3234, %v3319
          %v3342 = vmul.f32 %v3236, %v3319
          %v3343 = vmul.f32 %v3238, %v3319
          %v3344 = vmul.f32 %v3240, %v3319
          %v3345 = vmul.f32 %v3242, %v3319
          %v3346 = vmul.f32 %v3244, %v3319
          %v3347 = vmul.f32 %v3246, %v3319
          %v3348 = vmul.f32 %v3248, %v3319
          %v3349 = vmul.f32 %v3250, %v3319
          %v3350 = vmul.f32 %v3252, %v3319
          %v3351 = vmul.f32 %v3254, %v3319
          %v3352 = vmul.f32 %v3256, %v3319
          %v3353 = vmul.f32 %v3258, %v3319
          %v3354 = vmul.f32 %v3260, %v3319
          %v3355 = vmul.f32 %v3262, %v3319
          %v3356 = vmul.f32 %v3264, %v3319
          %v3357 = vmul.f32 %v3266, %v3319
          %v3358 = vmul.f32 %v3268, %v3319
          %v3359 = vmul.f32 %v3270, %v3319
          %v3360 = vmul.f32 %v3272, %v3319
          %v3361 = vmul.f32 %v3274, %v3319
          %v3362 = vmul.f32 %v3276, %v3319
          %v3363 = vmul.f32 %v3278, %v3319
          %v3364 = vmul.f32 %v3280, %v3319
          %v3365 = vmul.f32 %v3282, %v3319
          %v3366 = vmul.f32 %v3284, %v3319
          %v3367 = vmul.f32 %v3286, %v3319
          %v3368 = vmul.f32 %v3288, %v3319
          %v3369 = vmul.f32 %v3290, %v3319
          %v3370 = vmul.f32 %v3292, %v3319
          %v3371 = vmul.f32 %v3294, %v3319
          %v3372 = vmul.f32 %v3296, %v3319
          %v3373 = vmul.f32 %v3298, %v3319
          %v3374 = vmul.f32 %v3300, %v3319
          %v3375 = vmul.f32 %v3302, %v3319
          %v3376 = vmul.f32 %v3304, %v3319
          %v3377 = vmul.f32 %v3306, %v3319
          %v3378 = vmul.f32 %v3308, %v3319
          %v3379 = vmul.f32 %v3310, %v3319
          %v3380 = vmul.f32 %v3312, %v3319
          %v3381 = vmul.f32 %v3314, %v3319
          %v3382 = vmul.f32 %v3316, %v3319
          %v3383 = vmul.f32 %v3318, %v3319
          %v3384 = vsub.f32 %v3127, %v3320
          %v3385 = vsub.f32 %v3128, %v3321
          %v3386 = vsub.f32 %v3129, %v3322
          %v3387 = vsub.f32 %v3130, %v3323
          %v3388 = vsub.f32 %v3131, %v3324
          %v3389 = vsub.f32 %v3132, %v3325
          %v3390 = vsub.f32 %v3133, %v3326
          %v3391 = vsub.f32 %v3134, %v3327
          %v3392 = vsub.f32 %v3135, %v3328
          %v3393 = vsub.f32 %v3136, %v3329
          %v3394 = vsub.f32 %v3137, %v3330
          %v3395 = vsub.f32 %v3138, %v3331
          %v3396 = vsub.f32 %v3139, %v3332
          %v3397 = vsub.f32 %v3140, %v3333
          %v3398 = vsub.f32 %v3141, %v3334
          %v3399 = vsub.f32 %v3142, %v3335
          %v3400 = vsub.f32 %v3143, %v3336
          %v3401 = vsub.f32 %v3144, %v3337
          %v3402 = vsub.f32 %v3145, %v3338
          %v3403 = vsub.f32 %v3146, %v3339
          %v3404 = vsub.f32 %v3147, %v3340
          %v3405 = vsub.f32 %v3148, %v3341
          %v3406 = vsub.f32 %v3149, %v3342
          %v3407 = vsub.f32 %v3150, %v3343
          %v3408 = vsub.f32 %v3151, %v3344
          %v3409 = vsub.f32 %v3152, %v3345
          %v3410 = vsub.f32 %v3153, %v3346
          %v3411 = vsub.f32 %v3154, %v3347
          %v3412 = vsub.f32 %v3155, %v3348
          %v3413 = vsub.f32 %v3156, %v3349
          %v3414 = vsub.f32 %v3157, %v3350
          %v3415 = vsub.f32 %v3158, %v3351
          %v3416 = vsub.f32 %v3159, %v3352
          %v3417 = vsub.f32 %v3160, %v3353
          %v3418 = vsub.f32 %v3161, %v3354
          %v3419 = vsub.f32 %v3162, %v3355
          %v3420 = vsub.f32 %v3163, %v3356
          %v3421 = vsub.f32 %v3164, %v3357
          %v3422 = vsub.f32 %v3165, %v3358
          %v3423 = vsub.f32 %v3166, %v3359
          %v3424 = vsub.f32 %v3167, %v3360
          %v3425 = vsub.f32 %v3168, %v3361
          %v3426 = vsub.f32 %v3169, %v3362
          %v3427 = vsub.f32 %v3170, %v3363
          %v3428 = vsub.f32 %v3171, %v3364
          %v3429 = vsub.f32 %v3172, %v3365
          %v3430 = vsub.f32 %v3173, %v3366
          %v3431 = vsub.f32 %v3174, %v3367
          %v3432 = vsub.f32 %v3175, %v3368
          %v3433 = vsub.f32 %v3176, %v3369
          %v3434 = vsub.f32 %v3177, %v3370
          %v3435 = vsub.f32 %v3178, %v3371
          %v3436 = vsub.f32 %v3179, %v3372
          %v3437 = vsub.f32 %v3180, %v3373
          %v3438 = vsub.f32 %v3181, %v3374
          %v3439 = vsub.f32 %v3182, %v3375
          %v3440 = vsub.f32 %v3183, %v3376
          %v3441 = vsub.f32 %v3184, %v3377
          %v3442 = vsub.f32 %v3185, %v3378
          %v3443 = vsub.f32 %v3186, %v3379
          %v3444 = vsub.f32 %v3187, %v3380
          %v3445 = vsub.f32 %v3188, %v3381
          %v3446 = vsub.f32 %v3189, %v3382
          %v3447 = vsub.f32 %v3190, %v3383
          %v3448 = vmul.f32 %v3384, %v3384
          %v3449 = vmul.f32 %v3385, %v3385
          %v3450 = vmul.f32 %v3386, %v3386
          %v3451 = vmul.f32 %v3387, %v3387
          %v3452 = vmul.f32 %v3388, %v3388
          %v3453 = vmul.f32 %v3389, %v3389
          %v3454 = vmul.f32 %v3390, %v3390
          %v3455 = vmul.f32 %v3391, %v3391
          %v3456 = vmul.f32 %v3392, %v3392
          %v3457 = vmul.f32 %v3393, %v3393
          %v3458 = vmul.f32 %v3394, %v3394
          %v3459 = vmul.f32 %v3395, %v3395
          %v3460 = vmul.f32 %v3396, %v3396
          %v3461 = vmul.f32 %v3397, %v3397
          %v3462 = vmul.f32 %v3398, %v3398
          %v3463 = vmul.f32 %v3399, %v3399
          %v3464 = vmul.f32 %v3400, %v3400
          %v3465 = vmul.f32 %v3401, %v3401
          %v3466 = vmul.f32 %v3402, %v3402
          %v3467 = vmul.f32 %v3403, %v3403
          %v3468 = vmul.f32 %v3404, %v3404
          %v3469 = vmul.f32 %v3405, %v3405
          %v3470 = vmul.f32 %v3406, %v3406
          %v3471 = vmul.f32 %v3407, %v3407
          %v3472 = vmul.f32 %v3408, %v3408
          %v3473 = vmul.f32 %v3409, %v3409
          %v3474 = vmul.f32 %v3410, %v3410
          %v3475 = vmul.f32 %v3411, %v3411
          %v3476 = vmul.f32 %v3412, %v3412
          %v3477 = vmul.f32 %v3413, %v3413
          %v3478 = vmul.f32 %v3414, %v3414
          %v3479 = vmul.f32 %v3415, %v3415
          %v3480 = vmul.f32 %v3416, %v3416
          %v3481 = vmul.f32 %v3417, %v3417
          %v3482 = vmul.f32 %v3418, %v3418
          %v3483 = vmul.f32 %v3419, %v3419
          %v3484 = vmul.f32 %v3420, %v3420
          %v3485 = vmul.f32 %v3421, %v3421
          %v3486 = vmul.f32 %v3422, %v3422
          %v3487 = vmul.f32 %v3423, %v3423
          %v3488 = vmul.f32 %v3424, %v3424
          %v3489 = vmul.f32 %v3425, %v3425
          %v3490 = vmul.f32 %v3426, %v3426
          %v3491 = vmul.f32 %v3427, %v3427
          %v3492 = vmul.f32 %v3428, %v3428
          %v3493 = vmul.f32 %v3429, %v3429
          %v3494 = vmul.f32 %v3430, %v3430
          %v3495 = vmul.f32 %v3431, %v3431
          %v3496 = vmul.f32 %v3432, %v3432
          %v3497 = vmul.f32 %v3433, %v3433
          %v3498 = vmul.f32 %v3434, %v3434
          %v3499 = vmul.f32 %v3435, %v3435
          %v3500 = vmul.f32 %v3436, %v3436
          %v3501 = vmul.f32 %v3437, %v3437
          %v3502 = vmul.f32 %v3438, %v3438
          %v3503 = vmul.f32 %v3439, %v3439
          %v3504 = vmul.f32 %v3440, %v3440
          %v3505 = vmul.f32 %v3441, %v3441
          %v3506 = vmul.f32 %v3442, %v3442
          %v3507 = vmul.f32 %v3443, %v3443
          %v3508 = vmul.f32 %v3444, %v3444
          %v3509 = vmul.f32 %v3445, %v3445
          %v3510 = vmul.f32 %v3446, %v3446
          %v3511 = vmul.f32 %v3447, %v3447
          %3512 = vadd.xlane.f32.xlu0 %v3448
          %v3513 = vpop.xlane.xlu0 %3512
          %3514 = vadd.xlane.f32.xlu0 %v3449
          %v3515 = vpop.xlane.xlu0 %3514
          %3516 = vadd.xlane.f32.xlu0 %v3450
          %v3517 = vpop.xlane.xlu0 %3516
          %3518 = vadd.xlane.f32.xlu0 %v3451
          %v3519 = vpop.xlane.xlu0 %3518
          %3520 = vadd.xlane.f32.xlu0 %v3452
          %v3521 = vpop.xlane.xlu0 %3520
          %3522 = vadd.xlane.f32.xlu0 %v3453
          %v3523 = vpop.xlane.xlu0 %3522
          %3524 = vadd.xlane.f32.xlu0 %v3454
          %v3525 = vpop.xlane.xlu0 %3524
          %3526 = vadd.xlane.f32.xlu0 %v3455
          %v3527 = vpop.xlane.xlu0 %3526
          %3528 = vadd.xlane.f32.xlu0 %v3456
          %v3529 = vpop.xlane.xlu0 %3528
          %3530 = vadd.xlane.f32.xlu0 %v3457
          %v3531 = vpop.xlane.xlu0 %3530
          %3532 = vadd.xlane.f32.xlu0 %v3458
          %v3533 = vpop.xlane.xlu0 %3532
          %3534 = vadd.xlane.f32.xlu0 %v3459
          %v3535 = vpop.xlane.xlu0 %3534
          %3536 = vadd.xlane.f32.xlu0 %v3460
          %v3537 = vpop.xlane.xlu0 %3536
          %3538 = vadd.xlane.f32.xlu0 %v3461
          %v3539 = vpop.xlane.xlu0 %3538
          %3540 = vadd.xlane.f32.xlu0 %v3462
          %v3541 = vpop.xlane.xlu0 %3540
          %3542 = vadd.xlane.f32.xlu0 %v3463
          %v3543 = vpop.xlane.xlu0 %3542
          %3544 = vadd.xlane.f32.xlu0 %v3464
          %v3545 = vpop.xlane.xlu0 %3544
          %3546 = vadd.xlane.f32.xlu0 %v3465
          %v3547 = vpop.xlane.xlu0 %3546
          %3548 = vadd.xlane.f32.xlu0 %v3466
          %v3549 = vpop.xlane.xlu0 %3548
          %3550 = vadd.xlane.f32.xlu0 %v3467
          %v3551 = vpop.xlane.xlu0 %3550
          %3552 = vadd.xlane.f32.xlu0 %v3468
          %v3553 = vpop.xlane.xlu0 %3552
          %3554 = vadd.xlane.f32.xlu0 %v3469
          %v3555 = vpop.xlane.xlu0 %3554
          %3556 = vadd.xlane.f32.xlu0 %v3470
          %v3557 = vpop.xlane.xlu0 %3556
          %3558 = vadd.xlane.f32.xlu0 %v3471
          %v3559 = vpop.xlane.xlu0 %3558
          %3560 = vadd.xlane.f32.xlu0 %v3472
          %v3561 = vpop.xlane.xlu0 %3560
          %3562 = vadd.xlane.f32.xlu0 %v3473
          %v3563 = vpop.xlane.xlu0 %3562
          %3564 = vadd.xlane.f32.xlu0 %v3474
          %v3565 = vpop.xlane.xlu0 %3564
          %3566 = vadd.xlane.f32.xlu0 %v3475
          %v3567 = vpop.xlane.xlu0 %3566
          %3568 = vadd.xlane.f32.xlu0 %v3476
          %v3569 = vpop.xlane.xlu0 %3568
          %3570 = vadd.xlane.f32.xlu0 %v3477
          %v3571 = vpop.xlane.xlu0 %3570
          %3572 = vadd.xlane.f32.xlu0 %v3478
          %v3573 = vpop.xlane.xlu0 %3572
          %3574 = vadd.xlane.f32.xlu0 %v3479
          %v3575 = vpop.xlane.xlu0 %3574
          %3576 = vadd.xlane.f32.xlu0 %v3480
          %v3577 = vpop.xlane.xlu0 %3576
          %3578 = vadd.xlane.f32.xlu0 %v3481
          %v3579 = vpop.xlane.xlu0 %3578
          %3580 = vadd.xlane.f32.xlu0 %v3482
          %v3581 = vpop.xlane.xlu0 %3580
          %3582 = vadd.xlane.f32.xlu0 %v3483
          %v3583 = vpop.xlane.xlu0 %3582
          %3584 = vadd.xlane.f32.xlu0 %v3484
          %v3585 = vpop.xlane.xlu0 %3584
          %3586 = vadd.xlane.f32.xlu0 %v3485
          %v3587 = vpop.xlane.xlu0 %3586
          %3588 = vadd.xlane.f32.xlu0 %v3486
          %v3589 = vpop.xlane.xlu0 %3588
          %3590 = vadd.xlane.f32.xlu0 %v3487
          %v3591 = vpop.xlane.xlu0 %3590
          %3592 = vadd.xlane.f32.xlu0 %v3488
          %v3593 = vpop.xlane.xlu0 %3592
          %3594 = vadd.xlane.f32.xlu0 %v3489
          %v3595 = vpop.xlane.xlu0 %3594
          %3596 = vadd.xlane.f32.xlu0 %v3490
          %v3597 = vpop.xlane.xlu0 %3596
          %3598 = vadd.xlane.f32.xlu0 %v3491
          %v3599 = vpop.xlane.xlu0 %3598
          %3600 = vadd.xlane.f32.xlu0 %v3492
          %v3601 = vpop.xlane.xlu0 %3600
          %3602 = vadd.xlane.f32.xlu0 %v3493
          %v3603 = vpop.xlane.xlu0 %3602
          %3604 = vadd.xlane.f32.xlu0 %v3494
          %v3605 = vpop.xlane.xlu0 %3604
          %3606 = vadd.xlane.f32.xlu0 %v3495
          %v3607 = vpop.xlane.xlu0 %3606
          %3608 = vadd.xlane.f32.xlu0 %v3496
          %v3609 = vpop.xlane.xlu0 %3608
          %3610 = vadd.xlane.f32.xlu0 %v3497
          %v3611 = vpop.xlane.xlu0 %3610
          %3612 = vadd.xlane.f32.xlu0 %v3498
          %v3613 = vpop.xlane.xlu0 %3612
          %3614 = vadd.xlane.f32.xlu0 %v3499
          %v3615 = vpop.xlane.xlu0 %3614
          %3616 = vadd.xlane.f32.xlu0 %v3500
          %v3617 = vpop.xlane.xlu0 %3616
          %3618 = vadd.xlane.f32.xlu0 %v3501
          %v3619 = vpop.xlane.xlu0 %3618
          %3620 = vadd.xlane.f32.xlu0 %v3502
          %v3621 = vpop.xlane.xlu0 %3620
          %3622 = vadd.xlane.f32.xlu0 %v3503
          %v3623 = vpop.xlane.xlu0 %3622
          %3624 = vadd.xlane.f32.xlu0 %v3504
          %v3625 = vpop.xlane.xlu0 %3624
          %3626 = vadd.xlane.f32.xlu0 %v3505
          %v3627 = vpop.xlane.xlu0 %3626
          %3628 = vadd.xlane.f32.xlu0 %v3506
          %v3629 = vpop.xlane.xlu0 %3628
          %3630 = vadd.xlane.f32.xlu0 %v3507
          %v3631 = vpop.xlane.xlu0 %3630
          %3632 = vadd.xlane.f32.xlu0 %v3508
          %v3633 = vpop.xlane.xlu0 %3632
          %3634 = vadd.xlane.f32.xlu0 %v3509
          %v3635 = vpop.xlane.xlu0 %3634
          %3636 = vadd.xlane.f32.xlu0 %v3510
          %v3637 = vpop.xlane.xlu0 %3636
          %3638 = vadd.xlane.f32.xlu0 %v3511
          %v3639 = vpop.xlane.xlu0 %3638
          %v3640 = vmul.f32 %v3513, %v3319
          %v3641 = vmul.f32 %v3515, %v3319
          %v3642 = vmul.f32 %v3517, %v3319
          %v3643 = vmul.f32 %v3519, %v3319
          %v3644 = vmul.f32 %v3521, %v3319
          %v3645 = vmul.f32 %v3523, %v3319
          %v3646 = vmul.f32 %v3525, %v3319
          %v3647 = vmul.f32 %v3527, %v3319
          %v3648 = vmul.f32 %v3529, %v3319
          %v3649 = vmul.f32 %v3531, %v3319
          %v3650 = vmul.f32 %v3533, %v3319
          %v3651 = vmul.f32 %v3535, %v3319
          %v3652 = vmul.f32 %v3537, %v3319
          %v3653 = vmul.f32 %v3539, %v3319
          %v3654 = vmul.f32 %v3541, %v3319
          %v3655 = vmul.f32 %v3543, %v3319
          %v3656 = vmul.f32 %v3545, %v3319
          %v3657 = vmul.f32 %v3547, %v3319
          %v3658 = vmul.f32 %v3549, %v3319
          %v3659 = vmul.f32 %v3551, %v3319
          %v3660 = vmul.f32 %v3553, %v3319
          %v3661 = vmul.f32 %v3555, %v3319
          %v3662 = vmul.f32 %v3557, %v3319
          %v3663 = vmul.f32 %v3559, %v3319
          %v3664 = vmul.f32 %v3561, %v3319
          %v3665 = vmul.f32 %v3563, %v3319
          %v3666 = vmul.f32 %v3565, %v3319
          %v3667 = vmul.f32 %v3567, %v3319
          %v3668 = vmul.f32 %v3569, %v3319
          %v3669 = vmul.f32 %v3571, %v3319
          %v3670 = vmul.f32 %v3573, %v3319
          %v3671 = vmul.f32 %v3575, %v3319
          %v3672 = vmul.f32 %v3577, %v3319
          %v3673 = vmul.f32 %v3579, %v3319
          %v3674 = vmul.f32 %v3581, %v3319
          %v3675 = vmul.f32 %v3583, %v3319
          %v3676 = vmul.f32 %v3585, %v3319
          %v3677 = vmul.f32 %v3587, %v3319
          %v3678 = vmul.f32 %v3589, %v3319
          %v3679 = vmul.f32 %v3591, %v3319
          %v3680 = vmul.f32 %v3593, %v3319
          %v3681 = vmul.f32 %v3595, %v3319
          %v3682 = vmul.f32 %v3597, %v3319
          %v3683 = vmul.f32 %v3599, %v3319
          %v3684 = vmul.f32 %v3601, %v3319
          %v3685 = vmul.f32 %v3603, %v3319
          %v3686 = vmul.f32 %v3605, %v3319
          %v3687 = vmul.f32 %v3607, %v3319
          %v3688 = vmul.f32 %v3609, %v3319
          %v3689 = vmul.f32 %v3611, %v3319
          %v3690 = vmul.f32 %v3613, %v3319
          %v3691 = vmul.f32 %v3615, %v3319
          %v3692 = vmul.f32 %v3617, %v3319
          %v3693 = vmul.f32 %v3619, %v3319
          %v3694 = vmul.f32 %v3621, %v3319
          %v3695 = vmul.f32 %v3623, %v3319
          %v3696 = vmul.f32 %v3625, %v3319
          %v3697 = vmul.f32 %v3627, %v3319
          %v3698 = vmul.f32 %v3629, %v3319
          %v3699 = vmul.f32 %v3631, %v3319
          %v3700 = vmul.f32 %v3633, %v3319
          %v3701 = vmul.f32 %v3635, %v3319
          %v3702 = vmul.f32 %v3637, %v3319
          %v3703 = vmul.f32 %v3639, %v3319
          %v3704 = vadd.f32 %v3640, 1e-05
          %v3705 = vadd.f32 %v3641, 1e-05
          %v3706 = vadd.f32 %v3642, 1e-05
          %v3707 = vadd.f32 %v3643, 1e-05
          %v3708 = vadd.f32 %v3644, 1e-05
          %v3709 = vadd.f32 %v3645, 1e-05
          %v3710 = vadd.f32 %v3646, 1e-05
          %v3711 = vadd.f32 %v3647, 1e-05
          %v3712 = vadd.f32 %v3648, 1e-05
          %v3713 = vadd.f32 %v3649, 1e-05
          %v3714 = vadd.f32 %v3650, 1e-05
          %v3715 = vadd.f32 %v3651, 1e-05
          %v3716 = vadd.f32 %v3652, 1e-05
          %v3717 = vadd.f32 %v3653, 1e-05
          %v3718 = vadd.f32 %v3654, 1e-05
          %v3719 = vadd.f32 %v3655, 1e-05
          %v3720 = vadd.f32 %v3656, 1e-05
          %v3721 = vadd.f32 %v3657, 1e-05
          %v3722 = vadd.f32 %v3658, 1e-05
          %v3723 = vadd.f32 %v3659, 1e-05
          %v3724 = vadd.f32 %v3660, 1e-05
          %v3725 = vadd.f32 %v3661, 1e-05
          %v3726 = vadd.f32 %v3662, 1e-05
          %v3727 = vadd.f32 %v3663, 1e-05
          %v3728 = vadd.f32 %v3664, 1e-05
          %v3729 = vadd.f32 %v3665, 1e-05
          %v3730 = vadd.f32 %v3666, 1e-05
          %v3731 = vadd.f32 %v3667, 1e-05
          %v3732 = vadd.f32 %v3668, 1e-05
          %v3733 = vadd.f32 %v3669, 1e-05
          %v3734 = vadd.f32 %v3670, 1e-05
          %v3735 = vadd.f32 %v3671, 1e-05
          %v3736 = vadd.f32 %v3672, 1e-05
          %v3737 = vadd.f32 %v3673, 1e-05
          %v3738 = vadd.f32 %v3674, 1e-05
          %v3739 = vadd.f32 %v3675, 1e-05
          %v3740 = vadd.f32 %v3676, 1e-05
          %v3741 = vadd.f32 %v3677, 1e-05
          %v3742 = vadd.f32 %v3678, 1e-05
          %v3743 = vadd.f32 %v3679, 1e-05
          %v3744 = vadd.f32 %v3680, 1e-05
          %v3745 = vadd.f32 %v3681, 1e-05
          %v3746 = vadd.f32 %v3682, 1e-05
          %v3747 = vadd.f32 %v3683, 1e-05
          %v3748 = vadd.f32 %v3684, 1e-05
          %v3749 = vadd.f32 %v3685, 1e-05
          %v3750 = vadd.f32 %v3686, 1e-05
          %v3751 = vadd.f32 %v3687, 1e-05
          %v3752 = vadd.f32 %v3688, 1e-05
          %v3753 = vadd.f32 %v3689, 1e-05
          %v3754 = vadd.f32 %v3690, 1e-05
          %v3755 = vadd.f32 %v3691, 1e-05
          %v3756 = vadd.f32 %v3692, 1e-05
          %v3757 = vadd.f32 %v3693, 1e-05
          %v3758 = vadd.f32 %v3694, 1e-05
          %v3759 = vadd.f32 %v3695, 1e-05
          %v3760 = vadd.f32 %v3696, 1e-05
          %v3761 = vadd.f32 %v3697, 1e-05
          %v3762 = vadd.f32 %v3698, 1e-05
          %v3763 = vadd.f32 %v3699, 1e-05
          %v3764 = vadd.f32 %v3700, 1e-05
          %v3765 = vadd.f32 %v3701, 1e-05
          %v3766 = vadd.f32 %v3702, 1e-05
          %v3767 = vadd.f32 %v3703, 1e-05
          %v3768 = vrsqrt.pop %v3704
          %v3769 = vrsqrt.pop %v3705
          %v3770 = vrsqrt.pop %v3706
          %v3771 = vrsqrt.pop %v3707
          %v3772 = vrsqrt.pop %v3708
          %v3773 = vrsqrt.pop %v3709
          %v3774 = vrsqrt.pop %v3710
          %v3775 = vrsqrt.pop %v3711
          %v3776 = vrsqrt.pop %v3712
          %v3777 = vrsqrt.pop %v3713
          %v3778 = vrsqrt.pop %v3714
          %v3779 = vrsqrt.pop %v3715
          %v3780 = vrsqrt.pop %v3716
          %v3781 = vrsqrt.pop %v3717
          %v3782 = vrsqrt.pop %v3718
          %v3783 = vrsqrt.pop %v3719
          %v3784 = vrsqrt.pop %v3720
          %v3785 = vrsqrt.pop %v3721
          %v3786 = vrsqrt.pop %v3722
          %v3787 = vrsqrt.pop %v3723
          %v3788 = vrsqrt.pop %v3724
          %v3789 = vrsqrt.pop %v3725
          %v3790 = vrsqrt.pop %v3726
          %v3791 = vrsqrt.pop %v3727
          %v3792 = vrsqrt.pop %v3728
          %v3793 = vrsqrt.pop %v3729
          %v3794 = vrsqrt.pop %v3730
          %v3795 = vrsqrt.pop %v3731
          %v3796 = vrsqrt.pop %v3732
          %v3797 = vrsqrt.pop %v3733
          %v3798 = vrsqrt.pop %v3734
          %v3799 = vrsqrt.pop %v3735
          %v3800 = vrsqrt.pop %v3736
          %v3801 = vrsqrt.pop %v3737
          %v3802 = vrsqrt.pop %v3738
          %v3803 = vrsqrt.pop %v3739
          %v3804 = vrsqrt.pop %v3740
          %v3805 = vrsqrt.pop %v3741
          %v3806 = vrsqrt.pop %v3742
          %v3807 = vrsqrt.pop %v3743
          %v3808 = vrsqrt.pop %v3744
          %v3809 = vrsqrt.pop %v3745
          %v3810 = vrsqrt.pop %v3746
          %v3811 = vrsqrt.pop %v3747
          %v3812 = vrsqrt.pop %v3748
          %v3813 = vrsqrt.pop %v3749
          %v3814 = vrsqrt.pop %v3750
          %v3815 = vrsqrt.pop %v3751
          %v3816 = vrsqrt.pop %v3752
          %v3817 = vrsqrt.pop %v3753
          %v3818 = vrsqrt.pop %v3754
          %v3819 = vrsqrt.pop %v3755
          %v3820 = vrsqrt.pop %v3756
          %v3821 = vrsqrt.pop %v3757
          %v3822 = vrsqrt.pop %v3758
          %v3823 = vrsqrt.pop %v3759
          %v3824 = vrsqrt.pop %v3760
          %v3825 = vrsqrt.pop %v3761
          %v3826 = vrsqrt.pop %v3762
          %v3827 = vrsqrt.pop %v3763
          %v3828 = vrsqrt.pop %v3764
          %v3829 = vrsqrt.pop %v3765
          %v3830 = vrsqrt.pop %v3766
          %v3831 = vrsqrt.pop %v3767
          %v3832 = vmul.f32 %v3384, %v3768
          %v3833 = vmul.f32 %v3385, %v3769
          %v3834 = vmul.f32 %v3386, %v3770
          %v3835 = vmul.f32 %v3387, %v3771
          %v3836 = vmul.f32 %v3388, %v3772
          %v3837 = vmul.f32 %v3389, %v3773
          %v3838 = vmul.f32 %v3390, %v3774
          %v3839 = vmul.f32 %v3391, %v3775
          %v3840 = vmul.f32 %v3392, %v3776
          %v3841 = vmul.f32 %v3393, %v3777
          %v3842 = vmul.f32 %v3394, %v3778
          %v3843 = vmul.f32 %v3395, %v3779
          %v3844 = vmul.f32 %v3396, %v3780
          %v3845 = vmul.f32 %v3397, %v3781
          %v3846 = vmul.f32 %v3398, %v3782
          %v3847 = vmul.f32 %v3399, %v3783
          %v3848 = vmul.f32 %v3400, %v3784
          %v3849 = vmul.f32 %v3401, %v3785
          %v3850 = vmul.f32 %v3402, %v3786
          %v3851 = vmul.f32 %v3403, %v3787
          %v3852 = vmul.f32 %v3404, %v3788
          %v3853 = vmul.f32 %v3405, %v3789
          %v3854 = vmul.f32 %v3406, %v3790
          %v3855 = vmul.f32 %v3407, %v3791
          %v3856 = vmul.f32 %v3408, %v3792
          %v3857 = vmul.f32 %v3409, %v3793
          %v3858 = vmul.f32 %v3410, %v3794
          %v3859 = vmul.f32 %v3411, %v3795
          %v3860 = vmul.f32 %v3412, %v3796
          %v3861 = vmul.f32 %v3413, %v3797
          %v3862 = vmul.f32 %v3414, %v3798
          %v3863 = vmul.f32 %v3415, %v3799
          %v3864 = vmul.f32 %v3416, %v3800
          %v3865 = vmul.f32 %v3417, %v3801
          %v3866 = vmul.f32 %v3418, %v3802
          %v3867 = vmul.f32 %v3419, %v3803
          %v3868 = vmul.f32 %v3420, %v3804
          %v3869 = vmul.f32 %v3421, %v3805
          %v3870 = vmul.f32 %v3422, %v3806
          %v3871 = vmul.f32 %v3423, %v3807
          %v3872 = vmul.f32 %v3424, %v3808
          %v3873 = vmul.f32 %v3425, %v3809
          %v3874 = vmul.f32 %v3426, %v3810
          %v3875 = vmul.f32 %v3427, %v3811
          %v3876 = vmul.f32 %v3428, %v3812
          %v3877 = vmul.f32 %v3429, %v3813
          %v3878 = vmul.f32 %v3430, %v3814
          %v3879 = vmul.f32 %v3431, %v3815
          %v3880 = vmul.f32 %v3432, %v3816
          %v3881 = vmul.f32 %v3433, %v3817
          %v3882 = vmul.f32 %v3434, %v3818
          %v3883 = vmul.f32 %v3435, %v3819
          %v3884 = vmul.f32 %v3436, %v3820
          %v3885 = vmul.f32 %v3437, %v3821
          %v3886 = vmul.f32 %v3438, %v3822
          %v3887 = vmul.f32 %v3439, %v3823
          %v3888 = vmul.f32 %v3440, %v3824
          %v3889 = vmul.f32 %v3441, %v3825
          %v3890 = vmul.f32 %v3442, %v3826
          %v3891 = vmul.f32 %v3443, %v3827
          %v3892 = vmul.f32 %v3444, %v3828
          %v3893 = vmul.f32 %v3445, %v3829
          %v3894 = vmul.f32 %v3446, %v3830
          %v3895 = vmul.f32 %v3447, %v3831
          %v3896 = vld [vmem:[%s5] sm:$0x1]
          %v3898 = vlaneseq
          %v3899 = vshrl.u32 %v3898, 7
          %v3900 = vsub.s32 0, %v3899
          %v3901 = vrot.slane %v3896, %v3900
          %v3903 = vmul.f32 %v3832, %v3901
          %v3904 = vmul.f32 %v3833, %v3901
          %v3905 = vmul.f32 %v3834, %v3901
          %v3906 = vmul.f32 %v3835, %v3901
          %v3907 = vmul.f32 %v3836, %v3901
          %v3908 = vmul.f32 %v3837, %v3901
          %v3909 = vmul.f32 %v3838, %v3901
          %v3910 = vmul.f32 %v3839, %v3901
          %v3911 = vmul.f32 %v3840, %v3901
          %v3912 = vmul.f32 %v3841, %v3901
          %v3913 = vmul.f32 %v3842, %v3901
          %v3914 = vmul.f32 %v3843, %v3901
          %v3915 = vmul.f32 %v3844, %v3901
          %v3916 = vmul.f32 %v3845, %v3901
          %v3917 = vmul.f32 %v3846, %v3901
          %v3918 = vmul.f32 %v3847, %v3901
          %v3919 = vmul.f32 %v3848, %v3901
          %v3920 = vmul.f32 %v3849, %v3901
          %v3921 = vmul.f32 %v3850, %v3901
          %v3922 = vmul.f32 %v3851, %v3901
          %v3923 = vmul.f32 %v3852, %v3901
          %v3924 = vmul.f32 %v3853, %v3901
          %v3925 = vmul.f32 %v3854, %v3901
          %v3926 = vmul.f32 %v3855, %v3901
          %v3927 = vmul.f32 %v3856, %v3901
          %v3928 = vmul.f32 %v3857, %v3901
          %v3929 = vmul.f32 %v3858, %v3901
          %v3930 = vmul.f32 %v3859, %v3901
          %v3931 = vmul.f32 %v3860, %v3901
          %v3932 = vmul.f32 %v3861, %v3901
          %v3933 = vmul.f32 %v3862, %v3901
          %v3934 = vmul.f32 %v3863, %v3901
          %v3935 = vmul.f32 %v3864, %v3901
          %v3936 = vmul.f32 %v3865, %v3901
          %v3937 = vmul.f32 %v3866, %v3901
          %v3938 = vmul.f32 %v3867, %v3901
          %v3939 = vmul.f32 %v3868, %v3901
          %v3940 = vmul.f32 %v3869, %v3901
          %v3941 = vmul.f32 %v3870, %v3901
          %v3942 = vmul.f32 %v3871, %v3901
          %v3943 = vmul.f32 %v3872, %v3901
          %v3944 = vmul.f32 %v3873, %v3901
          %v3945 = vmul.f32 %v3874, %v3901
          %v3946 = vmul.f32 %v3875, %v3901
          %v3947 = vmul.f32 %v3876, %v3901
          %v3948 = vmul.f32 %v3877, %v3901
          %v3949 = vmul.f32 %v3878, %v3901
          %v3950 = vmul.f32 %v3879, %v3901
          %v3951 = vmul.f32 %v3880, %v3901
          %v3952 = vmul.f32 %v3881, %v3901
          %v3953 = vmul.f32 %v3882, %v3901
          %v3954 = vmul.f32 %v3883, %v3901
          %v3955 = vmul.f32 %v3884, %v3901
          %v3956 = vmul.f32 %v3885, %v3901
          %v3957 = vmul.f32 %v3886, %v3901
          %v3958 = vmul.f32 %v3887, %v3901
          %v3959 = vmul.f32 %v3888, %v3901
          %v3960 = vmul.f32 %v3889, %v3901
          %v3961 = vmul.f32 %v3890, %v3901
          %v3962 = vmul.f32 %v3891, %v3901
          %v3963 = vmul.f32 %v3892, %v3901
          %v3964 = vmul.f32 %v3893, %v3901
          %v3965 = vmul.f32 %v3894, %v3901
          %v3966 = vmul.f32 %v3895, %v3901
          %v3967 = vld [vmem:[%s6] sm:$0x1]
          %v3969 = vlaneseq
          %v3970 = vshrl.u32 %v3969, 7
          %v3971 = vsub.s32 0, %v3970
          %v3972 = vrot.slane %v3967, %v3971
          %v3974 = vadd.f32 %v3903, %v3972
          %v3975 = vadd.f32 %v3904, %v3972
          %v3976 = vadd.f32 %v3905, %v3972
          %v3977 = vadd.f32 %v3906, %v3972
          %v3978 = vadd.f32 %v3907, %v3972
          %v3979 = vadd.f32 %v3908, %v3972
          %v3980 = vadd.f32 %v3909, %v3972
          %v3981 = vadd.f32 %v3910, %v3972
          %v3982 = vadd.f32 %v3911, %v3972
          %v3983 = vadd.f32 %v3912, %v3972
          %v3984 = vadd.f32 %v3913, %v3972
          %v3985 = vadd.f32 %v3914, %v3972
          %v3986 = vadd.f32 %v3915, %v3972
          %v3987 = vadd.f32 %v3916, %v3972
          %v3988 = vadd.f32 %v3917, %v3972
          %v3989 = vadd.f32 %v3918, %v3972
          %v3990 = vadd.f32 %v3919, %v3972
          %v3991 = vadd.f32 %v3920, %v3972
          %v3992 = vadd.f32 %v3921, %v3972
          %v3993 = vadd.f32 %v3922, %v3972
          %v3994 = vadd.f32 %v3923, %v3972
          %v3995 = vadd.f32 %v3924, %v3972
          %v3996 = vadd.f32 %v3925, %v3972
          %v3997 = vadd.f32 %v3926, %v3972
          %v3998 = vadd.f32 %v3927, %v3972
          %v3999 = vadd.f32 %v3928, %v3972
          %v4000 = vadd.f32 %v3929, %v3972
          %v4001 = vadd.f32 %v3930, %v3972
          %v4002 = vadd.f32 %v3931, %v3972
          %v4003 = vadd.f32 %v3932, %v3972
          %v4004 = vadd.f32 %v3933, %v3972
          %v4005 = vadd.f32 %v3934, %v3972
          %v4006 = vadd.f32 %v3935, %v3972
          %v4007 = vadd.f32 %v3936, %v3972
          %v4008 = vadd.f32 %v3937, %v3972
          %v4009 = vadd.f32 %v3938, %v3972
          %v4010 = vadd.f32 %v3939, %v3972
          %v4011 = vadd.f32 %v3940, %v3972
          %v4012 = vadd.f32 %v3941, %v3972
          %v4013 = vadd.f32 %v3942, %v3972
          %v4014 = vadd.f32 %v3943, %v3972
          %v4015 = vadd.f32 %v3944, %v3972
          %v4016 = vadd.f32 %v3945, %v3972
          %v4017 = vadd.f32 %v3946, %v3972
          %v4018 = vadd.f32 %v3947, %v3972
          %v4019 = vadd.f32 %v3948, %v3972
          %v4020 = vadd.f32 %v3949, %v3972
          %v4021 = vadd.f32 %v3950, %v3972
          %v4022 = vadd.f32 %v3951, %v3972
          %v4023 = vadd.f32 %v3952, %v3972
          %v4024 = vadd.f32 %v3953, %v3972
          %v4025 = vadd.f32 %v3954, %v3972
          %v4026 = vadd.f32 %v3955, %v3972
          %v4027 = vadd.f32 %v3956, %v3972
          %v4028 = vadd.f32 %v3957, %v3972
          %v4029 = vadd.f32 %v3958, %v3972
          %v4030 = vadd.f32 %v3959, %v3972
          %v4031 = vadd.f32 %v3960, %v3972
          %v4032 = vadd.f32 %v3961, %v3972
          %v4033 = vadd.f32 %v3962, %v3972
          %v4034 = vadd.f32 %v3963, %v3972
          %v4035 = vadd.f32 %v3964, %v3972
          %v4036 = vadd.f32 %v3965, %v3972
          %v4037 = vadd.f32 %v3966, %v3972
          %4038 = vst [vmem:[%s367] sm:$0xff] %v3974
          %4039 = vst [vmem:[%s367 + $0x8] sm:$0xff] %v3975
          %4040 = vst [vmem:[%s367 + $0x10] sm:$0xff] %v3976
          %4041 = vst [vmem:[%s367 + $0x18] sm:$0xff] %v3977
          %4042 = vst [vmem:[%s367 + $0x20] sm:$0xff] %v3978
          %4043 = vst [vmem:[%s367 + $0x28] sm:$0xff] %v3979
          %4044 = vst [vmem:[%s367 + $0x30] sm:$0xff] %v3980
          %4045 = vst [vmem:[%s367 + $0x38] sm:$0xff] %v3981
          %4046 = vst [vmem:[%s367 + $0x40] sm:$0xff] %v3982
          %4047 = vst [vmem:[%s367 + $0x48] sm:$0xff] %v3983
          %4048 = vst [vmem:[%s367 + $0x50] sm:$0xff] %v3984
          %4049 = vst [vmem:[%s367 + $0x58] sm:$0xff] %v3985
          %4050 = vst [vmem:[%s367 + $0x60] sm:$0xff] %v3986
          %4051 = vst [vmem:[%s367 + $0x68] sm:$0xff] %v3987
          %4052 = vst [vmem:[%s367 + $0x70] sm:$0xff] %v3988
          %4053 = vst [vmem:[%s367 + $0x78] sm:$0xff] %v3989
          %4054 = vst [vmem:[%s367 + $0x80] sm:$0xff] %v3990
          %4055 = vst [vmem:[%s367 + $0x88] sm:$0xff] %v3991
          %4056 = vst [vmem:[%s367 + $0x90] sm:$0xff] %v3992
          %4057 = vst [vmem:[%s367 + $0x98] sm:$0xff] %v3993
          %4058 = vst [vmem:[%s367 + $0xa0] sm:$0xff] %v3994
          %4059 = vst [vmem:[%s367 + $0xa8] sm:$0xff] %v3995
          %4060 = vst [vmem:[%s367 + $0xb0] sm:$0xff] %v3996
          %4061 = vst [vmem:[%s367 + $0xb8] sm:$0xff] %v3997
          %4062 = vst [vmem:[%s367 + $0xc0] sm:$0xff] %v3998
          %4063 = vst [vmem:[%s367 + $0xc8] sm:$0xff] %v3999
          %4064 = vst [vmem:[%s367 + $0xd0] sm:$0xff] %v4000
          %4065 = vst [vmem:[%s367 + $0xd8] sm:$0xff] %v4001
          %4066 = vst [vmem:[%s367 + $0xe0] sm:$0xff] %v4002
          %4067 = vst [vmem:[%s367 + $0xe8] sm:$0xff] %v4003
          %4068 = vst [vmem:[%s367 + $0xf0] sm:$0xff] %v4004
          %4069 = vst [vmem:[%s367 + $0xf8] sm:$0xff] %v4005
          %4070 = vst [vmem:[%s367 + $0x100] sm:$0xff] %v4006
          %4071 = vst [vmem:[%s367 + $0x108] sm:$0xff] %v4007
          %4072 = vst [vmem:[%s367 + $0x110] sm:$0xff] %v4008
          %4073 = vst [vmem:[%s367 + $0x118] sm:$0xff] %v4009
          %4074 = vst [vmem:[%s367 + $0x120] sm:$0xff] %v4010
          %4075 = vst [vmem:[%s367 + $0x128] sm:$0xff] %v4011
          %4076 = vst [vmem:[%s367 + $0x130] sm:$0xff] %v4012
          %4077 = vst [vmem:[%s367 + $0x138] sm:$0xff] %v4013
          %4078 = vst [vmem:[%s367 + $0x140] sm:$0xff] %v4014
          %4079 = vst [vmem:[%s367 + $0x148] sm:$0xff] %v4015
          %4080 = vst [vmem:[%s367 + $0x150] sm:$0xff] %v4016
          %4081 = vst [vmem:[%s367 + $0x158] sm:$0xff] %v4017
          %4082 = vst [vmem:[%s367 + $0x160] sm:$0xff] %v4018
          %4083 = vst [vmem:[%s367 + $0x168] sm:$0xff] %v4019
          %4084 = vst [vmem:[%s367 + $0x170] sm:$0xff] %v4020
          %4085 = vst [vmem:[%s367 + $0x178] sm:$0xff] %v4021
          %4086 = vst [vmem:[%s367 + $0x180] sm:$0xff] %v4022
          %4087 = vst [vmem:[%s367 + $0x188] sm:$0xff] %v4023
          %4088 = vst [vmem:[%s367 + $0x190] sm:$0xff] %v4024
          %4089 = vst [vmem:[%s367 + $0x198] sm:$0xff] %v4025
          %4090 = vst [vmem:[%s367 + $0x1a0] sm:$0xff] %v4026
          %4091 = vst [vmem:[%s367 + $0x1a8] sm:$0xff] %v4027
          %4092 = vst [vmem:[%s367 + $0x1b0] sm:$0xff] %v4028
          %4093 = vst [vmem:[%s367 + $0x1b8] sm:$0xff] %v4029
          %4094 = vst [vmem:[%s367 + $0x1c0] sm:$0xff] %v4030
          %4095 = vst [vmem:[%s367 + $0x1c8] sm:$0xff] %v4031
          %4096 = vst [vmem:[%s367 + $0x1d0] sm:$0xff] %v4032
          %4097 = vst [vmem:[%s367 + $0x1d8] sm:$0xff] %v4033
          %4098 = vst [vmem:[%s367 + $0x1e0] sm:$0xff] %v4034
          %4099 = vst [vmem:[%s367 + $0x1e8] sm:$0xff] %v4035
          %4100 = vst [vmem:[%s367 + $0x1f0] sm:$0xff] %v4036
          %4101 = vst [vmem:[%s367 + $0x1f8] sm:$0xff] %v4037
        $region68: #{tpu_custom_call.1} parent=47 // pred_fallthru
          _
        %s4102 = sand.u32 %s212, 1
        %s4103 = scalar_lea.sflag [#allocation6], %s4102
        %s4104 = sand.u32 %s212, 1
        %s4105 = smul.addr %s4104, 512
        %s4106 = scalar_lea.vmem [#allocation10], %s4105
        // Predicated region
        $region69: #{tpu_custom_call.1} parent=47 // pred_check
          %p4107 = pneg %p222
        $region70: #{tpu_custom_call.1} parent=47 // pred_check_branch
          %4109 = sbr.rel (%p4107) target = $region72
        $region71: #{tpu_custom_call.1} parent=47 // pred_region
          %s4110 = smul.u32 64, %s29
          %s4112 = ssub.s32 8192, 8192
          %4113 = vsyncadd %s4103, %s4112
          %s4114 = smul.addr %s4110, 128
          %s4115 = scalar_lea.hbm %s7, %s4114
          %s4116 = sshll.u32 %s4106, 4
          %s4117 = int_to_ptr.vmem [resolvable:$true] %s4116
          %4122 = dma.vmem_to_hbm [thread:$0]  %s4117, 8192, %s4115, %s4103, 128, 128, 8
        $region72: #{tpu_custom_call.1} parent=47 // pred_fallthru
          _
      $region48: #{tpu_custom_call.1} parent=5 // pred_fallthru
        _
      %p4123 = scmp.le.s32.totalorder 2, %s20
      // Predicated region
      $region73: #{tpu_custom_call.1} parent=5 // pred_check
        %p4124 = pneg %p4123
      $region74: #{tpu_custom_call.1} parent=5 // pred_check_branch
        %4126 = sbr.rel (%p4124) target = $region76
      $region75: #{tpu_custom_call.1} parent=5 // pred_region
        %s4127 = ssub.s32 %s20, 2
        // Predicated region
        $region77: #{tpu_custom_call.1} parent=75 // pred_check
          %p4128 = pneg %p228
        $region78: #{tpu_custom_call.1} parent=75 // pred_check_branch
          %4130 = sbr.rel (%p4128) target = $region80
        $region79: #{tpu_custom_call.1} parent=75 // pred_region
          %s4131 = sand.u32 %s213, 1
          %s4132 = scalar_lea.sflag [#allocation6], %s4131
          %s4133 = sand.u32 %s213, 1
          %s4134 = smul.addr %s4133, 512
          %s4135 = scalar_lea.vmem [#allocation10], %s4134
          %4136 = dma.done %s4132, 8192
        $region80: #{tpu_custom_call.1} parent=75 // pred_fallthru
          _
      $region76: #{tpu_custom_call.1} parent=5 // pred_fallthru
        _
    $region6: #{tpu_custom_call.1} parent=1 // loop_footer
      %s24 = sadd.s32 1, %s20
    $region7: #{tpu_custom_call.1} parent=1 // loop_footer_branch
      %19 = sbr.rel target = $region3
    $region8: #{tpu_custom_call.1} parent=1 // loop_exit
      _
    %4137 = vsyncpa [#allocation5], 1
    %s4138 = scalar_lea.sflag [#allocation5], 1
    %4139 = vsyncpa %s4138, 1
    %4140 = vsyncpa [#allocation8], 1
    %4141 = vsyncpa [#allocation6], 1
    %s4142 = scalar_lea.sflag [#allocation6], 1
    %4143 = vsyncpa %s4142, 1

</llo_original>
